<compile_context>
chip_gen: v7x
topology: tpu7x:2x2x1
jax: 0.10.0
libtpu: 0.0.40
codegen_flags: <defaults>
</compile_context>

<pallas_src>
import jax
import jax.numpy as jnp
from jax.experimental import pallas as pl
from jax.experimental.pallas import tpu as pltpu


def _sigmoid(z):
    # exp lowers to the EUP; identical formula used in kernel and reference.
    return 1.0 / (1.0 + jnp.exp(-z))


def _bilstm_encoder_kernel(len_ref, x_ref, wih_ref, whhf_ref, whhb_ref, bias_ref,
                           out_ref, sent_ref,
                           xp_ref, hf_ref, cf_ref, hb_ref, cb_ref):
    # len_ref: (B, 1) i32      x_ref: (T, B, E)  pre-embedded captions
    # wih_ref: (E, 8H)         whh*_ref: (H, 4H)   bias_ref: (1, 8H)
    # out_ref: (T, B, 2H)      sent_ref: (B, 2H)
    # xp_ref: (T, B, 8H) f32   h*/c*_ref: (B, H) f32
    T, B, E = x_ref.shape
    H = whhf_ref.shape[0]
    G = 4 * H
    f32 = jnp.float32

    # Input projections for BOTH directions and all timesteps in one MXU pass;
    # biases are folded here so the serial loop has no per-step bias add.
    x = x_ref[...].reshape(T * B, E)
    xp = jnp.dot(x, wih_ref[...], preferred_element_type=f32)
    xp_ref[...] = (xp + bias_ref[...]).reshape(T, B, 2 * G)

    lens = len_ref[...]                       # (B, 1) i32

    hf_ref[...] = jnp.zeros_like(hf_ref)
    cf_ref[...] = jnp.zeros_like(cf_ref)
    hb_ref[...] = jnp.zeros_like(hb_ref)
    cb_ref[...] = jnp.zeros_like(cb_ref)

    def gate_math(g, h, c, valid):
        # PyTorch gate order: i, f, g, o.  exp/tanh go to the EUP slot.
        i_g = _sigmoid(g[:, 0:H])
        f_g = _sigmoid(g[:, H:2 * H])
        g_g = jnp.tanh(g[:, 2 * H:3 * H])
        o_g = _sigmoid(g[:, 3 * H:4 * H])
        c_new = f_g * c + i_g * g_g
        h_new = o_g * jnp.tanh(c_new)
        # packed-sequence mask: freeze state / zero output past the length.
        return (jnp.where(valid, h_new, h),
                jnp.where(valid, c_new, c),
                jnp.where(valid, h_new, 0.0))

    # One time loop advancing BOTH directions per iteration; the two recurrence
    # chains are independent so the scheduler overlaps their MXU/EUP latency.
    def body(s, carry):
        tf = s
        tb = T - 1 - s
        g_f = xp_ref[tf, :, 0:G] + jnp.dot(hf_ref[...], whhf_ref[...],
                                           preferred_element_type=f32)
        g_b = xp_ref[tb, :, G:2 * G] + jnp.dot(hb_ref[...], whhb_ref[...],
                                               preferred_element_type=f32)
        hf, cf, yf = gate_math(g_f, hf_ref[...], cf_ref[...], tf < lens)
        hb, cb, yb = gate_math(g_b, hb_ref[...], cb_ref[...], tb < lens)
        hf_ref[...] = hf
        cf_ref[...] = cf
        hb_ref[...] = hb
        cb_ref[...] = cb
        out_ref[tf, :, 0:H] = yf              # forward half of the 2H lanes
        out_ref[tb, :, H:2 * H] = yb          # backward half
        return carry

    unroll = True if T <= 8 else 4            # cap unroll once T grows
    jax.lax.fori_loop(0, T, body, 0, unroll=unroll)

    sent_ref[:, 0:H] = hf_ref[...]            # forward-direction h_n
    sent_ref[:, H:2 * H] = hb_ref[...]        # backward-direction h_n


def rnn_encoder_forward(captions, cap_lens, emb_table,
                        wih_f, whh_f, bih_f, bhh_f,
                        wih_b, whh_b, bih_b, bhh_b):
    """captions: (b, T) int ids; cap_lens: (b,) ints >= 1;
    emb_table: (V, E); LSTM params in PyTorch layout:
      wih_*: (4H, E), whh_*: (4H, H), biases: (4H,).
    Returns (words_emb, sent_emb) = ((b, 2H, T), (b, 2H)) float32.
    Output time width is T (= n_steps); positions >= cap_lens[i] are zero,
    which equals torch's pad_packed_sequence output when max(cap_lens) == T.
    """
    # TODO(synk): training-mode nn.Dropout is not applied (eval-mode identity).
    # TODO(synk): only the cfg.RNN_TYPE == 'LSTM' branch is implemented (GRU not).
    b, T = captions.shape
    V, E = emb_table.shape
    H = whh_f.shape[1]

    # Embedding lookup wrapper-side (XLA gather): the vocab table never enters
    # VMEM, removing the one-hot matmul and the v7x/v5e VMEM blocker.
    x = emb_table[captions.astype(jnp.int32)]            # (b, T, E)
    lens_i32 = cap_lens.astype(jnp.int32)

    # Batch blocking: whole (sublane-aligned) batch per grid step up to 128 rows.
    if b <= 128:
        Bblk = ((b + 7) // 8) * 8
    else:
        Bblk = 128
    b_pad = ((b + Bblk - 1) // Bblk) * Bblk
    if b_pad != b:
        x = jnp.pad(x, ((0, b_pad - b), (0, 0), (0, 0)))
        lens_i32 = jnp.pad(lens_i32, (0, b_pad - b))     # padded rows -> len 0
    x_tbe = jnp.transpose(x, (1, 0, 2))                  # (T, b_pad, E)
    lens2 = lens_i32.reshape(b_pad, 1)

    # Fuse both directions' input weights into one (E, 8H) operand, fold the
    # biases, and pre-transpose recurrence weights so every in-kernel matmul is
    # a plain lane-dense (rows, K) @ (K, N).  Weights stay in native dtype.
    wih_cat = jnp.concatenate([wih_f.T, wih_b.T], axis=1)           # (E, 8H)
    bias_cat = jnp.concatenate([bih_f + bhh_f, bih_b + bhh_b]
                               ).reshape(1, 8 * H)
    whhT_f = whh_f.T                                                # (H, 4H)
    whhT_b = whh_b.T

    n_blocks = b_pad // Bblk
    out, sent = pl.pallas_call(
        _bilstm_encoder_kernel,
        out_shape=(
            jax.ShapeDtypeStruct((T, b_pad, 2 * H), jnp.float32),
            jax.ShapeDtypeStruct((b_pad, 2 * H), jnp.float32),
        ),
        grid_spec=pltpu.PrefetchScalarGridSpec(
            num_scalar_prefetch=0,
            grid=(n_blocks,),
            in_specs=[
                pl.BlockSpec((Bblk, 1), lambda i: (i, 0)),
                pl.BlockSpec((T, Bblk, E), lambda i: (0, i, 0)),
                pl.BlockSpec((E, 8 * H), lambda i: (0, 0)),
                pl.BlockSpec((H, 4 * H), lambda i: (0, 0)),
                pl.BlockSpec((H, 4 * H), lambda i: (0, 0)),
                pl.BlockSpec((1, 8 * H), lambda i: (0, 0)),
            ],
            out_specs=[
                pl.BlockSpec((T, Bblk, 2 * H), lambda i: (0, i, 0)),
                pl.BlockSpec((Bblk, 2 * H), lambda i: (i, 0)),
            ],
            scratch_shapes=[
                pltpu.VMEM((T, Bblk, 8 * H), jnp.float32),
                pltpu.VMEM((Bblk, H), jnp.float32),
                pltpu.VMEM((Bblk, H), jnp.float32),
                pltpu.VMEM((Bblk, H), jnp.float32),
                pltpu.VMEM((Bblk, H), jnp.float32),
            ],
        ),
        compiler_params=pltpu.CompilerParams(
            dimension_semantics=("parallel",),
            vmem_limit_bytes=48 * 1024 * 1024),
    )(lens2, x_tbe, wih_cat, whhT_f, whhT_b, bias_cat)

    # Module contract requires words_emb as (b, 2H, T); transpose here.
    words_emb = out.transpose(1, 2, 0)[:b]               # (b, 2H, T)
    sent_emb = sent[:b]                                  # (b, 2H)
    return words_emb, sent_emb


def _reference(captions, cap_lens, emb_table,
               wih_f, whh_f, bih_f, bhh_f,
               wih_b, whh_b, bih_b, bhh_b):
    """Pure-JAX mirror of the PyTorch forward (eval mode, packed BiLSTM)."""
    b, T = captions.shape
    H = whh_f.shape[1]
    x = emb_table[captions]                              # (b, T, E)

    def run(reverse, wih, whh, bih, bhh):
        h = jnp.zeros((b, H), jnp.float32)
        c = jnp.zeros((b, H), jnp.float32)
        out = jnp.zeros((b, T, H), jnp.float32)
        order = range(T - 1, -1, -1) if reverse else range(T)
        for t in order:
            g = x[:, t, :] @ wih.T + bih + h @ whh.T + bhh
            i_g = _sigmoid(g[:, 0:H])
            f_g = _sigmoid(g[:, H:2 * H])
            g_g = jnp.tanh(g[:, 2 * H:3 * H])
            o_g = _sigmoid(g[:, 3 * H:4 * H])
            c_new = f_g * c + i_g * g_g
            h_new = o_g * jnp.tanh(c_new)
            valid = (t < cap_lens)[:, None]
            h = jnp.where(valid, h_new, h)
            c = jnp.where(valid, c_new, c)
            out = out.at[:, t, :].set(jnp.where(valid, h_new, 0.0))
        return out, h

    of, hf = run(False, wih_f, whh_f, bih_f, bhh_f)
    ob, hb = run(True, wih_b, whh_b, bih_b, bhh_b)
    output = jnp.concatenate([of, ob], axis=-1)          # (b, T, 2H)
    words_emb = output.transpose(0, 2, 1)                # (b, 2H, T)
    sent_emb = jnp.concatenate([hf, hb], axis=-1)        # (b, 2H)
    return words_emb, sent_emb


if __name__ == "__main__":
    # Small shapes consistent with the module: ntoken=V, ninput=E, nhidden=32
    # (bidirectional -> H = 16 per direction), n_steps=T.
    b, T = 2, 8
    V, E = 64, 32
    nhidden = 32
    H = nhidden // 2

    key = jax.random.PRNGKey(0)
    ks = jax.random.split(key, 10)
    captions = jax.random.randint(ks[0], (b, T), 1, V, dtype=jnp.int32)
    cap_lens = jnp.array([T, 5], dtype=jnp.int32)        # sorted desc, max == T
    emb_table = jax.random.uniform(ks[1], (V, E), minval=-0.1, maxval=0.1,
                                   dtype=jnp.float32)    # encoder.init_weights

    bound = 1.0 / (H ** 0.5)                             # nn.LSTM default init
    def p(k, shape):
        return jax.random.uniform(k, shape, minval=-bound, maxval=bound,
                                  dtype=jnp.float32)
    wih_f, whh_f = p(ks[2], (4 * H, E)), p(ks[3], (4 * H, H))
    bih_f, bhh_f = p(ks[4], (4 * H,)), p(ks[5], (4 * H,))
    wih_b, whh_b = p(ks[6], (4 * H, E)), p(ks[7], (4 * H, H))
    bih_b, bhh_b = p(ks[8], (4 * H,)), p(ks[9], (4 * H,))

    words_emb, sent_emb = rnn_encoder_forward(
        captions, cap_lens, emb_table,
        wih_f, whh_f, bih_f, bhh_f, wih_b, whh_b, bih_b, bhh_b)
    words_emb, sent_emb = jax.block_until_ready((words_emb, sent_emb))

    ref_w, ref_s = _reference(
        captions, cap_lens, emb_table,
        wih_f, whh_f, bih_f, bhh_f, wih_b, whh_b, bih_b, bhh_b)
    ref_w, ref_s = jax.block_until_ready((ref_w, ref_s))

    assert words_emb.shape == (b, 2 * H, T)
    assert sent_emb.shape == (b, 2 * H)
    assert jnp.allclose(words_emb, ref_w, atol=1e-5, rtol=1e-5)
    assert jnp.allclose(sent_emb, ref_s, atol=1e-5, rtol=1e-5)
    print("KERNEL_OK")
</pallas_src>

<mosaic_0001>
module attributes {stable_mosaic.version = 11 : i64} {
  func.func @_bilstm_encoder_kernel(%arg0: i32, %arg1: memref<8x1xi32, #tpu.memory_space<vmem>>, %arg2: memref<8x8x32xf32, #tpu.memory_space<vmem>>, %arg3: memref<32x128xf32, #tpu.memory_space<vmem>>, %arg4: memref<16x64xf32, #tpu.memory_space<vmem>>, %arg5: memref<16x64xf32, #tpu.memory_space<vmem>>, %arg6: memref<1x128xf32, #tpu.memory_space<vmem>>, %arg7: memref<8x8x32xf32, #tpu.memory_space<vmem>>, %arg8: memref<8x32xf32, #tpu.memory_space<vmem>>, %arg9: memref<8x8x128xf32, #tpu.memory_space<vmem>>, %arg10: memref<8x16xf32, #tpu.memory_space<vmem>>, %arg11: memref<8x16xf32, #tpu.memory_space<vmem>>, %arg12: memref<8x16xf32, #tpu.memory_space<vmem>>, %arg13: memref<8x16xf32, #tpu.memory_space<vmem>>) attributes {dimension_semantics = [#tpu.dimension_semantics<parallel>], iteration_bounds = array<i64: 1>, scalar_prefetch = 0 : i64, scratch_operands = 5 : i64, tpu.core_type = #tpu.core_type<tc>, window_params = [{transform_indices = @transform_0, window_bounds = array<i64: 8, 1>}, {transform_indices = @transform_1, window_bounds = array<i64: 8, 8, 32>}, {pipeline_mode = #tpu.pipeline_mode<synchronous>, transform_indices = @transform_2, window_bounds = array<i64: 32, 128>}, {pipeline_mode = #tpu.pipeline_mode<synchronous>, transform_indices = @transform_3, window_bounds = array<i64: 16, 64>}, {pipeline_mode = #tpu.pipeline_mode<synchronous>, transform_indices = @transform_4, window_bounds = array<i64: 16, 64>}, {pipeline_mode = #tpu.pipeline_mode<synchronous>, transform_indices = @transform_5, window_bounds = array<i64: 1, 128>}, {transform_indices = @transform_6, window_bounds = array<i64: 8, 8, 32>}, {transform_indices = @transform_7, window_bounds = array<i64: 8, 32>}]} {
    %c0 = arith.constant 0 : index
    %c0_0 = arith.constant 0 : index
    %c0_1 = arith.constant 0 : index
    %0 = vector.load %arg2[%c0, %c0_0, %c0_1] : memref<8x8x32xf32, #tpu.memory_space<vmem>>, vector<8x8x32xf32>
    %1 = vector.shape_cast %0 : vector<8x8x32xf32> to vector<64x32xf32>
    %c0_2 = arith.constant 0 : index
    %c0_3 = arith.constant 0 : index
    %2 = vector.load %arg3[%c0_2, %c0_3] : memref<32x128xf32, #tpu.memory_space<vmem>>, vector<32x128xf32>
    %cst = arith.constant dense<0.000000e+00> : vector<64x128xf32>
    %3 = tpu.matmul %1, %2, %cst {dimension_numbers = #tpu.dot_dimension_numbers<[1], [0], [0], [1], [0, 0, 1, 1], [], []>} : vector<64x32xf32>, vector<32x128xf32>, vector<64x128xf32> -> vector<64x128xf32>
    %c0_4 = arith.constant 0 : index
    %c0_5 = arith.constant 0 : index
    %4 = vector.load %arg6[%c0_4, %c0_5] : memref<1x128xf32, #tpu.memory_space<vmem>>, vector<1x128xf32>
    %5 = vector.broadcast %4 : vector<1x128xf32> to vector<64x128xf32>
    %6 = arith.addf %3, %5 : vector<64x128xf32>
    %7 = vector.shape_cast %6 : vector<64x128xf32> to vector<8x8x128xf32>
    %c0_6 = arith.constant 0 : index
    %c0_7 = arith.constant 0 : index
    %c0_8 = arith.constant 0 : index
    %8 = vector.load %arg9[%c0_6, %c0_7, %c0_8] : memref<8x8x128xf32, #tpu.memory_space<vmem>>, vector<8x8x128xf32>
    tpu.vector_store %arg9[%c0_6, %c0_7, %c0_8], %7 {strides = array<i32>} : memref<8x8x128xf32, #tpu.memory_space<vmem>>, vector<8x8x128xf32>,
    %c0_9 = arith.constant 0 : index
    %c0_10 = arith.constant 0 : index
    %9 = vector.load %arg1[%c0_9, %c0_10] : memref<8x1xi32, #tpu.memory_space<vmem>>, vector<8x1xi32>
    %cst_11 = arith.constant 0.000000e+00 : f32
    %10 = vector.broadcast %cst_11 : f32 to vector<8x16xf32>
    %c0_12 = arith.constant 0 : index
    %c0_13 = arith.constant 0 : index
    %11 = vector.load %arg10[%c0_12, %c0_13] : memref<8x16xf32, #tpu.memory_space<vmem>>, vector<8x16xf32>
    tpu.vector_store %arg10[%c0_12, %c0_13], %10 {strides = array<i32>} : memref<8x16xf32, #tpu.memory_space<vmem>>, vector<8x16xf32>,
    %cst_14 = arith.constant 0.000000e+00 : f32
    %12 = vector.broadcast %cst_14 : f32 to vector<8x16xf32>
    %c0_15 = arith.constant 0 : index
    %c0_16 = arith.constant 0 : index
    %13 = vector.load %arg11[%c0_15, %c0_16] : memref<8x16xf32, #tpu.memory_space<vmem>>, vector<8x16xf32>
    tpu.vector_store %arg11[%c0_15, %c0_16], %12 {strides = array<i32>} : memref<8x16xf32, #tpu.memory_space<vmem>>, vector<8x16xf32>,
    %cst_17 = arith.constant 0.000000e+00 : f32
    %14 = vector.broadcast %cst_17 : f32 to vector<8x16xf32>
    %c0_18 = arith.constant 0 : index
    %c0_19 = arith.constant 0 : index
    %15 = vector.load %arg12[%c0_18, %c0_19] : memref<8x16xf32, #tpu.memory_space<vmem>>, vector<8x16xf32>
    tpu.vector_store %arg12[%c0_18, %c0_19], %14 {strides = array<i32>} : memref<8x16xf32, #tpu.memory_space<vmem>>, vector<8x16xf32>,
    %cst_20 = arith.constant 0.000000e+00 : f32
    %16 = vector.broadcast %cst_20 : f32 to vector<8x16xf32>
    %c0_21 = arith.constant 0 : index
    %c0_22 = arith.constant 0 : index
    %17 = vector.load %arg13[%c0_21, %c0_22] : memref<8x16xf32, #tpu.memory_space<vmem>>, vector<8x16xf32>
    tpu.vector_store %arg13[%c0_21, %c0_22], %16 {strides = array<i32>} : memref<8x16xf32, #tpu.memory_space<vmem>>, vector<8x16xf32>,
    %c0_i32 = arith.constant 0 : i32
    %c7_i32 = arith.constant 7 : i32
    %18 = arith.subi %c7_i32, %c0_i32 : i32
    %19 = arith.index_cast %c0_i32 : i32 to index
    %c0_23 = arith.constant 0 : index
    %c0_24 = arith.constant 0 : index
    %20 = vector.load %arg9[%19, %c0_23, %c0_24] : memref<8x8x128xf32, #tpu.memory_space<vmem>>, vector<1x8x64xf32>
    %21 = vector.shape_cast %20 : vector<1x8x64xf32> to vector<8x64xf32>
    %c0_25 = arith.constant 0 : index
    %c0_26 = arith.constant 0 : index
    %22 = vector.load %arg10[%c0_25, %c0_26] : memref<8x16xf32, #tpu.memory_space<vmem>>, vector<8x16xf32>
    %c0_27 = arith.constant 0 : index
    %c0_28 = arith.constant 0 : index
    %23 = vector.load %arg4[%c0_27, %c0_28] : memref<16x64xf32, #tpu.memory_space<vmem>>, vector<16x64xf32>
    %cst_29 = arith.constant dense<0.000000e+00> : vector<8x64xf32>
    %24 = tpu.matmul %22, %23, %cst_29 {dimension_numbers = #tpu.dot_dimension_numbers<[1], [0], [0], [1], [0, 0, 1, 1], [], []>} : vector<8x16xf32>, vector<16x64xf32>, vector<8x64xf32> -> vector<8x64xf32>
    %25 = arith.addf %21, %24 : vector<8x64xf32>
    %26 = arith.index_cast %18 : i32 to index
    %c0_30 = arith.constant 0 : index
    %c64 = arith.constant 64 : index
    %27 = vector.load %arg9[%26, %c0_30, %c64] : memref<8x8x128xf32, #tpu.memory_space<vmem>>, vector<1x8x64xf32>
    %28 = vector.shape_cast %27 : vector<1x8x64xf32> to vector<8x64xf32>
    %c0_31 = arith.constant 0 : index
    %c0_32 = arith.constant 0 : index
    %29 = vector.load %arg12[%c0_31, %c0_32] : memref<8x16xf32, #tpu.memory_space<vmem>>, vector<8x16xf32>
    %c0_33 = arith.constant 0 : index
    %c0_34 = arith.constant 0 : index
    %30 = vector.load %arg5[%c0_33, %c0_34] : memref<16x64xf32, #tpu.memory_space<vmem>>, vector<16x64xf32>
    %cst_35 = arith.constant dense<0.000000e+00> : vector<8x64xf32>
    %31 = tpu.matmul %29, %30, %cst_35 {dimension_numbers = #tpu.dot_dimension_numbers<[1], [0], [0], [1], [0, 0, 1, 1], [], []>} : vector<8x16xf32>, vector<16x64xf32>, vector<8x64xf32> -> vector<8x64xf32>
    %32 = arith.addf %28, %31 : vector<8x64xf32>
    %c0_36 = arith.constant 0 : index
    %c0_37 = arith.constant 0 : index
    %33 = vector.load %arg10[%c0_36, %c0_37] : memref<8x16xf32, #tpu.memory_space<vmem>>, vector<8x16xf32>
    %c0_38 = arith.constant 0 : index
    %c0_39 = arith.constant 0 : index
    %34 = vector.load %arg11[%c0_38, %c0_39] : memref<8x16xf32, #tpu.memory_space<vmem>>, vector<8x16xf32>
    %35 = vector.broadcast %c0_i32 : i32 to vector<8x1xi32>
    %36 = arith.cmpi slt, %35, %9 : vector<8x1xi32>
    %37 = vector.extract_strided_slice %25 {offsets = [0, 0], sizes = [8, 16], strides = [1, 1]} : vector<8x64xf32> to vector<8x16xf32>
    %cst_40 = arith.constant 0.000000e+00 : f32
    %38 = vector.broadcast %cst_40 : f32 to vector<8x16xf32>
    %39 = arith.subf %38, %37 : vector<8x16xf32>
    %40 = math.exp %39 : vector<8x16xf32>
    %cst_41 = arith.constant 1.000000e+00 : f32
    %41 = vector.broadcast %cst_41 : f32 to vector<8x16xf32>
    %42 = arith.addf %41, %40 : vector<8x16xf32>
    %cst_42 = arith.constant 1.000000e+00 : f32
    %43 = vector.broadcast %cst_42 : f32 to vector<8x16xf32>
    %44 = arith.divf %43, %42 : vector<8x16xf32>
    %45 = vector.extract_strided_slice %25 {offsets = [0, 16], sizes = [8, 16], strides = [1, 1]} : vector<8x64xf32> to vector<8x16xf32>
    %cst_43 = arith.constant 0.000000e+00 : f32
    %46 = vector.broadcast %cst_43 : f32 to vector<8x16xf32>
    %47 = arith.subf %46, %45 : vector<8x16xf32>
    %48 = math.exp %47 : vector<8x16xf32>
    %cst_44 = arith.constant 1.000000e+00 : f32
    %49 = vector.broadcast %cst_44 : f32 to vector<8x16xf32>
    %50 = arith.addf %49, %48 : vector<8x16xf32>
    %cst_45 = arith.constant 1.000000e+00 : f32
    %51 = vector.broadcast %cst_45 : f32 to vector<8x16xf32>
    %52 = arith.divf %51, %50 : vector<8x16xf32>
    %53 = vector.extract_strided_slice %25 {offsets = [0, 32], sizes = [8, 16], strides = [1, 1]} : vector<8x64xf32> to vector<8x16xf32>
    %54 = math.tanh %53 : vector<8x16xf32>
    %55 = vector.extract_strided_slice %25 {offsets = [0, 48], sizes = [8, 16], strides = [1, 1]} : vector<8x64xf32> to vector<8x16xf32>
    %cst_46 = arith.constant 0.000000e+00 : f32
    %56 = vector.broadcast %cst_46 : f32 to vector<8x16xf32>
    %57 = arith.subf %56, %55 : vector<8x16xf32>
    %58 = math.exp %57 : vector<8x16xf32>
    %cst_47 = arith.constant 1.000000e+00 : f32
    %59 = vector.broadcast %cst_47 : f32 to vector<8x16xf32>
    %60 = arith.addf %59, %58 : vector<8x16xf32>
    %cst_48 = arith.constant 1.000000e+00 : f32
    %61 = vector.broadcast %cst_48 : f32 to vector<8x16xf32>
    %62 = arith.divf %61, %60 : vector<8x16xf32>
    %63 = arith.mulf %52, %34 : vector<8x16xf32>
    %64 = arith.mulf %44, %54 : vector<8x16xf32>
    %65 = arith.addf %63, %64 : vector<8x16xf32>
    %66 = math.tanh %65 : vector<8x16xf32>
    %67 = arith.mulf %62, %66 : vector<8x16xf32>
    %68 = vector.shape_cast %36 : vector<8x1xi1> to vector<8x1xi1>
    %69 = vector.broadcast %68 : vector<8x1xi1> to vector<8x16xi1>
    %70 = arith.select %69, %67, %33 : vector<8x16xi1>, vector<8x16xf32>
    %71 = vector.shape_cast %36 : vector<8x1xi1> to vector<8x1xi1>
    %72 = vector.broadcast %71 : vector<8x1xi1> to vector<8x16xi1>
    %73 = arith.select %72, %65, %34 : vector<8x16xi1>, vector<8x16xf32>
    %cst_49 = arith.constant 0.000000e+00 : f32
    %74 = vector.shape_cast %36 : vector<8x1xi1> to vector<8x1xi1>
    %75 = vector.broadcast %74 : vector<8x1xi1> to vector<8x16xi1>
    %76 = vector.broadcast %cst_49 : f32 to vector<8x16xf32>
    %77 = arith.select %75, %67, %76 : vector<8x16xi1>, vector<8x16xf32>
    %c0_50 = arith.constant 0 : index
    %c0_51 = arith.constant 0 : index
    %78 = vector.load %arg12[%c0_50, %c0_51] : memref<8x16xf32, #tpu.memory_space<vmem>>, vector<8x16xf32>
    %c0_52 = arith.constant 0 : index
    %c0_53 = arith.constant 0 : index
    %79 = vector.load %arg13[%c0_52, %c0_53] : memref<8x16xf32, #tpu.memory_space<vmem>>, vector<8x16xf32>
    %80 = vector.broadcast %18 : i32 to vector<8x1xi32>
    %81 = arith.cmpi slt, %80, %9 : vector<8x1xi32>
    %82 = vector.extract_strided_slice %32 {offsets = [0, 0], sizes = [8, 16], strides = [1, 1]} : vector<8x64xf32> to vector<8x16xf32>
    %cst_54 = arith.constant 0.000000e+00 : f32
    %83 = vector.broadcast %cst_54 : f32 to vector<8x16xf32>
    %84 = arith.subf %83, %82 : vector<8x16xf32>
    %85 = math.exp %84 : vector<8x16xf32>
    %cst_55 = arith.constant 1.000000e+00 : f32
    %86 = vector.broadcast %cst_55 : f32 to vector<8x16xf32>
    %87 = arith.addf %86, %85 : vector<8x16xf32>
    %cst_56 = arith.constant 1.000000e+00 : f32
    %88 = vector.broadcast %cst_56 : f32 to vector<8x16xf32>
    %89 = arith.divf %88, %87 : vector<8x16xf32>
    %90 = vector.extract_strided_slice %32 {offsets = [0, 16], sizes = [8, 16], strides = [1, 1]} : vector<8x64xf32> to vector<8x16xf32>
    %cst_57 = arith.constant 0.000000e+00 : f32
    %91 = vector.broadcast %cst_57 : f32 to vector<8x16xf32>
    %92 = arith.subf %91, %90 : vector<8x16xf32>
    %93 = math.exp %92 : vector<8x16xf32>
    %cst_58 = arith.constant 1.000000e+00 : f32
    %94 = vector.broadcast %cst_58 : f32 to vector<8x16xf32>
    %95 = arith.addf %94, %93 : vector<8x16xf32>
    %cst_59 = arith.constant 1.000000e+00 : f32
    %96 = vector.broadcast %cst_59 : f32 to vector<8x16xf32>
    %97 = arith.divf %96, %95 : vector<8x16xf32>
    %98 = vector.extract_strided_slice %32 {offsets = [0, 32], sizes = [8, 16], strides = [1, 1]} : vector<8x64xf32> to vector<8x16xf32>
    %99 = math.tanh %98 : vector<8x16xf32>
    %100 = vector.extract_strided_slice %32 {offsets = [0, 48], sizes = [8, 16], strides = [1, 1]} : vector<8x64xf32> to vector<8x16xf32>
    %cst_60 = arith.constant 0.000000e+00 : f32
    %101 = vector.broadcast %cst_60 : f32 to vector<8x16xf32>
    %102 = arith.subf %101, %100 : vector<8x16xf32>
    %103 = math.exp %102 : vector<8x16xf32>
    %cst_61 = arith.constant 1.000000e+00 : f32
    %104 = vector.broadcast %cst_61 : f32 to vector<8x16xf32>
    %105 = arith.addf %104, %103 : vector<8x16xf32>
    %cst_62 = arith.constant 1.000000e+00 : f32
    %106 = vector.broadcast %cst_62 : f32 to vector<8x16xf32>
    %107 = arith.divf %106, %105 : vector<8x16xf32>
    %108 = arith.mulf %97, %79 : vector<8x16xf32>
    %109 = arith.mulf %89, %99 : vector<8x16xf32>
    %110 = arith.addf %108, %109 : vector<8x16xf32>
    %111 = math.tanh %110 : vector<8x16xf32>
    %112 = arith.mulf %107, %111 : vector<8x16xf32>
    %113 = vector.shape_cast %81 : vector<8x1xi1> to vector<8x1xi1>
    %114 = vector.broadcast %113 : vector<8x1xi1> to vector<8x16xi1>
    %115 = arith.select %114, %112, %78 : vector<8x16xi1>, vector<8x16xf32>
    %116 = vector.shape_cast %81 : vector<8x1xi1> to vector<8x1xi1>
    %117 = vector.broadcast %116 : vector<8x1xi1> to vector<8x16xi1>
    %118 = arith.select %117, %110, %79 : vector<8x16xi1>, vector<8x16xf32>
    %cst_63 = arith.constant 0.000000e+00 : f32
    %119 = vector.shape_cast %81 : vector<8x1xi1> to vector<8x1xi1>
    %120 = vector.broadcast %119 : vector<8x1xi1> to vector<8x16xi1>
    %121 = vector.broadcast %cst_63 : f32 to vector<8x16xf32>
    %122 = arith.select %120, %112, %121 : vector<8x16xi1>, vector<8x16xf32>
    %c0_64 = arith.constant 0 : index
    %c0_65 = arith.constant 0 : index
    %123 = vector.load %arg10[%c0_64, %c0_65] : memref<8x16xf32, #tpu.memory_space<vmem>>, vector<8x16xf32>
    tpu.vector_store %arg10[%c0_64, %c0_65], %70 {strides = array<i32>} : memref<8x16xf32, #tpu.memory_space<vmem>>, vector<8x16xf32>,
    %c0_66 = arith.constant 0 : index
    %c0_67 = arith.constant 0 : index
    %124 = vector.load %arg11[%c0_66, %c0_67] : memref<8x16xf32, #tpu.memory_space<vmem>>, vector<8x16xf32>
    tpu.vector_store %arg11[%c0_66, %c0_67], %73 {strides = array<i32>} : memref<8x16xf32, #tpu.memory_space<vmem>>, vector<8x16xf32>,
    %c0_68 = arith.constant 0 : index
    %c0_69 = arith.constant 0 : index
    %125 = vector.load %arg12[%c0_68, %c0_69] : memref<8x16xf32, #tpu.memory_space<vmem>>, vector<8x16xf32>
    tpu.vector_store %arg12[%c0_68, %c0_69], %115 {strides = array<i32>} : memref<8x16xf32, #tpu.memory_space<vmem>>, vector<8x16xf32>,
    %c0_70 = arith.constant 0 : index
    %c0_71 = arith.constant 0 : index
    %126 = vector.load %arg13[%c0_70, %c0_71] : memref<8x16xf32, #tpu.memory_space<vmem>>, vector<8x16xf32>
    tpu.vector_store %arg13[%c0_70, %c0_71], %118 {strides = array<i32>} : memref<8x16xf32, #tpu.memory_space<vmem>>, vector<8x16xf32>,
    %127 = arith.index_cast %c0_i32 : i32 to index
    %c0_72 = arith.constant 0 : index
    %c0_73 = arith.constant 0 : index
    %128 = vector.load %arg7[%127, %c0_72, %c0_73] : memref<8x8x32xf32, #tpu.memory_space<vmem>>, vector<1x8x16xf32>
    %129 = vector.shape_cast %128 : vector<1x8x16xf32> to vector<8x16xf32>
    %130 = vector.shape_cast %77 : vector<8x16xf32> to vector<1x8x16xf32>
    tpu.vector_store %arg7[%127, %c0_72, %c0_73], %130 {strides = array<i32>} : memref<8x8x32xf32, #tpu.memory_space<vmem>>, vector<1x8x16xf32>,
    %131 = arith.index_cast %18 : i32 to index
    %c0_74 = arith.constant 0 : index
    %c16 = arith.constant 16 : index
    %132 = vector.load %arg7[%131, %c0_74, %c16] : memref<8x8x32xf32, #tpu.memory_space<vmem>>, vector<1x8x16xf32>
    %133 = vector.shape_cast %132 : vector<1x8x16xf32> to vector<8x16xf32>
    %134 = vector.shape_cast %122 : vector<8x16xf32> to vector<1x8x16xf32>
    tpu.vector_store %arg7[%131, %c0_74, %c16], %134 {strides = array<i32>} : memref<8x8x32xf32, #tpu.memory_space<vmem>>, vector<1x8x16xf32>,
    %c1_i32 = arith.constant 1 : i32
    %c7_i32_75 = arith.constant 7 : i32
    %135 = arith.subi %c7_i32_75, %c1_i32 : i32
    %136 = arith.index_cast %c1_i32 : i32 to index
    %c0_76 = arith.constant 0 : index
    %c0_77 = arith.constant 0 : index
    %137 = vector.load %arg9[%136, %c0_76, %c0_77] : memref<8x8x128xf32, #tpu.memory_space<vmem>>, vector<1x8x64xf32>
    %138 = vector.shape_cast %137 : vector<1x8x64xf32> to vector<8x64xf32>
    %c0_78 = arith.constant 0 : index
    %c0_79 = arith.constant 0 : index
    %139 = vector.load %arg10[%c0_78, %c0_79] : memref<8x16xf32, #tpu.memory_space<vmem>>, vector<8x16xf32>
    %c0_80 = arith.constant 0 : index
    %c0_81 = arith.constant 0 : index
    %140 = vector.load %arg4[%c0_80, %c0_81] : memref<16x64xf32, #tpu.memory_space<vmem>>, vector<16x64xf32>
    %cst_82 = arith.constant dense<0.000000e+00> : vector<8x64xf32>
    %141 = tpu.matmul %139, %140, %cst_82 {dimension_numbers = #tpu.dot_dimension_numbers<[1], [0], [0], [1], [0, 0, 1, 1], [], []>} : vector<8x16xf32>, vector<16x64xf32>, vector<8x64xf32> -> vector<8x64xf32>
    %142 = arith.addf %138, %141 : vector<8x64xf32>
    %143 = arith.index_cast %135 : i32 to index
    %c0_83 = arith.constant 0 : index
    %c64_84 = arith.constant 64 : index
    %144 = vector.load %arg9[%143, %c0_83, %c64_84] : memref<8x8x128xf32, #tpu.memory_space<vmem>>, vector<1x8x64xf32>
    %145 = vector.shape_cast %144 : vector<1x8x64xf32> to vector<8x64xf32>
    %c0_85 = arith.constant 0 : index
    %c0_86 = arith.constant 0 : index
    %146 = vector.load %arg12[%c0_85, %c0_86] : memref<8x16xf32, #tpu.memory_space<vmem>>, vector<8x16xf32>
    %c0_87 = arith.constant 0 : index
    %c0_88 = arith.constant 0 : index
    %147 = vector.load %arg5[%c0_87, %c0_88] : memref<16x64xf32, #tpu.memory_space<vmem>>, vector<16x64xf32>
    %cst_89 = arith.constant dense<0.000000e+00> : vector<8x64xf32>
    %148 = tpu.matmul %146, %147, %cst_89 {dimension_numbers = #tpu.dot_dimension_numbers<[1], [0], [0], [1], [0, 0, 1, 1], [], []>} : vector<8x16xf32>, vector<16x64xf32>, vector<8x64xf32> -> vector<8x64xf32>
    %149 = arith.addf %145, %148 : vector<8x64xf32>
    %c0_90 = arith.constant 0 : index
    %c0_91 = arith.constant 0 : index
    %150 = vector.load %arg10[%c0_90, %c0_91] : memref<8x16xf32, #tpu.memory_space<vmem>>, vector<8x16xf32>
    %c0_92 = arith.constant 0 : index
    %c0_93 = arith.constant 0 : index
    %151 = vector.load %arg11[%c0_92, %c0_93] : memref<8x16xf32, #tpu.memory_space<vmem>>, vector<8x16xf32>
    %152 = vector.broadcast %c1_i32 : i32 to vector<8x1xi32>
    %153 = arith.cmpi slt, %152, %9 : vector<8x1xi32>
    %154 = vector.extract_strided_slice %142 {offsets = [0, 0], sizes = [8, 16], strides = [1, 1]} : vector<8x64xf32> to vector<8x16xf32>
    %cst_94 = arith.constant 0.000000e+00 : f32
    %155 = vector.broadcast %cst_94 : f32 to vector<8x16xf32>
    %156 = arith.subf %155, %154 : vector<8x16xf32>
    %157 = math.exp %156 : vector<8x16xf32>
    %cst_95 = arith.constant 1.000000e+00 : f32
    %158 = vector.broadcast %cst_95 : f32 to vector<8x16xf32>
    %159 = arith.addf %158, %157 : vector<8x16xf32>
    %cst_96 = arith.constant 1.000000e+00 : f32
    %160 = vector.broadcast %cst_96 : f32 to vector<8x16xf32>
    %161 = arith.divf %160, %159 : vector<8x16xf32>
    %162 = vector.extract_strided_slice %142 {offsets = [0, 16], sizes = [8, 16], strides = [1, 1]} : vector<8x64xf32> to vector<8x16xf32>
    %cst_97 = arith.constant 0.000000e+00 : f32
    %163 = vector.broadcast %cst_97 : f32 to vector<8x16xf32>
    %164 = arith.subf %163, %162 : vector<8x16xf32>
    %165 = math.exp %164 : vector<8x16xf32>
    %cst_98 = arith.constant 1.000000e+00 : f32
    %166 = vector.broadcast %cst_98 : f32 to vector<8x16xf32>
    %167 = arith.addf %166, %165 : vector<8x16xf32>
    %cst_99 = arith.constant 1.000000e+00 : f32
    %168 = vector.broadcast %cst_99 : f32 to vector<8x16xf32>
    %169 = arith.divf %168, %167 : vector<8x16xf32>
    %170 = vector.extract_strided_slice %142 {offsets = [0, 32], sizes = [8, 16], strides = [1, 1]} : vector<8x64xf32> to vector<8x16xf32>
    %171 = math.tanh %170 : vector<8x16xf32>
    %172 = vector.extract_strided_slice %142 {offsets = [0, 48], sizes = [8, 16], strides = [1, 1]} : vector<8x64xf32> to vector<8x16xf32>
    %cst_100 = arith.constant 0.000000e+00 : f32
    %173 = vector.broadcast %cst_100 : f32 to vector<8x16xf32>
    %174 = arith.subf %173, %172 : vector<8x16xf32>
    %175 = math.exp %174 : vector<8x16xf32>
    %cst_101 = arith.constant 1.000000e+00 : f32
    %176 = vector.broadcast %cst_101 : f32 to vector<8x16xf32>
    %177 = arith.addf %176, %175 : vector<8x16xf32>
    %cst_102 = arith.constant 1.000000e+00 : f32
    %178 = vector.broadcast %cst_102 : f32 to vector<8x16xf32>
    %179 = arith.divf %178, %177 : vector<8x16xf32>
    %180 = arith.mulf %169, %151 : vector<8x16xf32>
    %181 = arith.mulf %161, %171 : vector<8x16xf32>
    %182 = arith.addf %180, %181 : vector<8x16xf32>
    %183 = math.tanh %182 : vector<8x16xf32>
    %184 = arith.mulf %179, %183 : vector<8x16xf32>
    %185 = vector.shape_cast %153 : vector<8x1xi1> to vector<8x1xi1>
    %186 = vector.broadcast %185 : vector<8x1xi1> to vector<8x16xi1>
    %187 = arith.select %186, %184, %150 : vector<8x16xi1>, vector<8x16xf32>
    %188 = vector.shape_cast %153 : vector<8x1xi1> to vector<8x1xi1>
    %189 = vector.broadcast %188 : vector<8x1xi1> to vector<8x16xi1>
    %190 = arith.select %189, %182, %151 : vector<8x16xi1>, vector<8x16xf32>
    %cst_103 = arith.constant 0.000000e+00 : f32
    %191 = vector.shape_cast %153 : vector<8x1xi1> to vector<8x1xi1>
    %192 = vector.broadcast %191 : vector<8x1xi1> to vector<8x16xi1>
    %193 = vector.broadcast %cst_103 : f32 to vector<8x16xf32>
    %194 = arith.select %192, %184, %193 : vector<8x16xi1>, vector<8x16xf32>
    %c0_104 = arith.constant 0 : index
    %c0_105 = arith.constant 0 : index
    %195 = vector.load %arg12[%c0_104, %c0_105] : memref<8x16xf32, #tpu.memory_space<vmem>>, vector<8x16xf32>
    %c0_106 = arith.constant 0 : index
    %c0_107 = arith.constant 0 : index
    %196 = vector.load %arg13[%c0_106, %c0_107] : memref<8x16xf32, #tpu.memory_space<vmem>>, vector<8x16xf32>
    %197 = vector.broadcast %135 : i32 to vector<8x1xi32>
    %198 = arith.cmpi slt, %197, %9 : vector<8x1xi32>
    %199 = vector.extract_strided_slice %149 {offsets = [0, 0], sizes = [8, 16], strides = [1, 1]} : vector<8x64xf32> to vector<8x16xf32>
    %cst_108 = arith.constant 0.000000e+00 : f32
    %200 = vector.broadcast %cst_108 : f32 to vector<8x16xf32>
    %201 = arith.subf %200, %199 : vector<8x16xf32>
    %202 = math.exp %201 : vector<8x16xf32>
    %cst_109 = arith.constant 1.000000e+00 : f32
    %203 = vector.broadcast %cst_109 : f32 to vector<8x16xf32>
    %204 = arith.addf %203, %202 : vector<8x16xf32>
    %cst_110 = arith.constant 1.000000e+00 : f32
    %205 = vector.broadcast %cst_110 : f32 to vector<8x16xf32>
    %206 = arith.divf %205, %204 : vector<8x16xf32>
    %207 = vector.extract_strided_slice %149 {offsets = [0, 16], sizes = [8, 16], strides = [1, 1]} : vector<8x64xf32> to vector<8x16xf32>
    %cst_111 = arith.constant 0.000000e+00 : f32
    %208 = vector.broadcast %cst_111 : f32 to vector<8x16xf32>
    %209 = arith.subf %208, %207 : vector<8x16xf32>
    %210 = math.exp %209 : vector<8x16xf32>
    %cst_112 = arith.constant 1.000000e+00 : f32
    %211 = vector.broadcast %cst_112 : f32 to vector<8x16xf32>
    %212 = arith.addf %211, %210 : vector<8x16xf32>
    %cst_113 = arith.constant 1.000000e+00 : f32
    %213 = vector.broadcast %cst_113 : f32 to vector<8x16xf32>
    %214 = arith.divf %213, %212 : vector<8x16xf32>
    %215 = vector.extract_strided_slice %149 {offsets = [0, 32], sizes = [8, 16], strides = [1, 1]} : vector<8x64xf32> to vector<8x16xf32>
    %216 = math.tanh %215 : vector<8x16xf32>
    %217 = vector.extract_strided_slice %149 {offsets = [0, 48], sizes = [8, 16], strides = [1, 1]} : vector<8x64xf32> to vector<8x16xf32>
    %cst_114 = arith.constant 0.000000e+00 : f32
    %218 = vector.broadcast %cst_114 : f32 to vector<8x16xf32>
    %219 = arith.subf %218, %217 : vector<8x16xf32>
    %220 = math.exp %219 : vector<8x16xf32>
    %cst_115 = arith.constant 1.000000e+00 : f32
    %221 = vector.broadcast %cst_115 : f32 to vector<8x16xf32>
    %222 = arith.addf %221, %220 : vector<8x16xf32>
    %cst_116 = arith.constant 1.000000e+00 : f32
    %223 = vector.broadcast %cst_116 : f32 to vector<8x16xf32>
    %224 = arith.divf %223, %222 : vector<8x16xf32>
    %225 = arith.mulf %214, %196 : vector<8x16xf32>
    %226 = arith.mulf %206, %216 : vector<8x16xf32>
    %227 = arith.addf %225, %226 : vector<8x16xf32>
    %228 = math.tanh %227 : vector<8x16xf32>
    %229 = arith.mulf %224, %228 : vector<8x16xf32>
    %230 = vector.shape_cast %198 : vector<8x1xi1> to vector<8x1xi1>
    %231 = vector.broadcast %230 : vector<8x1xi1> to vector<8x16xi1>
    %232 = arith.select %231, %229, %195 : vector<8x16xi1>, vector<8x16xf32>
    %233 = vector.shape_cast %198 : vector<8x1xi1> to vector<8x1xi1>
    %234 = vector.broadcast %233 : vector<8x1xi1> to vector<8x16xi1>
    %235 = arith.select %234, %227, %196 : vector<8x16xi1>, vector<8x16xf32>
    %cst_117 = arith.constant 0.000000e+00 : f32
    %236 = vector.shape_cast %198 : vector<8x1xi1> to vector<8x1xi1>
    %237 = vector.broadcast %236 : vector<8x1xi1> to vector<8x16xi1>
    %238 = vector.broadcast %cst_117 : f32 to vector<8x16xf32>
    %239 = arith.select %237, %229, %238 : vector<8x16xi1>, vector<8x16xf32>
    %c0_118 = arith.constant 0 : index
    %c0_119 = arith.constant 0 : index
    %240 = vector.load %arg10[%c0_118, %c0_119] : memref<8x16xf32, #tpu.memory_space<vmem>>, vector<8x16xf32>
    tpu.vector_store %arg10[%c0_118, %c0_119], %187 {strides = array<i32>} : memref<8x16xf32, #tpu.memory_space<vmem>>, vector<8x16xf32>,
    %c0_120 = arith.constant 0 : index
    %c0_121 = arith.constant 0 : index
    %241 = vector.load %arg11[%c0_120, %c0_121] : memref<8x16xf32, #tpu.memory_space<vmem>>, vector<8x16xf32>
    tpu.vector_store %arg11[%c0_120, %c0_121], %190 {strides = array<i32>} : memref<8x16xf32, #tpu.memory_space<vmem>>, vector<8x16xf32>,
    %c0_122 = arith.constant 0 : index
    %c0_123 = arith.constant 0 : index
    %242 = vector.load %arg12[%c0_122, %c0_123] : memref<8x16xf32, #tpu.memory_space<vmem>>, vector<8x16xf32>
    tpu.vector_store %arg12[%c0_122, %c0_123], %232 {strides = array<i32>} : memref<8x16xf32, #tpu.memory_space<vmem>>, vector<8x16xf32>,
    %c0_124 = arith.constant 0 : index
    %c0_125 = arith.constant 0 : index
    %243 = vector.load %arg13[%c0_124, %c0_125] : memref<8x16xf32, #tpu.memory_space<vmem>>, vector<8x16xf32>
    tpu.vector_store %arg13[%c0_124, %c0_125], %235 {strides = array<i32>} : memref<8x16xf32, #tpu.memory_space<vmem>>, vector<8x16xf32>,
    %244 = arith.index_cast %c1_i32 : i32 to index
    %c0_126 = arith.constant 0 : index
    %c0_127 = arith.constant 0 : index
    %245 = vector.load %arg7[%244, %c0_126, %c0_127] : memref<8x8x32xf32, #tpu.memory_space<vmem>>, vector<1x8x16xf32>
    %246 = vector.shape_cast %245 : vector<1x8x16xf32> to vector<8x16xf32>
    %247 = vector.shape_cast %194 : vector<8x16xf32> to vector<1x8x16xf32>
    tpu.vector_store %arg7[%244, %c0_126, %c0_127], %247 {strides = array<i32>} : memref<8x8x32xf32, #tpu.memory_space<vmem>>, vector<1x8x16xf32>,
    %248 = arith.index_cast %135 : i32 to index
    %c0_128 = arith.constant 0 : index
    %c16_129 = arith.constant 16 : index
    %249 = vector.load %arg7[%248, %c0_128, %c16_129] : memref<8x8x32xf32, #tpu.memory_space<vmem>>, vector<1x8x16xf32>
    %250 = vector.shape_cast %249 : vector<1x8x16xf32> to vector<8x16xf32>
    %251 = vector.shape_cast %239 : vector<8x16xf32> to vector<1x8x16xf32>
    tpu.vector_store %arg7[%248, %c0_128, %c16_129], %251 {strides = array<i32>} : memref<8x8x32xf32, #tpu.memory_space<vmem>>, vector<1x8x16xf32>,
    %c2_i32 = arith.constant 2 : i32
    %c7_i32_130 = arith.constant 7 : i32
    %252 = arith.subi %c7_i32_130, %c2_i32 : i32
    %253 = arith.index_cast %c2_i32 : i32 to index
    %c0_131 = arith.constant 0 : index
    %c0_132 = arith.constant 0 : index
    %254 = vector.load %arg9[%253, %c0_131, %c0_132] : memref<8x8x128xf32, #tpu.memory_space<vmem>>, vector<1x8x64xf32>
    %255 = vector.shape_cast %254 : vector<1x8x64xf32> to vector<8x64xf32>
    %c0_133 = arith.constant 0 : index
    %c0_134 = arith.constant 0 : index
    %256 = vector.load %arg10[%c0_133, %c0_134] : memref<8x16xf32, #tpu.memory_space<vmem>>, vector<8x16xf32>
    %c0_135 = arith.constant 0 : index
    %c0_136 = arith.constant 0 : index
    %257 = vector.load %arg4[%c0_135, %c0_136] : memref<16x64xf32, #tpu.memory_space<vmem>>, vector<16x64xf32>
    %cst_137 = arith.constant dense<0.000000e+00> : vector<8x64xf32>
    %258 = tpu.matmul %256, %257, %cst_137 {dimension_numbers = #tpu.dot_dimension_numbers<[1], [0], [0], [1], [0, 0, 1, 1], [], []>} : vector<8x16xf32>, vector<16x64xf32>, vector<8x64xf32> -> vector<8x64xf32>
    %259 = arith.addf %255, %258 : vector<8x64xf32>
    %260 = arith.index_cast %252 : i32 to index
    %c0_138 = arith.constant 0 : index
    %c64_139 = arith.constant 64 : index
    %261 = vector.load %arg9[%260, %c0_138, %c64_139] : memref<8x8x128xf32, #tpu.memory_space<vmem>>, vector<1x8x64xf32>
    %262 = vector.shape_cast %261 : vector<1x8x64xf32> to vector<8x64xf32>
    %c0_140 = arith.constant 0 : index
    %c0_141 = arith.constant 0 : index
    %263 = vector.load %arg12[%c0_140, %c0_141] : memref<8x16xf32, #tpu.memory_space<vmem>>, vector<8x16xf32>
    %c0_142 = arith.constant 0 : index
    %c0_143 = arith.constant 0 : index
    %264 = vector.load %arg5[%c0_142, %c0_143] : memref<16x64xf32, #tpu.memory_space<vmem>>, vector<16x64xf32>
    %cst_144 = arith.constant dense<0.000000e+00> : vector<8x64xf32>
    %265 = tpu.matmul %263, %264, %cst_144 {dimension_numbers = #tpu.dot_dimension_numbers<[1], [0], [0], [1], [0, 0, 1, 1], [], []>} : vector<8x16xf32>, vector<16x64xf32>, vector<8x64xf32> -> vector<8x64xf32>
    %266 = arith.addf %262, %265 : vector<8x64xf32>
    %c0_145 = arith.constant 0 : index
    %c0_146 = arith.constant 0 : index
    %267 = vector.load %arg10[%c0_145, %c0_146] : memref<8x16xf32, #tpu.memory_space<vmem>>, vector<8x16xf32>
    %c0_147 = arith.constant 0 : index
    %c0_148 = arith.constant 0 : index
    %268 = vector.load %arg11[%c0_147, %c0_148] : memref<8x16xf32, #tpu.memory_space<vmem>>, vector<8x16xf32>
    %269 = vector.broadcast %c2_i32 : i32 to vector<8x1xi32>
    %270 = arith.cmpi slt, %269, %9 : vector<8x1xi32>
    %271 = vector.extract_strided_slice %259 {offsets = [0, 0], sizes = [8, 16], strides = [1, 1]} : vector<8x64xf32> to vector<8x16xf32>
    %cst_149 = arith.constant 0.000000e+00 : f32
    %272 = vector.broadcast %cst_149 : f32 to vector<8x16xf32>
    %273 = arith.subf %272, %271 : vector<8x16xf32>
    %274 = math.exp %273 : vector<8x16xf32>
    %cst_150 = arith.constant 1.000000e+00 : f32
    %275 = vector.broadcast %cst_150 : f32 to vector<8x16xf32>
    %276 = arith.addf %275, %274 : vector<8x16xf32>
    %cst_151 = arith.constant 1.000000e+00 : f32
    %277 = vector.broadcast %cst_151 : f32 to vector<8x16xf32>
    %278 = arith.divf %277, %276 : vector<8x16xf32>
    %279 = vector.extract_strided_slice %259 {offsets = [0, 16], sizes = [8, 16], strides = [1, 1]} : vector<8x64xf32> to vector<8x16xf32>
    %cst_152 = arith.constant 0.000000e+00 : f32
    %280 = vector.broadcast %cst_152 : f32 to vector<8x16xf32>
    %281 = arith.subf %280, %279 : vector<8x16xf32>
    %282 = math.exp %281 : vector<8x16xf32>
    %cst_153 = arith.constant 1.000000e+00 : f32
    %283 = vector.broadcast %cst_153 : f32 to vector<8x16xf32>
    %284 = arith.addf %283, %282 : vector<8x16xf32>
    %cst_154 = arith.constant 1.000000e+00 : f32
    %285 = vector.broadcast %cst_154 : f32 to vector<8x16xf32>
    %286 = arith.divf %285, %284 : vector<8x16xf32>
    %287 = vector.extract_strided_slice %259 {offsets = [0, 32], sizes = [8, 16], strides = [1, 1]} : vector<8x64xf32> to vector<8x16xf32>
    %288 = math.tanh %287 : vector<8x16xf32>
    %289 = vector.extract_strided_slice %259 {offsets = [0, 48], sizes = [8, 16], strides = [1, 1]} : vector<8x64xf32> to vector<8x16xf32>
    %cst_155 = arith.constant 0.000000e+00 : f32
    %290 = vector.broadcast %cst_155 : f32 to vector<8x16xf32>
    %291 = arith.subf %290, %289 : vector<8x16xf32>
    %292 = math.exp %291 : vector<8x16xf32>
    %cst_156 = arith.constant 1.000000e+00 : f32
    %293 = vector.broadcast %cst_156 : f32 to vector<8x16xf32>
    %294 = arith.addf %293, %292 : vector<8x16xf32>
    %cst_157 = arith.constant 1.000000e+00 : f32
    %295 = vector.broadcast %cst_157 : f32 to vector<8x16xf32>
    %296 = arith.divf %295, %294 : vector<8x16xf32>
    %297 = arith.mulf %286, %268 : vector<8x16xf32>
    %298 = arith.mulf %278, %288 : vector<8x16xf32>
    %299 = arith.addf %297, %298 : vector<8x16xf32>
    %300 = math.tanh %299 : vector<8x16xf32>
    %301 = arith.mulf %296, %300 : vector<8x16xf32>
    %302 = vector.shape_cast %270 : vector<8x1xi1> to vector<8x1xi1>
    %303 = vector.broadcast %302 : vector<8x1xi1> to vector<8x16xi1>
    %304 = arith.select %303, %301, %267 : vector<8x16xi1>, vector<8x16xf32>
    %305 = vector.shape_cast %270 : vector<8x1xi1> to vector<8x1xi1>
    %306 = vector.broadcast %305 : vector<8x1xi1> to vector<8x16xi1>
    %307 = arith.select %306, %299, %268 : vector<8x16xi1>, vector<8x16xf32>
    %cst_158 = arith.constant 0.000000e+00 : f32
    %308 = vector.shape_cast %270 : vector<8x1xi1> to vector<8x1xi1>
    %309 = vector.broadcast %308 : vector<8x1xi1> to vector<8x16xi1>
    %310 = vector.broadcast %cst_158 : f32 to vector<8x16xf32>
    %311 = arith.select %309, %301, %310 : vector<8x16xi1>, vector<8x16xf32>
    %c0_159 = arith.constant 0 : index
    %c0_160 = arith.constant 0 : index
    %312 = vector.load %arg12[%c0_159, %c0_160] : memref<8x16xf32, #tpu.memory_space<vmem>>, vector<8x16xf32>
    %c0_161 = arith.constant 0 : index
    %c0_162 = arith.constant 0 : index
    %313 = vector.load %arg13[%c0_161, %c0_162] : memref<8x16xf32, #tpu.memory_space<vmem>>, vector<8x16xf32>
    %314 = vector.broadcast %252 : i32 to vector<8x1xi32>
    %315 = arith.cmpi slt, %314, %9 : vector<8x1xi32>
    %316 = vector.extract_strided_slice %266 {offsets = [0, 0], sizes = [8, 16], strides = [1, 1]} : vector<8x64xf32> to vector<8x16xf32>
    %cst_163 = arith.constant 0.000000e+00 : f32
    %317 = vector.broadcast %cst_163 : f32 to vector<8x16xf32>
    %318 = arith.subf %317, %316 : vector<8x16xf32>
    %319 = math.exp %318 : vector<8x16xf32>
    %cst_164 = arith.constant 1.000000e+00 : f32
    %320 = vector.broadcast %cst_164 : f32 to vector<8x16xf32>
    %321 = arith.addf %320, %319 : vector<8x16xf32>
    %cst_165 = arith.constant 1.000000e+00 : f32
    %322 = vector.broadcast %cst_165 : f32 to vector<8x16xf32>
    %323 = arith.divf %322, %321 : vector<8x16xf32>
    %324 = vector.extract_strided_slice %266 {offsets = [0, 16], sizes = [8, 16], strides = [1, 1]} : vector<8x64xf32> to vector<8x16xf32>
    %cst_166 = arith.constant 0.000000e+00 : f32
    %325 = vector.broadcast %cst_166 : f32 to vector<8x16xf32>
    %326 = arith.subf %325, %324 : vector<8x16xf32>
    %327 = math.exp %326 : vector<8x16xf32>
    %cst_167 = arith.constant 1.000000e+00 : f32
    %328 = vector.broadcast %cst_167 : f32 to vector<8x16xf32>
    %329 = arith.addf %328, %327 : vector<8x16xf32>
    %cst_168 = arith.constant 1.000000e+00 : f32
    %330 = vector.broadcast %cst_168 : f32 to vector<8x16xf32>
    %331 = arith.divf %330, %329 : vector<8x16xf32>
    %332 = vector.extract_strided_slice %266 {offsets = [0, 32], sizes = [8, 16], strides = [1, 1]} : vector<8x64xf32> to vector<8x16xf32>
    %333 = math.tanh %332 : vector<8x16xf32>
    %334 = vector.extract_strided_slice %266 {offsets = [0, 48], sizes = [8, 16], strides = [1, 1]} : vector<8x64xf32> to vector<8x16xf32>
    %cst_169 = arith.constant 0.000000e+00 : f32
    %335 = vector.broadcast %cst_169 : f32 to vector<8x16xf32>
    %336 = arith.subf %335, %334 : vector<8x16xf32>
    %337 = math.exp %336 : vector<8x16xf32>
    %cst_170 = arith.constant 1.000000e+00 : f32
    %338 = vector.broadcast %cst_170 : f32 to vector<8x16xf32>
    %339 = arith.addf %338, %337 : vector<8x16xf32>
    %cst_171 = arith.constant 1.000000e+00 : f32
    %340 = vector.broadcast %cst_171 : f32 to vector<8x16xf32>
    %341 = arith.divf %340, %339 : vector<8x16xf32>
    %342 = arith.mulf %331, %313 : vector<8x16xf32>
    %343 = arith.mulf %323, %333 : vector<8x16xf32>
    %344 = arith.addf %342, %343 : vector<8x16xf32>
    %345 = math.tanh %344 : vector<8x16xf32>
    %346 = arith.mulf %341, %345 : vector<8x16xf32>
    %347 = vector.shape_cast %315 : vector<8x1xi1> to vector<8x1xi1>
    %348 = vector.broadcast %347 : vector<8x1xi1> to vector<8x16xi1>
    %349 = arith.select %348, %346, %312 : vector<8x16xi1>, vector<8x16xf32>
    %350 = vector.shape_cast %315 : vector<8x1xi1> to vector<8x1xi1>
    %351 = vector.broadcast %350 : vector<8x1xi1> to vector<8x16xi1>
    %352 = arith.select %351, %344, %313 : vector<8x16xi1>, vector<8x16xf32>
    %cst_172 = arith.constant 0.000000e+00 : f32
    %353 = vector.shape_cast %315 : vector<8x1xi1> to vector<8x1xi1>
    %354 = vector.broadcast %353 : vector<8x1xi1> to vector<8x16xi1>
    %355 = vector.broadcast %cst_172 : f32 to vector<8x16xf32>
    %356 = arith.select %354, %346, %355 : vector<8x16xi1>, vector<8x16xf32>
    %c0_173 = arith.constant 0 : index
    %c0_174 = arith.constant 0 : index
    %357 = vector.load %arg10[%c0_173, %c0_174] : memref<8x16xf32, #tpu.memory_space<vmem>>, vector<8x16xf32>
    tpu.vector_store %arg10[%c0_173, %c0_174], %304 {strides = array<i32>} : memref<8x16xf32, #tpu.memory_space<vmem>>, vector<8x16xf32>,
    %c0_175 = arith.constant 0 : index
    %c0_176 = arith.constant 0 : index
    %358 = vector.load %arg11[%c0_175, %c0_176] : memref<8x16xf32, #tpu.memory_space<vmem>>, vector<8x16xf32>
    tpu.vector_store %arg11[%c0_175, %c0_176], %307 {strides = array<i32>} : memref<8x16xf32, #tpu.memory_space<vmem>>, vector<8x16xf32>,
    %c0_177 = arith.constant 0 : index
    %c0_178 = arith.constant 0 : index
    %359 = vector.load %arg12[%c0_177, %c0_178] : memref<8x16xf32, #tpu.memory_space<vmem>>, vector<8x16xf32>
    tpu.vector_store %arg12[%c0_177, %c0_178], %349 {strides = array<i32>} : memref<8x16xf32, #tpu.memory_space<vmem>>, vector<8x16xf32>,
    %c0_179 = arith.constant 0 : index
    %c0_180 = arith.constant 0 : index
    %360 = vector.load %arg13[%c0_179, %c0_180] : memref<8x16xf32, #tpu.memory_space<vmem>>, vector<8x16xf32>
    tpu.vector_store %arg13[%c0_179, %c0_180], %352 {strides = array<i32>} : memref<8x16xf32, #tpu.memory_space<vmem>>, vector<8x16xf32>,
    %361 = arith.index_cast %c2_i32 : i32 to index
    %c0_181 = arith.constant 0 : index
    %c0_182 = arith.constant 0 : index
    %362 = vector.load %arg7[%361, %c0_181, %c0_182] : memref<8x8x32xf32, #tpu.memory_space<vmem>>, vector<1x8x16xf32>
    %363 = vector.shape_cast %362 : vector<1x8x16xf32> to vector<8x16xf32>
    %364 = vector.shape_cast %311 : vector<8x16xf32> to vector<1x8x16xf32>
    tpu.vector_store %arg7[%361, %c0_181, %c0_182], %364 {strides = array<i32>} : memref<8x8x32xf32, #tpu.memory_space<vmem>>, vector<1x8x16xf32>,
    %365 = arith.index_cast %252 : i32 to index
    %c0_183 = arith.constant 0 : index
    %c16_184 = arith.constant 16 : index
    %366 = vector.load %arg7[%365, %c0_183, %c16_184] : memref<8x8x32xf32, #tpu.memory_space<vmem>>, vector<1x8x16xf32>
    %367 = vector.shape_cast %366 : vector<1x8x16xf32> to vector<8x16xf32>
    %368 = vector.shape_cast %356 : vector<8x16xf32> to vector<1x8x16xf32>
    tpu.vector_store %arg7[%365, %c0_183, %c16_184], %368 {strides = array<i32>} : memref<8x8x32xf32, #tpu.memory_space<vmem>>, vector<1x8x16xf32>,
    %c3_i32 = arith.constant 3 : i32
    %c7_i32_185 = arith.constant 7 : i32
    %369 = arith.subi %c7_i32_185, %c3_i32 : i32
    %370 = arith.index_cast %c3_i32 : i32 to index
    %c0_186 = arith.constant 0 : index
    %c0_187 = arith.constant 0 : index
    %371 = vector.load %arg9[%370, %c0_186, %c0_187] : memref<8x8x128xf32, #tpu.memory_space<vmem>>, vector<1x8x64xf32>
    %372 = vector.shape_cast %371 : vector<1x8x64xf32> to vector<8x64xf32>
    %c0_188 = arith.constant 0 : index
    %c0_189 = arith.constant 0 : index
    %373 = vector.load %arg10[%c0_188, %c0_189] : memref<8x16xf32, #tpu.memory_space<vmem>>, vector<8x16xf32>
    %c0_190 = arith.constant 0 : index
    %c0_191 = arith.constant 0 : index
    %374 = vector.load %arg4[%c0_190, %c0_191] : memref<16x64xf32, #tpu.memory_space<vmem>>, vector<16x64xf32>
    %cst_192 = arith.constant dense<0.000000e+00> : vector<8x64xf32>
    %375 = tpu.matmul %373, %374, %cst_192 {dimension_numbers = #tpu.dot_dimension_numbers<[1], [0], [0], [1], [0, 0, 1, 1], [], []>} : vector<8x16xf32>, vector<16x64xf32>, vector<8x64xf32> -> vector<8x64xf32>
    %376 = arith.addf %372, %375 : vector<8x64xf32>
    %377 = arith.index_cast %369 : i32 to index
    %c0_193 = arith.constant 0 : index
    %c64_194 = arith.constant 64 : index
    %378 = vector.load %arg9[%377, %c0_193, %c64_194] : memref<8x8x128xf32, #tpu.memory_space<vmem>>, vector<1x8x64xf32>
    %379 = vector.shape_cast %378 : vector<1x8x64xf32> to vector<8x64xf32>
    %c0_195 = arith.constant 0 : index
    %c0_196 = arith.constant 0 : index
    %380 = vector.load %arg12[%c0_195, %c0_196] : memref<8x16xf32, #tpu.memory_space<vmem>>, vector<8x16xf32>
    %c0_197 = arith.constant 0 : index
    %c0_198 = arith.constant 0 : index
    %381 = vector.load %arg5[%c0_197, %c0_198] : memref<16x64xf32, #tpu.memory_space<vmem>>, vector<16x64xf32>
    %cst_199 = arith.constant dense<0.000000e+00> : vector<8x64xf32>
    %382 = tpu.matmul %380, %381, %cst_199 {dimension_numbers = #tpu.dot_dimension_numbers<[1], [0], [0], [1], [0, 0, 1, 1], [], []>} : vector<8x16xf32>, vector<16x64xf32>, vector<8x64xf32> -> vector<8x64xf32>
    %383 = arith.addf %379, %382 : vector<8x64xf32>
    %c0_200 = arith.constant 0 : index
    %c0_201 = arith.constant 0 : index
    %384 = vector.load %arg10[%c0_200, %c0_201] : memref<8x16xf32, #tpu.memory_space<vmem>>, vector<8x16xf32>
    %c0_202 = arith.constant 0 : index
    %c0_203 = arith.constant 0 : index
    %385 = vector.load %arg11[%c0_202, %c0_203] : memref<8x16xf32, #tpu.memory_space<vmem>>, vector<8x16xf32>
    %386 = vector.broadcast %c3_i32 : i32 to vector<8x1xi32>
    %387 = arith.cmpi slt, %386, %9 : vector<8x1xi32>
    %388 = vector.extract_strided_slice %376 {offsets = [0, 0], sizes = [8, 16], strides = [1, 1]} : vector<8x64xf32> to vector<8x16xf32>
    %cst_204 = arith.constant 0.000000e+00 : f32
    %389 = vector.broadcast %cst_204 : f32 to vector<8x16xf32>
    %390 = arith.subf %389, %388 : vector<8x16xf32>
    %391 = math.exp %390 : vector<8x16xf32>
    %cst_205 = arith.constant 1.000000e+00 : f32
    %392 = vector.broadcast %cst_205 : f32 to vector<8x16xf32>
    %393 = arith.addf %392, %391 : vector<8x16xf32>
    %cst_206 = arith.constant 1.000000e+00 : f32
    %394 = vector.broadcast %cst_206 : f32 to vector<8x16xf32>
    %395 = arith.divf %394, %393 : vector<8x16xf32>
    %396 = vector.extract_strided_slice %376 {offsets = [0, 16], sizes = [8, 16], strides = [1, 1]} : vector<8x64xf32> to vector<8x16xf32>
    %cst_207 = arith.constant 0.000000e+00 : f32
    %397 = vector.broadcast %cst_207 : f32 to vector<8x16xf32>
    %398 = arith.subf %397, %396 : vector<8x16xf32>
    %399 = math.exp %398 : vector<8x16xf32>
    %cst_208 = arith.constant 1.000000e+00 : f32
    %400 = vector.broadcast %cst_208 : f32 to vector<8x16xf32>
    %401 = arith.addf %400, %399 : vector<8x16xf32>
    %cst_209 = arith.constant 1.000000e+00 : f32
    %402 = vector.broadcast %cst_209 : f32 to vector<8x16xf32>
    %403 = arith.divf %402, %401 : vector<8x16xf32>
    %404 = vector.extract_strided_slice %376 {offsets = [0, 32], sizes = [8, 16], strides = [1, 1]} : vector<8x64xf32> to vector<8x16xf32>
    %405 = math.tanh %404 : vector<8x16xf32>
    %406 = vector.extract_strided_slice %376 {offsets = [0, 48], sizes = [8, 16], strides = [1, 1]} : vector<8x64xf32> to vector<8x16xf32>
    %cst_210 = arith.constant 0.000000e+00 : f32
    %407 = vector.broadcast %cst_210 : f32 to vector<8x16xf32>
    %408 = arith.subf %407, %406 : vector<8x16xf32>
    %409 = math.exp %408 : vector<8x16xf32>
    %cst_211 = arith.constant 1.000000e+00 : f32
    %410 = vector.broadcast %cst_211 : f32 to vector<8x16xf32>
    %411 = arith.addf %410, %409 : vector<8x16xf32>
    %cst_212 = arith.constant 1.000000e+00 : f32
    %412 = vector.broadcast %cst_212 : f32 to vector<8x16xf32>
    %413 = arith.divf %412, %411 : vector<8x16xf32>
    %414 = arith.mulf %403, %385 : vector<8x16xf32>
    %415 = arith.mulf %395, %405 : vector<8x16xf32>
    %416 = arith.addf %414, %415 : vector<8x16xf32>
    %417 = math.tanh %416 : vector<8x16xf32>
    %418 = arith.mulf %413, %417 : vector<8x16xf32>
    %419 = vector.shape_cast %387 : vector<8x1xi1> to vector<8x1xi1>
    %420 = vector.broadcast %419 : vector<8x1xi1> to vector<8x16xi1>
    %421 = arith.select %420, %418, %384 : vector<8x16xi1>, vector<8x16xf32>
    %422 = vector.shape_cast %387 : vector<8x1xi1> to vector<8x1xi1>
    %423 = vector.broadcast %422 : vector<8x1xi1> to vector<8x16xi1>
    %424 = arith.select %423, %416, %385 : vector<8x16xi1>, vector<8x16xf32>
    %cst_213 = arith.constant 0.000000e+00 : f32
    %425 = vector.shape_cast %387 : vector<8x1xi1> to vector<8x1xi1>
    %426 = vector.broadcast %425 : vector<8x1xi1> to vector<8x16xi1>
    %427 = vector.broadcast %cst_213 : f32 to vector<8x16xf32>
    %428 = arith.select %426, %418, %427 : vector<8x16xi1>, vector<8x16xf32>
    %c0_214 = arith.constant 0 : index
    %c0_215 = arith.constant 0 : index
    %429 = vector.load %arg12[%c0_214, %c0_215] : memref<8x16xf32, #tpu.memory_space<vmem>>, vector<8x16xf32>
    %c0_216 = arith.constant 0 : index
    %c0_217 = arith.constant 0 : index
    %430 = vector.load %arg13[%c0_216, %c0_217] : memref<8x16xf32, #tpu.memory_space<vmem>>, vector<8x16xf32>
    %431 = vector.broadcast %369 : i32 to vector<8x1xi32>
    %432 = arith.cmpi slt, %431, %9 : vector<8x1xi32>
    %433 = vector.extract_strided_slice %383 {offsets = [0, 0], sizes = [8, 16], strides = [1, 1]} : vector<8x64xf32> to vector<8x16xf32>
    %cst_218 = arith.constant 0.000000e+00 : f32
    %434 = vector.broadcast %cst_218 : f32 to vector<8x16xf32>
    %435 = arith.subf %434, %433 : vector<8x16xf32>
    %436 = math.exp %435 : vector<8x16xf32>
    %cst_219 = arith.constant 1.000000e+00 : f32
    %437 = vector.broadcast %cst_219 : f32 to vector<8x16xf32>
    %438 = arith.addf %437, %436 : vector<8x16xf32>
    %cst_220 = arith.constant 1.000000e+00 : f32
    %439 = vector.broadcast %cst_220 : f32 to vector<8x16xf32>
    %440 = arith.divf %439, %438 : vector<8x16xf32>
    %441 = vector.extract_strided_slice %383 {offsets = [0, 16], sizes = [8, 16], strides = [1, 1]} : vector<8x64xf32> to vector<8x16xf32>
    %cst_221 = arith.constant 0.000000e+00 : f32
    %442 = vector.broadcast %cst_221 : f32 to vector<8x16xf32>
    %443 = arith.subf %442, %441 : vector<8x16xf32>
    %444 = math.exp %443 : vector<8x16xf32>
    %cst_222 = arith.constant 1.000000e+00 : f32
    %445 = vector.broadcast %cst_222 : f32 to vector<8x16xf32>
    %446 = arith.addf %445, %444 : vector<8x16xf32>
    %cst_223 = arith.constant 1.000000e+00 : f32
    %447 = vector.broadcast %cst_223 : f32 to vector<8x16xf32>
    %448 = arith.divf %447, %446 : vector<8x16xf32>
    %449 = vector.extract_strided_slice %383 {offsets = [0, 32], sizes = [8, 16], strides = [1, 1]} : vector<8x64xf32> to vector<8x16xf32>
    %450 = math.tanh %449 : vector<8x16xf32>
    %451 = vector.extract_strided_slice %383 {offsets = [0, 48], sizes = [8, 16], strides = [1, 1]} : vector<8x64xf32> to vector<8x16xf32>
    %cst_224 = arith.constant 0.000000e+00 : f32
    %452 = vector.broadcast %cst_224 : f32 to vector<8x16xf32>
    %453 = arith.subf %452, %451 : vector<8x16xf32>
    %454 = math.exp %453 : vector<8x16xf32>
    %cst_225 = arith.constant 1.000000e+00 : f32
    %455 = vector.broadcast %cst_225 : f32 to vector<8x16xf32>
    %456 = arith.addf %455, %454 : vector<8x16xf32>
    %cst_226 = arith.constant 1.000000e+00 : f32
    %457 = vector.broadcast %cst_226 : f32 to vector<8x16xf32>
    %458 = arith.divf %457, %456 : vector<8x16xf32>
    %459 = arith.mulf %448, %430 : vector<8x16xf32>
    %460 = arith.mulf %440, %450 : vector<8x16xf32>
    %461 = arith.addf %459, %460 : vector<8x16xf32>
    %462 = math.tanh %461 : vector<8x16xf32>
    %463 = arith.mulf %458, %462 : vector<8x16xf32>
    %464 = vector.shape_cast %432 : vector<8x1xi1> to vector<8x1xi1>
    %465 = vector.broadcast %464 : vector<8x1xi1> to vector<8x16xi1>
    %466 = arith.select %465, %463, %429 : vector<8x16xi1>, vector<8x16xf32>
    %467 = vector.shape_cast %432 : vector<8x1xi1> to vector<8x1xi1>
    %468 = vector.broadcast %467 : vector<8x1xi1> to vector<8x16xi1>
    %469 = arith.select %468, %461, %430 : vector<8x16xi1>, vector<8x16xf32>
    %cst_227 = arith.constant 0.000000e+00 : f32
    %470 = vector.shape_cast %432 : vector<8x1xi1> to vector<8x1xi1>
    %471 = vector.broadcast %470 : vector<8x1xi1> to vector<8x16xi1>
    %472 = vector.broadcast %cst_227 : f32 to vector<8x16xf32>
    %473 = arith.select %471, %463, %472 : vector<8x16xi1>, vector<8x16xf32>
    %c0_228 = arith.constant 0 : index
    %c0_229 = arith.constant 0 : index
    %474 = vector.load %arg10[%c0_228, %c0_229] : memref<8x16xf32, #tpu.memory_space<vmem>>, vector<8x16xf32>
    tpu.vector_store %arg10[%c0_228, %c0_229], %421 {strides = array<i32>} : memref<8x16xf32, #tpu.memory_space<vmem>>, vector<8x16xf32>,
    %c0_230 = arith.constant 0 : index
    %c0_231 = arith.constant 0 : index
    %475 = vector.load %arg11[%c0_230, %c0_231] : memref<8x16xf32, #tpu.memory_space<vmem>>, vector<8x16xf32>
    tpu.vector_store %arg11[%c0_230, %c0_231], %424 {strides = array<i32>} : memref<8x16xf32, #tpu.memory_space<vmem>>, vector<8x16xf32>,
    %c0_232 = arith.constant 0 : index
    %c0_233 = arith.constant 0 : index
    %476 = vector.load %arg12[%c0_232, %c0_233] : memref<8x16xf32, #tpu.memory_space<vmem>>, vector<8x16xf32>
    tpu.vector_store %arg12[%c0_232, %c0_233], %466 {strides = array<i32>} : memref<8x16xf32, #tpu.memory_space<vmem>>, vector<8x16xf32>,
    %c0_234 = arith.constant 0 : index
    %c0_235 = arith.constant 0 : index
    %477 = vector.load %arg13[%c0_234, %c0_235] : memref<8x16xf32, #tpu.memory_space<vmem>>, vector<8x16xf32>
    tpu.vector_store %arg13[%c0_234, %c0_235], %469 {strides = array<i32>} : memref<8x16xf32, #tpu.memory_space<vmem>>, vector<8x16xf32>,
    %478 = arith.index_cast %c3_i32 : i32 to index
    %c0_236 = arith.constant 0 : index
    %c0_237 = arith.constant 0 : index
    %479 = vector.load %arg7[%478, %c0_236, %c0_237] : memref<8x8x32xf32, #tpu.memory_space<vmem>>, vector<1x8x16xf32>
    %480 = vector.shape_cast %479 : vector<1x8x16xf32> to vector<8x16xf32>
    %481 = vector.shape_cast %428 : vector<8x16xf32> to vector<1x8x16xf32>
    tpu.vector_store %arg7[%478, %c0_236, %c0_237], %481 {strides = array<i32>} : memref<8x8x32xf32, #tpu.memory_space<vmem>>, vector<1x8x16xf32>,
    %482 = arith.index_cast %369 : i32 to index
    %c0_238 = arith.constant 0 : index
    %c16_239 = arith.constant 16 : index
    %483 = vector.load %arg7[%482, %c0_238, %c16_239] : memref<8x8x32xf32, #tpu.memory_space<vmem>>, vector<1x8x16xf32>
    %484 = vector.shape_cast %483 : vector<1x8x16xf32> to vector<8x16xf32>
    %485 = vector.shape_cast %473 : vector<8x16xf32> to vector<1x8x16xf32>
    tpu.vector_store %arg7[%482, %c0_238, %c16_239], %485 {strides = array<i32>} : memref<8x8x32xf32, #tpu.memory_space<vmem>>, vector<1x8x16xf32>,
    %c4_i32 = arith.constant 4 : i32
    %c7_i32_240 = arith.constant 7 : i32
    %486 = arith.subi %c7_i32_240, %c4_i32 : i32
    %487 = arith.index_cast %c4_i32 : i32 to index
    %c0_241 = arith.constant 0 : index
    %c0_242 = arith.constant 0 : index
    %488 = vector.load %arg9[%487, %c0_241, %c0_242] : memref<8x8x128xf32, #tpu.memory_space<vmem>>, vector<1x8x64xf32>
    %489 = vector.shape_cast %488 : vector<1x8x64xf32> to vector<8x64xf32>
    %c0_243 = arith.constant 0 : index
    %c0_244 = arith.constant 0 : index
    %490 = vector.load %arg10[%c0_243, %c0_244] : memref<8x16xf32, #tpu.memory_space<vmem>>, vector<8x16xf32>
    %c0_245 = arith.constant 0 : index
    %c0_246 = arith.constant 0 : index
    %491 = vector.load %arg4[%c0_245, %c0_246] : memref<16x64xf32, #tpu.memory_space<vmem>>, vector<16x64xf32>
    %cst_247 = arith.constant dense<0.000000e+00> : vector<8x64xf32>
    %492 = tpu.matmul %490, %491, %cst_247 {dimension_numbers = #tpu.dot_dimension_numbers<[1], [0], [0], [1], [0, 0, 1, 1], [], []>} : vector<8x16xf32>, vector<16x64xf32>, vector<8x64xf32> -> vector<8x64xf32>
    %493 = arith.addf %489, %492 : vector<8x64xf32>
    %494 = arith.index_cast %486 : i32 to index
    %c0_248 = arith.constant 0 : index
    %c64_249 = arith.constant 64 : index
    %495 = vector.load %arg9[%494, %c0_248, %c64_249] : memref<8x8x128xf32, #tpu.memory_space<vmem>>, vector<1x8x64xf32>
    %496 = vector.shape_cast %495 : vector<1x8x64xf32> to vector<8x64xf32>
    %c0_250 = arith.constant 0 : index
    %c0_251 = arith.constant 0 : index
    %497 = vector.load %arg12[%c0_250, %c0_251] : memref<8x16xf32, #tpu.memory_space<vmem>>, vector<8x16xf32>
    %c0_252 = arith.constant 0 : index
    %c0_253 = arith.constant 0 : index
    %498 = vector.load %arg5[%c0_252, %c0_253] : memref<16x64xf32, #tpu.memory_space<vmem>>, vector<16x64xf32>
    %cst_254 = arith.constant dense<0.000000e+00> : vector<8x64xf32>
    %499 = tpu.matmul %497, %498, %cst_254 {dimension_numbers = #tpu.dot_dimension_numbers<[1], [0], [0], [1], [0, 0, 1, 1], [], []>} : vector<8x16xf32>, vector<16x64xf32>, vector<8x64xf32> -> vector<8x64xf32>
    %500 = arith.addf %496, %499 : vector<8x64xf32>
    %c0_255 = arith.constant 0 : index
    %c0_256 = arith.constant 0 : index
    %501 = vector.load %arg10[%c0_255, %c0_256] : memref<8x16xf32, #tpu.memory_space<vmem>>, vector<8x16xf32>
    %c0_257 = arith.constant 0 : index
    %c0_258 = arith.constant 0 : index
    %502 = vector.load %arg11[%c0_257, %c0_258] : memref<8x16xf32, #tpu.memory_space<vmem>>, vector<8x16xf32>
    %503 = vector.broadcast %c4_i32 : i32 to vector<8x1xi32>
    %504 = arith.cmpi slt, %503, %9 : vector<8x1xi32>
    %505 = vector.extract_strided_slice %493 {offsets = [0, 0], sizes = [8, 16], strides = [1, 1]} : vector<8x64xf32> to vector<8x16xf32>
    %cst_259 = arith.constant 0.000000e+00 : f32
    %506 = vector.broadcast %cst_259 : f32 to vector<8x16xf32>
    %507 = arith.subf %506, %505 : vector<8x16xf32>
    %508 = math.exp %507 : vector<8x16xf32>
    %cst_260 = arith.constant 1.000000e+00 : f32
    %509 = vector.broadcast %cst_260 : f32 to vector<8x16xf32>
    %510 = arith.addf %509, %508 : vector<8x16xf32>
    %cst_261 = arith.constant 1.000000e+00 : f32
    %511 = vector.broadcast %cst_261 : f32 to vector<8x16xf32>
    %512 = arith.divf %511, %510 : vector<8x16xf32>
    %513 = vector.extract_strided_slice %493 {offsets = [0, 16], sizes = [8, 16], strides = [1, 1]} : vector<8x64xf32> to vector<8x16xf32>
    %cst_262 = arith.constant 0.000000e+00 : f32
    %514 = vector.broadcast %cst_262 : f32 to vector<8x16xf32>
    %515 = arith.subf %514, %513 : vector<8x16xf32>
    %516 = math.exp %515 : vector<8x16xf32>
    %cst_263 = arith.constant 1.000000e+00 : f32
    %517 = vector.broadcast %cst_263 : f32 to vector<8x16xf32>
    %518 = arith.addf %517, %516 : vector<8x16xf32>
    %cst_264 = arith.constant 1.000000e+00 : f32
    %519 = vector.broadcast %cst_264 : f32 to vector<8x16xf32>
    %520 = arith.divf %519, %518 : vector<8x16xf32>
    %521 = vector.extract_strided_slice %493 {offsets = [0, 32], sizes = [8, 16], strides = [1, 1]} : vector<8x64xf32> to vector<8x16xf32>
    %522 = math.tanh %521 : vector<8x16xf32>
    %523 = vector.extract_strided_slice %493 {offsets = [0, 48], sizes = [8, 16], strides = [1, 1]} : vector<8x64xf32> to vector<8x16xf32>
    %cst_265 = arith.constant 0.000000e+00 : f32
    %524 = vector.broadcast %cst_265 : f32 to vector<8x16xf32>
    %525 = arith.subf %524, %523 : vector<8x16xf32>
    %526 = math.exp %525 : vector<8x16xf32>
    %cst_266 = arith.constant 1.000000e+00 : f32
    %527 = vector.broadcast %cst_266 : f32 to vector<8x16xf32>
    %528 = arith.addf %527, %526 : vector<8x16xf32>
    %cst_267 = arith.constant 1.000000e+00 : f32
    %529 = vector.broadcast %cst_267 : f32 to vector<8x16xf32>
    %530 = arith.divf %529, %528 : vector<8x16xf32>
    %531 = arith.mulf %520, %502 : vector<8x16xf32>
    %532 = arith.mulf %512, %522 : vector<8x16xf32>
    %533 = arith.addf %531, %532 : vector<8x16xf32>
    %534 = math.tanh %533 : vector<8x16xf32>
    %535 = arith.mulf %530, %534 : vector<8x16xf32>
    %536 = vector.shape_cast %504 : vector<8x1xi1> to vector<8x1xi1>
    %537 = vector.broadcast %536 : vector<8x1xi1> to vector<8x16xi1>
    %538 = arith.select %537, %535, %501 : vector<8x16xi1>, vector<8x16xf32>
    %539 = vector.shape_cast %504 : vector<8x1xi1> to vector<8x1xi1>
    %540 = vector.broadcast %539 : vector<8x1xi1> to vector<8x16xi1>
    %541 = arith.select %540, %533, %502 : vector<8x16xi1>, vector<8x16xf32>
    %cst_268 = arith.constant 0.000000e+00 : f32
    %542 = vector.shape_cast %504 : vector<8x1xi1> to vector<8x1xi1>
    %543 = vector.broadcast %542 : vector<8x1xi1> to vector<8x16xi1>
    %544 = vector.broadcast %cst_268 : f32 to vector<8x16xf32>
    %545 = arith.select %543, %535, %544 : vector<8x16xi1>, vector<8x16xf32>
    %c0_269 = arith.constant 0 : index
    %c0_270 = arith.constant 0 : index
    %546 = vector.load %arg12[%c0_269, %c0_270] : memref<8x16xf32, #tpu.memory_space<vmem>>, vector<8x16xf32>
    %c0_271 = arith.constant 0 : index
    %c0_272 = arith.constant 0 : index
    %547 = vector.load %arg13[%c0_271, %c0_272] : memref<8x16xf32, #tpu.memory_space<vmem>>, vector<8x16xf32>
    %548 = vector.broadcast %486 : i32 to vector<8x1xi32>
    %549 = arith.cmpi slt, %548, %9 : vector<8x1xi32>
    %550 = vector.extract_strided_slice %500 {offsets = [0, 0], sizes = [8, 16], strides = [1, 1]} : vector<8x64xf32> to vector<8x16xf32>
    %cst_273 = arith.constant 0.000000e+00 : f32
    %551 = vector.broadcast %cst_273 : f32 to vector<8x16xf32>
    %552 = arith.subf %551, %550 : vector<8x16xf32>
    %553 = math.exp %552 : vector<8x16xf32>
    %cst_274 = arith.constant 1.000000e+00 : f32
    %554 = vector.broadcast %cst_274 : f32 to vector<8x16xf32>
    %555 = arith.addf %554, %553 : vector<8x16xf32>
    %cst_275 = arith.constant 1.000000e+00 : f32
    %556 = vector.broadcast %cst_275 : f32 to vector<8x16xf32>
    %557 = arith.divf %556, %555 : vector<8x16xf32>
    %558 = vector.extract_strided_slice %500 {offsets = [0, 16], sizes = [8, 16], strides = [1, 1]} : vector<8x64xf32> to vector<8x16xf32>
    %cst_276 = arith.constant 0.000000e+00 : f32
    %559 = vector.broadcast %cst_276 : f32 to vector<8x16xf32>
    %560 = arith.subf %559, %558 : vector<8x16xf32>
    %561 = math.exp %560 : vector<8x16xf32>
    %cst_277 = arith.constant 1.000000e+00 : f32
    %562 = vector.broadcast %cst_277 : f32 to vector<8x16xf32>
    %563 = arith.addf %562, %561 : vector<8x16xf32>
    %cst_278 = arith.constant 1.000000e+00 : f32
    %564 = vector.broadcast %cst_278 : f32 to vector<8x16xf32>
    %565 = arith.divf %564, %563 : vector<8x16xf32>
    %566 = vector.extract_strided_slice %500 {offsets = [0, 32], sizes = [8, 16], strides = [1, 1]} : vector<8x64xf32> to vector<8x16xf32>
    %567 = math.tanh %566 : vector<8x16xf32>
    %568 = vector.extract_strided_slice %500 {offsets = [0, 48], sizes = [8, 16], strides = [1, 1]} : vector<8x64xf32> to vector<8x16xf32>
    %cst_279 = arith.constant 0.000000e+00 : f32
    %569 = vector.broadcast %cst_279 : f32 to vector<8x16xf32>
    %570 = arith.subf %569, %568 : vector<8x16xf32>
    %571 = math.exp %570 : vector<8x16xf32>
    %cst_280 = arith.constant 1.000000e+00 : f32
    %572 = vector.broadcast %cst_280 : f32 to vector<8x16xf32>
    %573 = arith.addf %572, %571 : vector<8x16xf32>
    %cst_281 = arith.constant 1.000000e+00 : f32
    %574 = vector.broadcast %cst_281 : f32 to vector<8x16xf32>
    %575 = arith.divf %574, %573 : vector<8x16xf32>
    %576 = arith.mulf %565, %547 : vector<8x16xf32>
    %577 = arith.mulf %557, %567 : vector<8x16xf32>
    %578 = arith.addf %576, %577 : vector<8x16xf32>
    %579 = math.tanh %578 : vector<8x16xf32>
    %580 = arith.mulf %575, %579 : vector<8x16xf32>
    %581 = vector.shape_cast %549 : vector<8x1xi1> to vector<8x1xi1>
    %582 = vector.broadcast %581 : vector<8x1xi1> to vector<8x16xi1>
    %583 = arith.select %582, %580, %546 : vector<8x16xi1>, vector<8x16xf32>
    %584 = vector.shape_cast %549 : vector<8x1xi1> to vector<8x1xi1>
    %585 = vector.broadcast %584 : vector<8x1xi1> to vector<8x16xi1>
    %586 = arith.select %585, %578, %547 : vector<8x16xi1>, vector<8x16xf32>
    %cst_282 = arith.constant 0.000000e+00 : f32
    %587 = vector.shape_cast %549 : vector<8x1xi1> to vector<8x1xi1>
    %588 = vector.broadcast %587 : vector<8x1xi1> to vector<8x16xi1>
    %589 = vector.broadcast %cst_282 : f32 to vector<8x16xf32>
    %590 = arith.select %588, %580, %589 : vector<8x16xi1>, vector<8x16xf32>
    %c0_283 = arith.constant 0 : index
    %c0_284 = arith.constant 0 : index
    %591 = vector.load %arg10[%c0_283, %c0_284] : memref<8x16xf32, #tpu.memory_space<vmem>>, vector<8x16xf32>
    tpu.vector_store %arg10[%c0_283, %c0_284], %538 {strides = array<i32>} : memref<8x16xf32, #tpu.memory_space<vmem>>, vector<8x16xf32>,
    %c0_285 = arith.constant 0 : index
    %c0_286 = arith.constant 0 : index
    %592 = vector.load %arg11[%c0_285, %c0_286] : memref<8x16xf32, #tpu.memory_space<vmem>>, vector<8x16xf32>
    tpu.vector_store %arg11[%c0_285, %c0_286], %541 {strides = array<i32>} : memref<8x16xf32, #tpu.memory_space<vmem>>, vector<8x16xf32>,
    %c0_287 = arith.constant 0 : index
    %c0_288 = arith.constant 0 : index
    %593 = vector.load %arg12[%c0_287, %c0_288] : memref<8x16xf32, #tpu.memory_space<vmem>>, vector<8x16xf32>
    tpu.vector_store %arg12[%c0_287, %c0_288], %583 {strides = array<i32>} : memref<8x16xf32, #tpu.memory_space<vmem>>, vector<8x16xf32>,
    %c0_289 = arith.constant 0 : index
    %c0_290 = arith.constant 0 : index
    %594 = vector.load %arg13[%c0_289, %c0_290] : memref<8x16xf32, #tpu.memory_space<vmem>>, vector<8x16xf32>
    tpu.vector_store %arg13[%c0_289, %c0_290], %586 {strides = array<i32>} : memref<8x16xf32, #tpu.memory_space<vmem>>, vector<8x16xf32>,
    %595 = arith.index_cast %c4_i32 : i32 to index
    %c0_291 = arith.constant 0 : index
    %c0_292 = arith.constant 0 : index
    %596 = vector.load %arg7[%595, %c0_291, %c0_292] : memref<8x8x32xf32, #tpu.memory_space<vmem>>, vector<1x8x16xf32>
    %597 = vector.shape_cast %596 : vector<1x8x16xf32> to vector<8x16xf32>
    %598 = vector.shape_cast %545 : vector<8x16xf32> to vector<1x8x16xf32>
    tpu.vector_store %arg7[%595, %c0_291, %c0_292], %598 {strides = array<i32>} : memref<8x8x32xf32, #tpu.memory_space<vmem>>, vector<1x8x16xf32>,
    %599 = arith.index_cast %486 : i32 to index
    %c0_293 = arith.constant 0 : index
    %c16_294 = arith.constant 16 : index
    %600 = vector.load %arg7[%599, %c0_293, %c16_294] : memref<8x8x32xf32, #tpu.memory_space<vmem>>, vector<1x8x16xf32>
    %601 = vector.shape_cast %600 : vector<1x8x16xf32> to vector<8x16xf32>
    %602 = vector.shape_cast %590 : vector<8x16xf32> to vector<1x8x16xf32>
    tpu.vector_store %arg7[%599, %c0_293, %c16_294], %602 {strides = array<i32>} : memref<8x8x32xf32, #tpu.memory_space<vmem>>, vector<1x8x16xf32>,
    %c5_i32 = arith.constant 5 : i32
    %c7_i32_295 = arith.constant 7 : i32
    %603 = arith.subi %c7_i32_295, %c5_i32 : i32
    %604 = arith.index_cast %c5_i32 : i32 to index
    %c0_296 = arith.constant 0 : index
    %c0_297 = arith.constant 0 : index
    %605 = vector.load %arg9[%604, %c0_296, %c0_297] : memref<8x8x128xf32, #tpu.memory_space<vmem>>, vector<1x8x64xf32>
    %606 = vector.shape_cast %605 : vector<1x8x64xf32> to vector<8x64xf32>
    %c0_298 = arith.constant 0 : index
    %c0_299 = arith.constant 0 : index
    %607 = vector.load %arg10[%c0_298, %c0_299] : memref<8x16xf32, #tpu.memory_space<vmem>>, vector<8x16xf32>
    %c0_300 = arith.constant 0 : index
    %c0_301 = arith.constant 0 : index
    %608 = vector.load %arg4[%c0_300, %c0_301] : memref<16x64xf32, #tpu.memory_space<vmem>>, vector<16x64xf32>
    %cst_302 = arith.constant dense<0.000000e+00> : vector<8x64xf32>
    %609 = tpu.matmul %607, %608, %cst_302 {dimension_numbers = #tpu.dot_dimension_numbers<[1], [0], [0], [1], [0, 0, 1, 1], [], []>} : vector<8x16xf32>, vector<16x64xf32>, vector<8x64xf32> -> vector<8x64xf32>
    %610 = arith.addf %606, %609 : vector<8x64xf32>
    %611 = arith.index_cast %603 : i32 to index
    %c0_303 = arith.constant 0 : index
    %c64_304 = arith.constant 64 : index
    %612 = vector.load %arg9[%611, %c0_303, %c64_304] : memref<8x8x128xf32, #tpu.memory_space<vmem>>, vector<1x8x64xf32>
    %613 = vector.shape_cast %612 : vector<1x8x64xf32> to vector<8x64xf32>
    %c0_305 = arith.constant 0 : index
    %c0_306 = arith.constant 0 : index
    %614 = vector.load %arg12[%c0_305, %c0_306] : memref<8x16xf32, #tpu.memory_space<vmem>>, vector<8x16xf32>
    %c0_307 = arith.constant 0 : index
    %c0_308 = arith.constant 0 : index
    %615 = vector.load %arg5[%c0_307, %c0_308] : memref<16x64xf32, #tpu.memory_space<vmem>>, vector<16x64xf32>
    %cst_309 = arith.constant dense<0.000000e+00> : vector<8x64xf32>
    %616 = tpu.matmul %614, %615, %cst_309 {dimension_numbers = #tpu.dot_dimension_numbers<[1], [0], [0], [1], [0, 0, 1, 1], [], []>} : vector<8x16xf32>, vector<16x64xf32>, vector<8x64xf32> -> vector<8x64xf32>
    %617 = arith.addf %613, %616 : vector<8x64xf32>
    %c0_310 = arith.constant 0 : index
    %c0_311 = arith.constant 0 : index
    %618 = vector.load %arg10[%c0_310, %c0_311] : memref<8x16xf32, #tpu.memory_space<vmem>>, vector<8x16xf32>
    %c0_312 = arith.constant 0 : index
    %c0_313 = arith.constant 0 : index
    %619 = vector.load %arg11[%c0_312, %c0_313] : memref<8x16xf32, #tpu.memory_space<vmem>>, vector<8x16xf32>
    %620 = vector.broadcast %c5_i32 : i32 to vector<8x1xi32>
    %621 = arith.cmpi slt, %620, %9 : vector<8x1xi32>
    %622 = vector.extract_strided_slice %610 {offsets = [0, 0], sizes = [8, 16], strides = [1, 1]} : vector<8x64xf32> to vector<8x16xf32>
    %cst_314 = arith.constant 0.000000e+00 : f32
    %623 = vector.broadcast %cst_314 : f32 to vector<8x16xf32>
    %624 = arith.subf %623, %622 : vector<8x16xf32>
    %625 = math.exp %624 : vector<8x16xf32>
    %cst_315 = arith.constant 1.000000e+00 : f32
    %626 = vector.broadcast %cst_315 : f32 to vector<8x16xf32>
    %627 = arith.addf %626, %625 : vector<8x16xf32>
    %cst_316 = arith.constant 1.000000e+00 : f32
    %628 = vector.broadcast %cst_316 : f32 to vector<8x16xf32>
    %629 = arith.divf %628, %627 : vector<8x16xf32>
    %630 = vector.extract_strided_slice %610 {offsets = [0, 16], sizes = [8, 16], strides = [1, 1]} : vector<8x64xf32> to vector<8x16xf32>
    %cst_317 = arith.constant 0.000000e+00 : f32
    %631 = vector.broadcast %cst_317 : f32 to vector<8x16xf32>
    %632 = arith.subf %631, %630 : vector<8x16xf32>
    %633 = math.exp %632 : vector<8x16xf32>
    %cst_318 = arith.constant 1.000000e+00 : f32
    %634 = vector.broadcast %cst_318 : f32 to vector<8x16xf32>
    %635 = arith.addf %634, %633 : vector<8x16xf32>
    %cst_319 = arith.constant 1.000000e+00 : f32
    %636 = vector.broadcast %cst_319 : f32 to vector<8x16xf32>
    %637 = arith.divf %636, %635 : vector<8x16xf32>
    %638 = vector.extract_strided_slice %610 {offsets = [0, 32], sizes = [8, 16], strides = [1, 1]} : vector<8x64xf32> to vector<8x16xf32>
    %639 = math.tanh %638 : vector<8x16xf32>
    %640 = vector.extract_strided_slice %610 {offsets = [0, 48], sizes = [8, 16], strides = [1, 1]} : vector<8x64xf32> to vector<8x16xf32>
    %cst_320 = arith.constant 0.000000e+00 : f32
    %641 = vector.broadcast %cst_320 : f32 to vector<8x16xf32>
    %642 = arith.subf %641, %640 : vector<8x16xf32>
    %643 = math.exp %642 : vector<8x16xf32>
    %cst_321 = arith.constant 1.000000e+00 : f32
    %644 = vector.broadcast %cst_321 : f32 to vector<8x16xf32>
    %645 = arith.addf %644, %643 : vector<8x16xf32>
    %cst_322 = arith.constant 1.000000e+00 : f32
    %646 = vector.broadcast %cst_322 : f32 to vector<8x16xf32>
    %647 = arith.divf %646, %645 : vector<8x16xf32>
    %648 = arith.mulf %637, %619 : vector<8x16xf32>
    %649 = arith.mulf %629, %639 : vector<8x16xf32>
    %650 = arith.addf %648, %649 : vector<8x16xf32>
    %651 = math.tanh %650 : vector<8x16xf32>
    %652 = arith.mulf %647, %651 : vector<8x16xf32>
    %653 = vector.shape_cast %621 : vector<8x1xi1> to vector<8x1xi1>
    %654 = vector.broadcast %653 : vector<8x1xi1> to vector<8x16xi1>
    %655 = arith.select %654, %652, %618 : vector<8x16xi1>, vector<8x16xf32>
    %656 = vector.shape_cast %621 : vector<8x1xi1> to vector<8x1xi1>
    %657 = vector.broadcast %656 : vector<8x1xi1> to vector<8x16xi1>
    %658 = arith.select %657, %650, %619 : vector<8x16xi1>, vector<8x16xf32>
    %cst_323 = arith.constant 0.000000e+00 : f32
    %659 = vector.shape_cast %621 : vector<8x1xi1> to vector<8x1xi1>
    %660 = vector.broadcast %659 : vector<8x1xi1> to vector<8x16xi1>
    %661 = vector.broadcast %cst_323 : f32 to vector<8x16xf32>
    %662 = arith.select %660, %652, %661 : vector<8x16xi1>, vector<8x16xf32>
    %c0_324 = arith.constant 0 : index
    %c0_325 = arith.constant 0 : index
    %663 = vector.load %arg12[%c0_324, %c0_325] : memref<8x16xf32, #tpu.memory_space<vmem>>, vector<8x16xf32>
    %c0_326 = arith.constant 0 : index
    %c0_327 = arith.constant 0 : index
    %664 = vector.load %arg13[%c0_326, %c0_327] : memref<8x16xf32, #tpu.memory_space<vmem>>, vector<8x16xf32>
    %665 = vector.broadcast %603 : i32 to vector<8x1xi32>
    %666 = arith.cmpi slt, %665, %9 : vector<8x1xi32>
    %667 = vector.extract_strided_slice %617 {offsets = [0, 0], sizes = [8, 16], strides = [1, 1]} : vector<8x64xf32> to vector<8x16xf32>
    %cst_328 = arith.constant 0.000000e+00 : f32
    %668 = vector.broadcast %cst_328 : f32 to vector<8x16xf32>
    %669 = arith.subf %668, %667 : vector<8x16xf32>
    %670 = math.exp %669 : vector<8x16xf32>
    %cst_329 = arith.constant 1.000000e+00 : f32
    %671 = vector.broadcast %cst_329 : f32 to vector<8x16xf32>
    %672 = arith.addf %671, %670 : vector<8x16xf32>
    %cst_330 = arith.constant 1.000000e+00 : f32
    %673 = vector.broadcast %cst_330 : f32 to vector<8x16xf32>
    %674 = arith.divf %673, %672 : vector<8x16xf32>
    %675 = vector.extract_strided_slice %617 {offsets = [0, 16], sizes = [8, 16], strides = [1, 1]} : vector<8x64xf32> to vector<8x16xf32>
    %cst_331 = arith.constant 0.000000e+00 : f32
    %676 = vector.broadcast %cst_331 : f32 to vector<8x16xf32>
    %677 = arith.subf %676, %675 : vector<8x16xf32>
    %678 = math.exp %677 : vector<8x16xf32>
    %cst_332 = arith.constant 1.000000e+00 : f32
    %679 = vector.broadcast %cst_332 : f32 to vector<8x16xf32>
    %680 = arith.addf %679, %678 : vector<8x16xf32>
    %cst_333 = arith.constant 1.000000e+00 : f32
    %681 = vector.broadcast %cst_333 : f32 to vector<8x16xf32>
    %682 = arith.divf %681, %680 : vector<8x16xf32>
    %683 = vector.extract_strided_slice %617 {offsets = [0, 32], sizes = [8, 16], strides = [1, 1]} : vector<8x64xf32> to vector<8x16xf32>
    %684 = math.tanh %683 : vector<8x16xf32>
    %685 = vector.extract_strided_slice %617 {offsets = [0, 48], sizes = [8, 16], strides = [1, 1]} : vector<8x64xf32> to vector<8x16xf32>
    %cst_334 = arith.constant 0.000000e+00 : f32
    %686 = vector.broadcast %cst_334 : f32 to vector<8x16xf32>
    %687 = arith.subf %686, %685 : vector<8x16xf32>
    %688 = math.exp %687 : vector<8x16xf32>
    %cst_335 = arith.constant 1.000000e+00 : f32
    %689 = vector.broadcast %cst_335 : f32 to vector<8x16xf32>
    %690 = arith.addf %689, %688 : vector<8x16xf32>
    %cst_336 = arith.constant 1.000000e+00 : f32
    %691 = vector.broadcast %cst_336 : f32 to vector<8x16xf32>
    %692 = arith.divf %691, %690 : vector<8x16xf32>
    %693 = arith.mulf %682, %664 : vector<8x16xf32>
    %694 = arith.mulf %674, %684 : vector<8x16xf32>
    %695 = arith.addf %693, %694 : vector<8x16xf32>
    %696 = math.tanh %695 : vector<8x16xf32>
    %697 = arith.mulf %692, %696 : vector<8x16xf32>
    %698 = vector.shape_cast %666 : vector<8x1xi1> to vector<8x1xi1>
    %699 = vector.broadcast %698 : vector<8x1xi1> to vector<8x16xi1>
    %700 = arith.select %699, %697, %663 : vector<8x16xi1>, vector<8x16xf32>
    %701 = vector.shape_cast %666 : vector<8x1xi1> to vector<8x1xi1>
    %702 = vector.broadcast %701 : vector<8x1xi1> to vector<8x16xi1>
    %703 = arith.select %702, %695, %664 : vector<8x16xi1>, vector<8x16xf32>
    %cst_337 = arith.constant 0.000000e+00 : f32
    %704 = vector.shape_cast %666 : vector<8x1xi1> to vector<8x1xi1>
    %705 = vector.broadcast %704 : vector<8x1xi1> to vector<8x16xi1>
    %706 = vector.broadcast %cst_337 : f32 to vector<8x16xf32>
    %707 = arith.select %705, %697, %706 : vector<8x16xi1>, vector<8x16xf32>
    %c0_338 = arith.constant 0 : index
    %c0_339 = arith.constant 0 : index
    %708 = vector.load %arg10[%c0_338, %c0_339] : memref<8x16xf32, #tpu.memory_space<vmem>>, vector<8x16xf32>
    tpu.vector_store %arg10[%c0_338, %c0_339], %655 {strides = array<i32>} : memref<8x16xf32, #tpu.memory_space<vmem>>, vector<8x16xf32>,
    %c0_340 = arith.constant 0 : index
    %c0_341 = arith.constant 0 : index
    %709 = vector.load %arg11[%c0_340, %c0_341] : memref<8x16xf32, #tpu.memory_space<vmem>>, vector<8x16xf32>
    tpu.vector_store %arg11[%c0_340, %c0_341], %658 {strides = array<i32>} : memref<8x16xf32, #tpu.memory_space<vmem>>, vector<8x16xf32>,
    %c0_342 = arith.constant 0 : index
    %c0_343 = arith.constant 0 : index
    %710 = vector.load %arg12[%c0_342, %c0_343] : memref<8x16xf32, #tpu.memory_space<vmem>>, vector<8x16xf32>
    tpu.vector_store %arg12[%c0_342, %c0_343], %700 {strides = array<i32>} : memref<8x16xf32, #tpu.memory_space<vmem>>, vector<8x16xf32>,
    %c0_344 = arith.constant 0 : index
    %c0_345 = arith.constant 0 : index
    %711 = vector.load %arg13[%c0_344, %c0_345] : memref<8x16xf32, #tpu.memory_space<vmem>>, vector<8x16xf32>
    tpu.vector_store %arg13[%c0_344, %c0_345], %703 {strides = array<i32>} : memref<8x16xf32, #tpu.memory_space<vmem>>, vector<8x16xf32>,
    %712 = arith.index_cast %c5_i32 : i32 to index
    %c0_346 = arith.constant 0 : index
    %c0_347 = arith.constant 0 : index
    %713 = vector.load %arg7[%712, %c0_346, %c0_347] : memref<8x8x32xf32, #tpu.memory_space<vmem>>, vector<1x8x16xf32>
    %714 = vector.shape_cast %713 : vector<1x8x16xf32> to vector<8x16xf32>
    %715 = vector.shape_cast %662 : vector<8x16xf32> to vector<1x8x16xf32>
    tpu.vector_store %arg7[%712, %c0_346, %c0_347], %715 {strides = array<i32>} : memref<8x8x32xf32, #tpu.memory_space<vmem>>, vector<1x8x16xf32>,
    %716 = arith.index_cast %603 : i32 to index
    %c0_348 = arith.constant 0 : index
    %c16_349 = arith.constant 16 : index
    %717 = vector.load %arg7[%716, %c0_348, %c16_349] : memref<8x8x32xf32, #tpu.memory_space<vmem>>, vector<1x8x16xf32>
    %718 = vector.shape_cast %717 : vector<1x8x16xf32> to vector<8x16xf32>
    %719 = vector.shape_cast %707 : vector<8x16xf32> to vector<1x8x16xf32>
    tpu.vector_store %arg7[%716, %c0_348, %c16_349], %719 {strides = array<i32>} : memref<8x8x32xf32, #tpu.memory_space<vmem>>, vector<1x8x16xf32>,
    %c6_i32 = arith.constant 6 : i32
    %c7_i32_350 = arith.constant 7 : i32
    %720 = arith.subi %c7_i32_350, %c6_i32 : i32
    %721 = arith.index_cast %c6_i32 : i32 to index
    %c0_351 = arith.constant 0 : index
    %c0_352 = arith.constant 0 : index
    %722 = vector.load %arg9[%721, %c0_351, %c0_352] : memref<8x8x128xf32, #tpu.memory_space<vmem>>, vector<1x8x64xf32>
    %723 = vector.shape_cast %722 : vector<1x8x64xf32> to vector<8x64xf32>
    %c0_353 = arith.constant 0 : index
    %c0_354 = arith.constant 0 : index
    %724 = vector.load %arg10[%c0_353, %c0_354] : memref<8x16xf32, #tpu.memory_space<vmem>>, vector<8x16xf32>
    %c0_355 = arith.constant 0 : index
    %c0_356 = arith.constant 0 : index
    %725 = vector.load %arg4[%c0_355, %c0_356] : memref<16x64xf32, #tpu.memory_space<vmem>>, vector<16x64xf32>
    %cst_357 = arith.constant dense<0.000000e+00> : vector<8x64xf32>
    %726 = tpu.matmul %724, %725, %cst_357 {dimension_numbers = #tpu.dot_dimension_numbers<[1], [0], [0], [1], [0, 0, 1, 1], [], []>} : vector<8x16xf32>, vector<16x64xf32>, vector<8x64xf32> -> vector<8x64xf32>
    %727 = arith.addf %723, %726 : vector<8x64xf32>
    %728 = arith.index_cast %720 : i32 to index
    %c0_358 = arith.constant 0 : index
    %c64_359 = arith.constant 64 : index
    %729 = vector.load %arg9[%728, %c0_358, %c64_359] : memref<8x8x128xf32, #tpu.memory_space<vmem>>, vector<1x8x64xf32>
    %730 = vector.shape_cast %729 : vector<1x8x64xf32> to vector<8x64xf32>
    %c0_360 = arith.constant 0 : index
    %c0_361 = arith.constant 0 : index
    %731 = vector.load %arg12[%c0_360, %c0_361] : memref<8x16xf32, #tpu.memory_space<vmem>>, vector<8x16xf32>
    %c0_362 = arith.constant 0 : index
    %c0_363 = arith.constant 0 : index
    %732 = vector.load %arg5[%c0_362, %c0_363] : memref<16x64xf32, #tpu.memory_space<vmem>>, vector<16x64xf32>
    %cst_364 = arith.constant dense<0.000000e+00> : vector<8x64xf32>
    %733 = tpu.matmul %731, %732, %cst_364 {dimension_numbers = #tpu.dot_dimension_numbers<[1], [0], [0], [1], [0, 0, 1, 1], [], []>} : vector<8x16xf32>, vector<16x64xf32>, vector<8x64xf32> -> vector<8x64xf32>
    %734 = arith.addf %730, %733 : vector<8x64xf32>
    %c0_365 = arith.constant 0 : index
    %c0_366 = arith.constant 0 : index
    %735 = vector.load %arg10[%c0_365, %c0_366] : memref<8x16xf32, #tpu.memory_space<vmem>>, vector<8x16xf32>
    %c0_367 = arith.constant 0 : index
    %c0_368 = arith.constant 0 : index
    %736 = vector.load %arg11[%c0_367, %c0_368] : memref<8x16xf32, #tpu.memory_space<vmem>>, vector<8x16xf32>
    %737 = vector.broadcast %c6_i32 : i32 to vector<8x1xi32>
    %738 = arith.cmpi slt, %737, %9 : vector<8x1xi32>
    %739 = vector.extract_strided_slice %727 {offsets = [0, 0], sizes = [8, 16], strides = [1, 1]} : vector<8x64xf32> to vector<8x16xf32>
    %cst_369 = arith.constant 0.000000e+00 : f32
    %740 = vector.broadcast %cst_369 : f32 to vector<8x16xf32>
    %741 = arith.subf %740, %739 : vector<8x16xf32>
    %742 = math.exp %741 : vector<8x16xf32>
    %cst_370 = arith.constant 1.000000e+00 : f32
    %743 = vector.broadcast %cst_370 : f32 to vector<8x16xf32>
    %744 = arith.addf %743, %742 : vector<8x16xf32>
    %cst_371 = arith.constant 1.000000e+00 : f32
    %745 = vector.broadcast %cst_371 : f32 to vector<8x16xf32>
    %746 = arith.divf %745, %744 : vector<8x16xf32>
    %747 = vector.extract_strided_slice %727 {offsets = [0, 16], sizes = [8, 16], strides = [1, 1]} : vector<8x64xf32> to vector<8x16xf32>
    %cst_372 = arith.constant 0.000000e+00 : f32
    %748 = vector.broadcast %cst_372 : f32 to vector<8x16xf32>
    %749 = arith.subf %748, %747 : vector<8x16xf32>
    %750 = math.exp %749 : vector<8x16xf32>
    %cst_373 = arith.constant 1.000000e+00 : f32
    %751 = vector.broadcast %cst_373 : f32 to vector<8x16xf32>
    %752 = arith.addf %751, %750 : vector<8x16xf32>
    %cst_374 = arith.constant 1.000000e+00 : f32
    %753 = vector.broadcast %cst_374 : f32 to vector<8x16xf32>
    %754 = arith.divf %753, %752 : vector<8x16xf32>
    %755 = vector.extract_strided_slice %727 {offsets = [0, 32], sizes = [8, 16], strides = [1, 1]} : vector<8x64xf32> to vector<8x16xf32>
    %756 = math.tanh %755 : vector<8x16xf32>
    %757 = vector.extract_strided_slice %727 {offsets = [0, 48], sizes = [8, 16], strides = [1, 1]} : vector<8x64xf32> to vector<8x16xf32>
    %cst_375 = arith.constant 0.000000e+00 : f32
    %758 = vector.broadcast %cst_375 : f32 to vector<8x16xf32>
    %759 = arith.subf %758, %757 : vector<8x16xf32>
    %760 = math.exp %759 : vector<8x16xf32>
    %cst_376 = arith.constant 1.000000e+00 : f32
    %761 = vector.broadcast %cst_376 : f32 to vector<8x16xf32>
    %762 = arith.addf %761, %760 : vector<8x16xf32>
    %cst_377 = arith.constant 1.000000e+00 : f32
    %763 = vector.broadcast %cst_377 : f32 to vector<8x16xf32>
    %764 = arith.divf %763, %762 : vector<8x16xf32>
    %765 = arith.mulf %754, %736 : vector<8x16xf32>
    %766 = arith.mulf %746, %756 : vector<8x16xf32>
    %767 = arith.addf %765, %766 : vector<8x16xf32>
    %768 = math.tanh %767 : vector<8x16xf32>
    %769 = arith.mulf %764, %768 : vector<8x16xf32>
    %770 = vector.shape_cast %738 : vector<8x1xi1> to vector<8x1xi1>
    %771 = vector.broadcast %770 : vector<8x1xi1> to vector<8x16xi1>
    %772 = arith.select %771, %769, %735 : vector<8x16xi1>, vector<8x16xf32>
    %773 = vector.shape_cast %738 : vector<8x1xi1> to vector<8x1xi1>
    %774 = vector.broadcast %773 : vector<8x1xi1> to vector<8x16xi1>
    %775 = arith.select %774, %767, %736 : vector<8x16xi1>, vector<8x16xf32>
    %cst_378 = arith.constant 0.000000e+00 : f32
    %776 = vector.shape_cast %738 : vector<8x1xi1> to vector<8x1xi1>
    %777 = vector.broadcast %776 : vector<8x1xi1> to vector<8x16xi1>
    %778 = vector.broadcast %cst_378 : f32 to vector<8x16xf32>
    %779 = arith.select %777, %769, %778 : vector<8x16xi1>, vector<8x16xf32>
    %c0_379 = arith.constant 0 : index
    %c0_380 = arith.constant 0 : index
    %780 = vector.load %arg12[%c0_379, %c0_380] : memref<8x16xf32, #tpu.memory_space<vmem>>, vector<8x16xf32>
    %c0_381 = arith.constant 0 : index
    %c0_382 = arith.constant 0 : index
    %781 = vector.load %arg13[%c0_381, %c0_382] : memref<8x16xf32, #tpu.memory_space<vmem>>, vector<8x16xf32>
    %782 = vector.broadcast %720 : i32 to vector<8x1xi32>
    %783 = arith.cmpi slt, %782, %9 : vector<8x1xi32>
    %784 = vector.extract_strided_slice %734 {offsets = [0, 0], sizes = [8, 16], strides = [1, 1]} : vector<8x64xf32> to vector<8x16xf32>
    %cst_383 = arith.constant 0.000000e+00 : f32
    %785 = vector.broadcast %cst_383 : f32 to vector<8x16xf32>
    %786 = arith.subf %785, %784 : vector<8x16xf32>
    %787 = math.exp %786 : vector<8x16xf32>
    %cst_384 = arith.constant 1.000000e+00 : f32
    %788 = vector.broadcast %cst_384 : f32 to vector<8x16xf32>
    %789 = arith.addf %788, %787 : vector<8x16xf32>
    %cst_385 = arith.constant 1.000000e+00 : f32
    %790 = vector.broadcast %cst_385 : f32 to vector<8x16xf32>
    %791 = arith.divf %790, %789 : vector<8x16xf32>
    %792 = vector.extract_strided_slice %734 {offsets = [0, 16], sizes = [8, 16], strides = [1, 1]} : vector<8x64xf32> to vector<8x16xf32>
    %cst_386 = arith.constant 0.000000e+00 : f32
    %793 = vector.broadcast %cst_386 : f32 to vector<8x16xf32>
    %794 = arith.subf %793, %792 : vector<8x16xf32>
    %795 = math.exp %794 : vector<8x16xf32>
    %cst_387 = arith.constant 1.000000e+00 : f32
    %796 = vector.broadcast %cst_387 : f32 to vector<8x16xf32>
    %797 = arith.addf %796, %795 : vector<8x16xf32>
    %cst_388 = arith.constant 1.000000e+00 : f32
    %798 = vector.broadcast %cst_388 : f32 to vector<8x16xf32>
    %799 = arith.divf %798, %797 : vector<8x16xf32>
    %800 = vector.extract_strided_slice %734 {offsets = [0, 32], sizes = [8, 16], strides = [1, 1]} : vector<8x64xf32> to vector<8x16xf32>
    %801 = math.tanh %800 : vector<8x16xf32>
    %802 = vector.extract_strided_slice %734 {offsets = [0, 48], sizes = [8, 16], strides = [1, 1]} : vector<8x64xf32> to vector<8x16xf32>
    %cst_389 = arith.constant 0.000000e+00 : f32
    %803 = vector.broadcast %cst_389 : f32 to vector<8x16xf32>
    %804 = arith.subf %803, %802 : vector<8x16xf32>
    %805 = math.exp %804 : vector<8x16xf32>
    %cst_390 = arith.constant 1.000000e+00 : f32
    %806 = vector.broadcast %cst_390 : f32 to vector<8x16xf32>
    %807 = arith.addf %806, %805 : vector<8x16xf32>
    %cst_391 = arith.constant 1.000000e+00 : f32
    %808 = vector.broadcast %cst_391 : f32 to vector<8x16xf32>
    %809 = arith.divf %808, %807 : vector<8x16xf32>
    %810 = arith.mulf %799, %781 : vector<8x16xf32>
    %811 = arith.mulf %791, %801 : vector<8x16xf32>
    %812 = arith.addf %810, %811 : vector<8x16xf32>
    %813 = math.tanh %812 : vector<8x16xf32>
    %814 = arith.mulf %809, %813 : vector<8x16xf32>
    %815 = vector.shape_cast %783 : vector<8x1xi1> to vector<8x1xi1>
    %816 = vector.broadcast %815 : vector<8x1xi1> to vector<8x16xi1>
    %817 = arith.select %816, %814, %780 : vector<8x16xi1>, vector<8x16xf32>
    %818 = vector.shape_cast %783 : vector<8x1xi1> to vector<8x1xi1>
    %819 = vector.broadcast %818 : vector<8x1xi1> to vector<8x16xi1>
    %820 = arith.select %819, %812, %781 : vector<8x16xi1>, vector<8x16xf32>
    %cst_392 = arith.constant 0.000000e+00 : f32
    %821 = vector.shape_cast %783 : vector<8x1xi1> to vector<8x1xi1>
    %822 = vector.broadcast %821 : vector<8x1xi1> to vector<8x16xi1>
    %823 = vector.broadcast %cst_392 : f32 to vector<8x16xf32>
    %824 = arith.select %822, %814, %823 : vector<8x16xi1>, vector<8x16xf32>
    %c0_393 = arith.constant 0 : index
    %c0_394 = arith.constant 0 : index
    %825 = vector.load %arg10[%c0_393, %c0_394] : memref<8x16xf32, #tpu.memory_space<vmem>>, vector<8x16xf32>
    tpu.vector_store %arg10[%c0_393, %c0_394], %772 {strides = array<i32>} : memref<8x16xf32, #tpu.memory_space<vmem>>, vector<8x16xf32>,
    %c0_395 = arith.constant 0 : index
    %c0_396 = arith.constant 0 : index
    %826 = vector.load %arg11[%c0_395, %c0_396] : memref<8x16xf32, #tpu.memory_space<vmem>>, vector<8x16xf32>
    tpu.vector_store %arg11[%c0_395, %c0_396], %775 {strides = array<i32>} : memref<8x16xf32, #tpu.memory_space<vmem>>, vector<8x16xf32>,
    %c0_397 = arith.constant 0 : index
    %c0_398 = arith.constant 0 : index
    %827 = vector.load %arg12[%c0_397, %c0_398] : memref<8x16xf32, #tpu.memory_space<vmem>>, vector<8x16xf32>
    tpu.vector_store %arg12[%c0_397, %c0_398], %817 {strides = array<i32>} : memref<8x16xf32, #tpu.memory_space<vmem>>, vector<8x16xf32>,
    %c0_399 = arith.constant 0 : index
    %c0_400 = arith.constant 0 : index
    %828 = vector.load %arg13[%c0_399, %c0_400] : memref<8x16xf32, #tpu.memory_space<vmem>>, vector<8x16xf32>
    tpu.vector_store %arg13[%c0_399, %c0_400], %820 {strides = array<i32>} : memref<8x16xf32, #tpu.memory_space<vmem>>, vector<8x16xf32>,
    %829 = arith.index_cast %c6_i32 : i32 to index
    %c0_401 = arith.constant 0 : index
    %c0_402 = arith.constant 0 : index
    %830 = vector.load %arg7[%829, %c0_401, %c0_402] : memref<8x8x32xf32, #tpu.memory_space<vmem>>, vector<1x8x16xf32>
    %831 = vector.shape_cast %830 : vector<1x8x16xf32> to vector<8x16xf32>
    %832 = vector.shape_cast %779 : vector<8x16xf32> to vector<1x8x16xf32>
    tpu.vector_store %arg7[%829, %c0_401, %c0_402], %832 {strides = array<i32>} : memref<8x8x32xf32, #tpu.memory_space<vmem>>, vector<1x8x16xf32>,
    %833 = arith.index_cast %720 : i32 to index
    %c0_403 = arith.constant 0 : index
    %c16_404 = arith.constant 16 : index
    %834 = vector.load %arg7[%833, %c0_403, %c16_404] : memref<8x8x32xf32, #tpu.memory_space<vmem>>, vector<1x8x16xf32>
    %835 = vector.shape_cast %834 : vector<1x8x16xf32> to vector<8x16xf32>
    %836 = vector.shape_cast %824 : vector<8x16xf32> to vector<1x8x16xf32>
    tpu.vector_store %arg7[%833, %c0_403, %c16_404], %836 {strides = array<i32>} : memref<8x8x32xf32, #tpu.memory_space<vmem>>, vector<1x8x16xf32>,
    %c7_i32_405 = arith.constant 7 : i32
    %c7_i32_406 = arith.constant 7 : i32
    %837 = arith.subi %c7_i32_406, %c7_i32_405 : i32
    %838 = arith.index_cast %c7_i32_405 : i32 to index
    %c0_407 = arith.constant 0 : index
    %c0_408 = arith.constant 0 : index
    %839 = vector.load %arg9[%838, %c0_407, %c0_408] : memref<8x8x128xf32, #tpu.memory_space<vmem>>, vector<1x8x64xf32>
    %840 = vector.shape_cast %839 : vector<1x8x64xf32> to vector<8x64xf32>
    %c0_409 = arith.constant 0 : index
    %c0_410 = arith.constant 0 : index
    %841 = vector.load %arg10[%c0_409, %c0_410] : memref<8x16xf32, #tpu.memory_space<vmem>>, vector<8x16xf32>
    %c0_411 = arith.constant 0 : index
    %c0_412 = arith.constant 0 : index
    %842 = vector.load %arg4[%c0_411, %c0_412] : memref<16x64xf32, #tpu.memory_space<vmem>>, vector<16x64xf32>
    %cst_413 = arith.constant dense<0.000000e+00> : vector<8x64xf32>
    %843 = tpu.matmul %841, %842, %cst_413 {dimension_numbers = #tpu.dot_dimension_numbers<[1], [0], [0], [1], [0, 0, 1, 1], [], []>} : vector<8x16xf32>, vector<16x64xf32>, vector<8x64xf32> -> vector<8x64xf32>
    %844 = arith.addf %840, %843 : vector<8x64xf32>
    %845 = arith.index_cast %837 : i32 to index
    %c0_414 = arith.constant 0 : index
    %c64_415 = arith.constant 64 : index
    %846 = vector.load %arg9[%845, %c0_414, %c64_415] : memref<8x8x128xf32, #tpu.memory_space<vmem>>, vector<1x8x64xf32>
    %847 = vector.shape_cast %846 : vector<1x8x64xf32> to vector<8x64xf32>
    %c0_416 = arith.constant 0 : index
    %c0_417 = arith.constant 0 : index
    %848 = vector.load %arg12[%c0_416, %c0_417] : memref<8x16xf32, #tpu.memory_space<vmem>>, vector<8x16xf32>
    %c0_418 = arith.constant 0 : index
    %c0_419 = arith.constant 0 : index
    %849 = vector.load %arg5[%c0_418, %c0_419] : memref<16x64xf32, #tpu.memory_space<vmem>>, vector<16x64xf32>
    %cst_420 = arith.constant dense<0.000000e+00> : vector<8x64xf32>
    %850 = tpu.matmul %848, %849, %cst_420 {dimension_numbers = #tpu.dot_dimension_numbers<[1], [0], [0], [1], [0, 0, 1, 1], [], []>} : vector<8x16xf32>, vector<16x64xf32>, vector<8x64xf32> -> vector<8x64xf32>
    %851 = arith.addf %847, %850 : vector<8x64xf32>
    %c0_421 = arith.constant 0 : index
    %c0_422 = arith.constant 0 : index
    %852 = vector.load %arg10[%c0_421, %c0_422] : memref<8x16xf32, #tpu.memory_space<vmem>>, vector<8x16xf32>
    %c0_423 = arith.constant 0 : index
    %c0_424 = arith.constant 0 : index
    %853 = vector.load %arg11[%c0_423, %c0_424] : memref<8x16xf32, #tpu.memory_space<vmem>>, vector<8x16xf32>
    %854 = vector.broadcast %c7_i32_405 : i32 to vector<8x1xi32>
    %855 = arith.cmpi slt, %854, %9 : vector<8x1xi32>
    %856 = vector.extract_strided_slice %844 {offsets = [0, 0], sizes = [8, 16], strides = [1, 1]} : vector<8x64xf32> to vector<8x16xf32>
    %cst_425 = arith.constant 0.000000e+00 : f32
    %857 = vector.broadcast %cst_425 : f32 to vector<8x16xf32>
    %858 = arith.subf %857, %856 : vector<8x16xf32>
    %859 = math.exp %858 : vector<8x16xf32>
    %cst_426 = arith.constant 1.000000e+00 : f32
    %860 = vector.broadcast %cst_426 : f32 to vector<8x16xf32>
    %861 = arith.addf %860, %859 : vector<8x16xf32>
    %cst_427 = arith.constant 1.000000e+00 : f32
    %862 = vector.broadcast %cst_427 : f32 to vector<8x16xf32>
    %863 = arith.divf %862, %861 : vector<8x16xf32>
    %864 = vector.extract_strided_slice %844 {offsets = [0, 16], sizes = [8, 16], strides = [1, 1]} : vector<8x64xf32> to vector<8x16xf32>
    %cst_428 = arith.constant 0.000000e+00 : f32
    %865 = vector.broadcast %cst_428 : f32 to vector<8x16xf32>
    %866 = arith.subf %865, %864 : vector<8x16xf32>
    %867 = math.exp %866 : vector<8x16xf32>
    %cst_429 = arith.constant 1.000000e+00 : f32
    %868 = vector.broadcast %cst_429 : f32 to vector<8x16xf32>
    %869 = arith.addf %868, %867 : vector<8x16xf32>
    %cst_430 = arith.constant 1.000000e+00 : f32
    %870 = vector.broadcast %cst_430 : f32 to vector<8x16xf32>
    %871 = arith.divf %870, %869 : vector<8x16xf32>
    %872 = vector.extract_strided_slice %844 {offsets = [0, 32], sizes = [8, 16], strides = [1, 1]} : vector<8x64xf32> to vector<8x16xf32>
    %873 = math.tanh %872 : vector<8x16xf32>
    %874 = vector.extract_strided_slice %844 {offsets = [0, 48], sizes = [8, 16], strides = [1, 1]} : vector<8x64xf32> to vector<8x16xf32>
    %cst_431 = arith.constant 0.000000e+00 : f32
    %875 = vector.broadcast %cst_431 : f32 to vector<8x16xf32>
    %876 = arith.subf %875, %874 : vector<8x16xf32>
    %877 = math.exp %876 : vector<8x16xf32>
    %cst_432 = arith.constant 1.000000e+00 : f32
    %878 = vector.broadcast %cst_432 : f32 to vector<8x16xf32>
    %879 = arith.addf %878, %877 : vector<8x16xf32>
    %cst_433 = arith.constant 1.000000e+00 : f32
    %880 = vector.broadcast %cst_433 : f32 to vector<8x16xf32>
    %881 = arith.divf %880, %879 : vector<8x16xf32>
    %882 = arith.mulf %871, %853 : vector<8x16xf32>
    %883 = arith.mulf %863, %873 : vector<8x16xf32>
    %884 = arith.addf %882, %883 : vector<8x16xf32>
    %885 = math.tanh %884 : vector<8x16xf32>
    %886 = arith.mulf %881, %885 : vector<8x16xf32>
    %887 = vector.shape_cast %855 : vector<8x1xi1> to vector<8x1xi1>
    %888 = vector.broadcast %887 : vector<8x1xi1> to vector<8x16xi1>
    %889 = arith.select %888, %886, %852 : vector<8x16xi1>, vector<8x16xf32>
    %890 = vector.shape_cast %855 : vector<8x1xi1> to vector<8x1xi1>
    %891 = vector.broadcast %890 : vector<8x1xi1> to vector<8x16xi1>
    %892 = arith.select %891, %884, %853 : vector<8x16xi1>, vector<8x16xf32>
    %cst_434 = arith.constant 0.000000e+00 : f32
    %893 = vector.shape_cast %855 : vector<8x1xi1> to vector<8x1xi1>
    %894 = vector.broadcast %893 : vector<8x1xi1> to vector<8x16xi1>
    %895 = vector.broadcast %cst_434 : f32 to vector<8x16xf32>
    %896 = arith.select %894, %886, %895 : vector<8x16xi1>, vector<8x16xf32>
    %c0_435 = arith.constant 0 : index
    %c0_436 = arith.constant 0 : index
    %897 = vector.load %arg12[%c0_435, %c0_436] : memref<8x16xf32, #tpu.memory_space<vmem>>, vector<8x16xf32>
    %c0_437 = arith.constant 0 : index
    %c0_438 = arith.constant 0 : index
    %898 = vector.load %arg13[%c0_437, %c0_438] : memref<8x16xf32, #tpu.memory_space<vmem>>, vector<8x16xf32>
    %899 = vector.broadcast %837 : i32 to vector<8x1xi32>
    %900 = arith.cmpi slt, %899, %9 : vector<8x1xi32>
    %901 = vector.extract_strided_slice %851 {offsets = [0, 0], sizes = [8, 16], strides = [1, 1]} : vector<8x64xf32> to vector<8x16xf32>
    %cst_439 = arith.constant 0.000000e+00 : f32
    %902 = vector.broadcast %cst_439 : f32 to vector<8x16xf32>
    %903 = arith.subf %902, %901 : vector<8x16xf32>
    %904 = math.exp %903 : vector<8x16xf32>
    %cst_440 = arith.constant 1.000000e+00 : f32
    %905 = vector.broadcast %cst_440 : f32 to vector<8x16xf32>
    %906 = arith.addf %905, %904 : vector<8x16xf32>
    %cst_441 = arith.constant 1.000000e+00 : f32
    %907 = vector.broadcast %cst_441 : f32 to vector<8x16xf32>
    %908 = arith.divf %907, %906 : vector<8x16xf32>
    %909 = vector.extract_strided_slice %851 {offsets = [0, 16], sizes = [8, 16], strides = [1, 1]} : vector<8x64xf32> to vector<8x16xf32>
    %cst_442 = arith.constant 0.000000e+00 : f32
    %910 = vector.broadcast %cst_442 : f32 to vector<8x16xf32>
    %911 = arith.subf %910, %909 : vector<8x16xf32>
    %912 = math.exp %911 : vector<8x16xf32>
    %cst_443 = arith.constant 1.000000e+00 : f32
    %913 = vector.broadcast %cst_443 : f32 to vector<8x16xf32>
    %914 = arith.addf %913, %912 : vector<8x16xf32>
    %cst_444 = arith.constant 1.000000e+00 : f32
    %915 = vector.broadcast %cst_444 : f32 to vector<8x16xf32>
    %916 = arith.divf %915, %914 : vector<8x16xf32>
    %917 = vector.extract_strided_slice %851 {offsets = [0, 32], sizes = [8, 16], strides = [1, 1]} : vector<8x64xf32> to vector<8x16xf32>
    %918 = math.tanh %917 : vector<8x16xf32>
    %919 = vector.extract_strided_slice %851 {offsets = [0, 48], sizes = [8, 16], strides = [1, 1]} : vector<8x64xf32> to vector<8x16xf32>
    %cst_445 = arith.constant 0.000000e+00 : f32
    %920 = vector.broadcast %cst_445 : f32 to vector<8x16xf32>
    %921 = arith.subf %920, %919 : vector<8x16xf32>
    %922 = math.exp %921 : vector<8x16xf32>
    %cst_446 = arith.constant 1.000000e+00 : f32
    %923 = vector.broadcast %cst_446 : f32 to vector<8x16xf32>
    %924 = arith.addf %923, %922 : vector<8x16xf32>
    %cst_447 = arith.constant 1.000000e+00 : f32
    %925 = vector.broadcast %cst_447 : f32 to vector<8x16xf32>
    %926 = arith.divf %925, %924 : vector<8x16xf32>
    %927 = arith.mulf %916, %898 : vector<8x16xf32>
    %928 = arith.mulf %908, %918 : vector<8x16xf32>
    %929 = arith.addf %927, %928 : vector<8x16xf32>
    %930 = math.tanh %929 : vector<8x16xf32>
    %931 = arith.mulf %926, %930 : vector<8x16xf32>
    %932 = vector.shape_cast %900 : vector<8x1xi1> to vector<8x1xi1>
    %933 = vector.broadcast %932 : vector<8x1xi1> to vector<8x16xi1>
    %934 = arith.select %933, %931, %897 : vector<8x16xi1>, vector<8x16xf32>
    %935 = vector.shape_cast %900 : vector<8x1xi1> to vector<8x1xi1>
    %936 = vector.broadcast %935 : vector<8x1xi1> to vector<8x16xi1>
    %937 = arith.select %936, %929, %898 : vector<8x16xi1>, vector<8x16xf32>
    %cst_448 = arith.constant 0.000000e+00 : f32
    %938 = vector.shape_cast %900 : vector<8x1xi1> to vector<8x1xi1>
    %939 = vector.broadcast %938 : vector<8x1xi1> to vector<8x16xi1>
    %940 = vector.broadcast %cst_448 : f32 to vector<8x16xf32>
    %941 = arith.select %939, %931, %940 : vector<8x16xi1>, vector<8x16xf32>
    %c0_449 = arith.constant 0 : index
    %c0_450 = arith.constant 0 : index
    %942 = vector.load %arg10[%c0_449, %c0_450] : memref<8x16xf32, #tpu.memory_space<vmem>>, vector<8x16xf32>
    tpu.vector_store %arg10[%c0_449, %c0_450], %889 {strides = array<i32>} : memref<8x16xf32, #tpu.memory_space<vmem>>, vector<8x16xf32>,
    %c0_451 = arith.constant 0 : index
    %c0_452 = arith.constant 0 : index
    %943 = vector.load %arg11[%c0_451, %c0_452] : memref<8x16xf32, #tpu.memory_space<vmem>>, vector<8x16xf32>
    tpu.vector_store %arg11[%c0_451, %c0_452], %892 {strides = array<i32>} : memref<8x16xf32, #tpu.memory_space<vmem>>, vector<8x16xf32>,
    %c0_453 = arith.constant 0 : index
    %c0_454 = arith.constant 0 : index
    %944 = vector.load %arg12[%c0_453, %c0_454] : memref<8x16xf32, #tpu.memory_space<vmem>>, vector<8x16xf32>
    tpu.vector_store %arg12[%c0_453, %c0_454], %934 {strides = array<i32>} : memref<8x16xf32, #tpu.memory_space<vmem>>, vector<8x16xf32>,
    %c0_455 = arith.constant 0 : index
    %c0_456 = arith.constant 0 : index
    %945 = vector.load %arg13[%c0_455, %c0_456] : memref<8x16xf32, #tpu.memory_space<vmem>>, vector<8x16xf32>
    tpu.vector_store %arg13[%c0_455, %c0_456], %937 {strides = array<i32>} : memref<8x16xf32, #tpu.memory_space<vmem>>, vector<8x16xf32>,
    %946 = arith.index_cast %c7_i32_405 : i32 to index
    %c0_457 = arith.constant 0 : index
    %c0_458 = arith.constant 0 : index
    %947 = vector.load %arg7[%946, %c0_457, %c0_458] : memref<8x8x32xf32, #tpu.memory_space<vmem>>, vector<1x8x16xf32>
    %948 = vector.shape_cast %947 : vector<1x8x16xf32> to vector<8x16xf32>
    %949 = vector.shape_cast %896 : vector<8x16xf32> to vector<1x8x16xf32>
    tpu.vector_store %arg7[%946, %c0_457, %c0_458], %949 {strides = array<i32>} : memref<8x8x32xf32, #tpu.memory_space<vmem>>, vector<1x8x16xf32>,
    %950 = arith.index_cast %837 : i32 to index
    %c0_459 = arith.constant 0 : index
    %c16_460 = arith.constant 16 : index
    %951 = vector.load %arg7[%950, %c0_459, %c16_460] : memref<8x8x32xf32, #tpu.memory_space<vmem>>, vector<1x8x16xf32>
    %952 = vector.shape_cast %951 : vector<1x8x16xf32> to vector<8x16xf32>
    %953 = vector.shape_cast %941 : vector<8x16xf32> to vector<1x8x16xf32>
    tpu.vector_store %arg7[%950, %c0_459, %c16_460], %953 {strides = array<i32>} : memref<8x8x32xf32, #tpu.memory_space<vmem>>, vector<1x8x16xf32>,
    %c8_i32 = arith.constant 8 : i32
    %c0_461 = arith.constant 0 : index
    %c0_462 = arith.constant 0 : index
    %954 = vector.load %arg10[%c0_461, %c0_462] : memref<8x16xf32, #tpu.memory_space<vmem>>, vector<8x16xf32>
    %c0_463 = arith.constant 0 : index
    %c0_464 = arith.constant 0 : index
    %955 = vector.load %arg8[%c0_463, %c0_464] : memref<8x32xf32, #tpu.memory_space<vmem>>, vector<8x16xf32>
    tpu.vector_store %arg8[%c0_463, %c0_464], %954 {strides = array<i32>} : memref<8x32xf32, #tpu.memory_space<vmem>>, vector<8x16xf32>,
    %c0_465 = arith.constant 0 : index
    %c0_466 = arith.constant 0 : index
    %956 = vector.load %arg12[%c0_465, %c0_466] : memref<8x16xf32, #tpu.memory_space<vmem>>, vector<8x16xf32>
    %c0_467 = arith.constant 0 : index
    %c16_468 = arith.constant 16 : index
    %957 = vector.load %arg8[%c0_467, %c16_468] : memref<8x32xf32, #tpu.memory_space<vmem>>, vector<8x16xf32>
    tpu.vector_store %arg8[%c0_467, %c16_468], %956 {strides = array<i32>} : memref<8x32xf32, #tpu.memory_space<vmem>>, vector<8x16xf32>,
    return
  }
  func.func @transform_0(%arg0: i32) -> (i32, i32) {
    %c0_i32 = arith.constant 0 : i32
    %c0_i32_0 = arith.constant 0 : i32
    return %arg0, %c0_i32 : i32, i32
  }
  func.func @transform_1(%arg0: i32) -> (i32, i32, i32) {
    %c0_i32 = arith.constant 0 : i32
    %c0_i32_0 = arith.constant 0 : i32
    %c0_i32_1 = arith.constant 0 : i32
    return %c0_i32, %arg0, %c0_i32_0 : i32, i32, i32
  }
  func.func @transform_2(%arg0: i32) -> (i32, i32) {
    %c0_i32 = arith.constant 0 : i32
    %c0_i32_0 = arith.constant 0 : i32
    %c0_i32_1 = arith.constant 0 : i32
    return %c0_i32, %c0_i32_0 : i32, i32
  }
  func.func @transform_3(%arg0: i32) -> (i32, i32) {
    %c0_i32 = arith.constant 0 : i32
    %c0_i32_0 = arith.constant 0 : i32
    %c0_i32_1 = arith.constant 0 : i32
    return %c0_i32, %c0_i32_0 : i32, i32
  }
  func.func @transform_4(%arg0: i32) -> (i32, i32) {
    %c0_i32 = arith.constant 0 : i32
    %c0_i32_0 = arith.constant 0 : i32
    %c0_i32_1 = arith.constant 0 : i32
    return %c0_i32, %c0_i32_0 : i32, i32
  }
  func.func @transform_5(%arg0: i32) -> (i32, i32) {
    %c0_i32 = arith.constant 0 : i32
    %c0_i32_0 = arith.constant 0 : i32
    %c0_i32_1 = arith.constant 0 : i32
    return %c0_i32, %c0_i32_0 : i32, i32
  }
  func.func @transform_6(%arg0: i32) -> (i32, i32, i32) {
    %c0_i32 = arith.constant 0 : i32
    %c0_i32_0 = arith.constant 0 : i32
    %c0_i32_1 = arith.constant 0 : i32
    return %c0_i32, %arg0, %c0_i32_0 : i32, i32, i32
  }
  func.func @transform_7(%arg0: i32) -> (i32, i32) {
    %c0_i32 = arith.constant 0 : i32
    %c0_i32_0 = arith.constant 0 : i32
    return %arg0, %c0_i32 : i32, i32
  }
}

</mosaic_0001>

<llo_original>
// kernel: tpu_custom_call.1
$region0: #{tpu_custom_call.1}
  #allocation0 [shape = 'u32[]', space=smem, size = 0x4, offset = 0x4, fixed_abs, tag = 'smem constant byte address 0x4 - core index']
  #allocation1 [shape = 'u32[144,128]{1,0:T(1,128)}', space=vmem, size = 0x12000, scoped, tag = 'internal scratch']
  #allocation2 [shape = 'f32[8,8,128]{2,1,0:T(8,128)}', space=vmem, size = 0x8000, scoped, tag = 'scratch operand']
  #allocation3 [shape = 'f32[8,16]{1,0:T(8,128)}', space=vmem, size = 0x1000, scoped, tag = 'scratch operand']
  #allocation4 [shape = 'f32[8,16]{1,0:T(8,128)}', space=vmem, size = 0x1000, scoped, tag = 'scratch operand']
  #allocation5 [shape = 'f32[8,16]{1,0:T(8,128)}', space=vmem, size = 0x1000, scoped, tag = 'scratch operand']
  #allocation6 [shape = 'f32[8,16]{1,0:T(8,128)}', space=vmem, size = 0x1000, scoped, tag = 'scratch operand']
  %s0 = inlined_call_operand.vmem [shape: s32[8,1], index: 0, kind: input, shape index: {}]
  %s1 = inlined_call_operand.hbm [shape: f32[8,8,32], index: 1, kind: input, shape index: {}]
  %s2 = inlined_call_operand.hbm [shape: f32[32,128], index: 2, kind: input, shape index: {}]
  %s3 = inlined_call_operand.vmem [shape: f32[16,64], index: 3, kind: input, shape index: {}]
  %s4 = inlined_call_operand.hbm [shape: f32[16,64], index: 4, kind: input, shape index: {}]
  %s5 = inlined_call_operand.vmem [shape: f32[1,128], index: 5, kind: input, shape index: {}]
  %s6 = inlined_call_operand.hbm [shape: f32[8,8,32], index: 6, kind: output, shape index: {0}]
  %s7 = inlined_call_operand.hbm [shape: f32[8,32], index: 7, kind: output, shape index: {1}]
  %8 = xla_tuple %s6, %s7
  %s9 = sld [smem:[#allocation0]]
  $region54: #{tpu_custom_call.1} parent=0
    _
  %s11 = ssub.s32 1, %s9
  %s12 = scalar_select 0, %s11, %s9
  $region1: #{tpu_custom_call.1} parent=0
    #allocation7 [shape = 'u8[32768]{0}', space=vmem, size = 0x8000, scoped, tag = 'input window, operand 1, single buffered']
    #allocation8 [shape = 's32[1]{0}', space=sflag, size = 0x4, scoped, tag = 'scoped memory for tpu_custom_call.1']
    #allocation9 [shape = 's32[1]{0}', space=sflag, size = 0x4, scoped, tag = 'scoped memory for tpu_custom_call.1']
    #allocation10 [shape = 'u8[16384]{0}', space=vmem, size = 0x4000, scoped, tag = 'input window, operand 2, single buffered']
    #allocation11 [shape = 's32[1]{0}', space=sflag, size = 0x4, scoped, tag = 'scoped memory for tpu_custom_call.1']
    #allocation12 [shape = 'u8[8192]{0}', space=vmem, size = 0x2000, scoped, tag = 'input window, operand 4, single buffered']
    #allocation13 [shape = 'u8[32768]{0}', space=vmem, size = 0x8000, scoped, tag = 'output window, operand 0, single buffered']
    #allocation14 [shape = 'u8[4096]{0}', space=vmem, size = 0x1000, scoped, tag = 'output window, operand 1, single buffered']
    #allocation15 [shape = 's32[1]{0}', space=sflag, size = 0x4, scoped, tag = 'scoped memory for tpu_custom_call.1']
    %13 = vsyncpa [#allocation8], 0
    %14 = vsyncpa [#allocation11], 0
    %15 = vsyncpa [#allocation9], 0
    %16 = vsyncpa [#allocation15], 0
    // Predicated region
    $region2: #{tpu_custom_call.1} parent=1 // pred_check
      _
    $region3: #{tpu_custom_call.1} parent=1 // pred_check_branch
      %18 = sbr.rel (0) target = $region5
    $region4: #{tpu_custom_call.1} parent=1 // pred_region
      _
    $region5: #{tpu_custom_call.1} parent=1 // pred_fallthru
      _
    // Predicated region
    $region6: #{tpu_custom_call.1} parent=1 // pred_check
      _
    $region7: #{tpu_custom_call.1} parent=1 // pred_check_branch
      %20 = sbr.rel (0) target = $region9
    $region8: #{tpu_custom_call.1} parent=1 // pred_region
      %s22 = ssub.s32 1024, 1024
      %23 = vsyncadd [#allocation8], %s22
      %s24 = sshll.u32 [#allocation7], 4
      %s25 = int_to_ptr.vmem [resolvable:$true] %s24
      %30 = dma.hbm_to_vmem [thread:$0]  %s1, 1024, %s25, [#allocation8], 128, 128, 8
    $region9: #{tpu_custom_call.1} parent=1 // pred_fallthru
      _
    // Predicated region
    $region10: #{tpu_custom_call.1} parent=1 // pred_check
      _
    $region11: #{tpu_custom_call.1} parent=1 // pred_check_branch
      %32 = sbr.rel (0) target = $region13
    $region12: #{tpu_custom_call.1} parent=1 // pred_region
      %s34 = ssub.s32 512, 512
      %35 = vsyncadd [#allocation11], %s34
      %s36 = sshll.u32 [#allocation10], 4
      %s37 = int_to_ptr.vmem [resolvable:$true] %s36
      %42 = dma.hbm_to_vmem [thread:$0]  %s2, 512, %s37, [#allocation11], 128, 128, 8
    $region13: #{tpu_custom_call.1} parent=1 // pred_fallthru
      _
    // Predicated region
    $region14: #{tpu_custom_call.1} parent=1 // pred_check
      _
    $region15: #{tpu_custom_call.1} parent=1 // pred_check_branch
      %44 = sbr.rel (0) target = $region17
    $region16: #{tpu_custom_call.1} parent=1 // pred_region
      _
    $region17: #{tpu_custom_call.1} parent=1 // pred_fallthru
      _
    // Predicated region
    $region18: #{tpu_custom_call.1} parent=1 // pred_check
      _
    $region19: #{tpu_custom_call.1} parent=1 // pred_check_branch
      %46 = sbr.rel (0) target = $region21
    $region20: #{tpu_custom_call.1} parent=1 // pred_region
      %s48 = ssub.s32 256, 256
      %49 = vsyncadd [#allocation11], %s48
      %s50 = sshll.u32 [#allocation12], 4
      %s51 = int_to_ptr.vmem [resolvable:$true] %s50
      %56 = dma.hbm_to_vmem [thread:$0]  %s4, 256, %s51, [#allocation11], 128, 128, 8
    $region21: #{tpu_custom_call.1} parent=1 // pred_fallthru
      _
    // Predicated region
    $region22: #{tpu_custom_call.1} parent=1 // pred_check
      _
    $region23: #{tpu_custom_call.1} parent=1 // pred_check_branch
      %58 = sbr.rel (0) target = $region25
    $region24: #{tpu_custom_call.1} parent=1 // pred_region
      _
    $region25: #{tpu_custom_call.1} parent=1 // pred_fallthru
      _
    // Predicated region
    $region26: #{tpu_custom_call.1} parent=1 // pred_check
      _
    $region27: #{tpu_custom_call.1} parent=1 // pred_check_branch
      %60 = sbr.rel (0) target = $region29
    $region28: #{tpu_custom_call.1} parent=1 // pred_region
      %61 = dma.done [#allocation8], 1024
    $region29: #{tpu_custom_call.1} parent=1 // pred_fallthru
      _
    // Predicated region
    $region30: #{tpu_custom_call.1} parent=1 // pred_check
      _
    $region31: #{tpu_custom_call.1} parent=1 // pred_check_branch
      %63 = sbr.rel (0) target = $region33
    $region32: #{tpu_custom_call.1} parent=1 // pred_region
      %64 = dma.done [#allocation11], 512
    $region33: #{tpu_custom_call.1} parent=1 // pred_fallthru
      _
    // Predicated region
    $region34: #{tpu_custom_call.1} parent=1 // pred_check
      _
    $region35: #{tpu_custom_call.1} parent=1 // pred_check_branch
      %66 = sbr.rel (0) target = $region37
    $region36: #{tpu_custom_call.1} parent=1 // pred_region
      %67 = dma.done [#allocation11], 256
    $region37: #{tpu_custom_call.1} parent=1 // pred_fallthru
      _
    %v68 = vld [vmem:[#allocation7] sm:$0xff]
    %v69 = vld [vmem:[#allocation7 + $0x8] sm:$0xff]
    %v70 = vld [vmem:[#allocation7 + $0x10] sm:$0xff]
    %v71 = vld [vmem:[#allocation7 + $0x18] sm:$0xff]
    %v72 = vld [vmem:[#allocation7 + $0x20] sm:$0xff]
    %v73 = vld [vmem:[#allocation7 + $0x28] sm:$0xff]
    %v74 = vld [vmem:[#allocation7 + $0x30] sm:$0xff]
    %v75 = vld [vmem:[#allocation7 + $0x38] sm:$0xff]
    %v76 = vld [vmem:[#allocation10] sm:$0xff]
    %v77 = vld [vmem:[#allocation10 + $0x8] sm:$0xff]
    %v78 = vld [vmem:[#allocation10 + $0x10] sm:$0xff]
    %v79 = vld [vmem:[#allocation10 + $0x18] sm:$0xff]
    %v80 = vld [vmem:[%s5] sm:$0x1]
    %v82 = vlaneseq
    %v83 = vshrl.u32 %v82, 7
    %v84 = vsub.s32 0, %v83
    %v85 = vrot.slane %v80, %v84
    %vm87 = vcmask 261120
    %v89 = vsel %vm87, %v68, 0
    %v92 = vsel %vm87, %v69, 0
    %v95 = vsel %vm87, %v70, 0
    %v98 = vsel %vm87, %v71, 0
    %v101 = vsel %vm87, %v72, 0
    %v104 = vsel %vm87, %v73, 0
    %v107 = vsel %vm87, %v74, 0
    %v110 = vsel %vm87, %v75, 0
    %112 = vmatprep.subr.mxu0 0.0
    %113 = vmatpush1.msra.mxu0 %v76
    %114 = vmatprep.subr.mxu0 0.0
    %115 = vmatpush1.msra.mxu0 %v77
    %116 = vmatprep.subr.mxu0 0.0
    %117 = vmatpush1.msra.mxu0 %v78
    %118 = vmatprep.subr.mxu0 0.0
    %119 = vmatpush1.msra.mxu0 %v79
    %120 = vmatprep.subr.mxu0 0.0
    %121 = vmatpush1.msra.mxu0 0.0
    %122 = vmatprep.subr.mxu0 0.0
    %123 = vmatpush1.msra.mxu0 0.0
    %124 = vmatprep.subr.mxu0 0.0
    %125 = vmatpush1.msra.mxu0 0.0
    %126 = vmatprep.subr.mxu0 0.0
    %127 = vmatpush1.msra.mxu0 0.0
    %128 = vmatprep.subr.mxu0 0.0
    %129 = vmatpush1.msra.mxu0 0.0
    %130 = vmatprep.subr.mxu0 0.0
    %131 = vmatpush1.msra.mxu0 0.0
    %132 = vmatprep.subr.mxu0 0.0
    %133 = vmatpush1.msra.mxu0 0.0
    %134 = vmatprep.subr.mxu0 0.0
    %135 = vmatpush1.msra.mxu0 0.0
    %136 = vmatprep.subr.mxu0 0.0
    %137 = vmatpush1.msra.mxu0 0.0
    %138 = vmatprep.subr.mxu0 0.0
    %139 = vmatpush1.msra.mxu0 0.0
    %140 = vmatprep.subr.mxu0 0.0
    %141 = vmatpush1.msra.mxu0 0.0
    %142 = vmatprep.subr.mxu0 0.0
    %143 = vmatpush1.msra.mxu0 0.0
    %144 = vmatprep.subr.mxu0 0.0
    %145 = vmatpush1.msra.mxu0 0.0
    %146 = vmatprep.subr.mxu0 0.0
    %147 = vmatpush1.msra.mxu0 0.0
    %148 = vmatprep.subr.mxu0 0.0
    %149 = vmatpush1.msra.mxu0 0.0
    %150 = vmatprep.subr.mxu0 0.0
    %151 = vmatpush1.msra.mxu0 0.0
    %152 = vmatprep.subr.mxu0 0.0
    %153 = vmatpush1.msra.mxu0 0.0
    %154 = vmatprep.subr.mxu0 0.0
    %155 = vmatpush1.msra.mxu0 0.0
    %156 = vmatprep.subr.mxu0 0.0
    %157 = vmatpush1.msra.mxu0 0.0
    %158 = vmatprep.subr.mxu0 0.0
    %159 = vmatpush1.msra.mxu0 0.0
    %160 = vmatprep.subr.mxu0 0.0
    %161 = vmatpush1.msra.mxu0 0.0
    %162 = vmatprep.subr.mxu0 0.0
    %163 = vmatpush1.msra.mxu0 0.0
    %164 = vmatprep.subr.mxu0 0.0
    %165 = vmatpush1.msra.mxu0 0.0
    %166 = vmatprep.subr.mxu0 0.0
    %167 = vmatpush1.msra.mxu0 0.0
    %168 = vmatprep.subr.mxu0 0.0
    %169 = vmatpush1.msra.mxu0 0.0
    %170 = vmatprep.subr.mxu0 0.0
    %171 = vmatpush1.msra.mxu0 0.0
    %172 = vmatprep.subr.mxu0 0.0
    %173 = vmatpush1.msra.mxu0 0.0
    %174 = vmatprep.subr.mxu0 0.0
    %175 = vmatpush1.msra.mxu0 0.0
    %176 = vmatprep.mubr.f32.mxu0 0.0
    %177 = vmatmul.mubr.f32.gmra.mrb[0].mxu0 %v89
    %v178 = vpop.f32.mrb[0].mxu0
    %v179 = vadd.f32 %v85, %v178
    %v180 = vpop.f32.mrb[0].mxu0
    %181 = vmatprep.mubr.f32.mxu0 0.0
    %182 = vmatmul.mubr.f32.gmra.mrb[0].mxu0 %v92
    %v183 = vpop.f32.mrb[0].mxu0
    %v184 = vadd.f32 %v85, %v183
    %v185 = vpop.f32.mrb[0].mxu0
    %186 = vmatprep.mubr.f32.mxu0 0.0
    %187 = vmatmul.mubr.f32.gmra.mrb[0].mxu0 %v95
    %v188 = vpop.f32.mrb[0].mxu0
    %v189 = vadd.f32 %v85, %v188
    %v190 = vpop.f32.mrb[0].mxu0
    %191 = vmatprep.mubr.f32.mxu0 0.0
    %192 = vmatmul.mubr.f32.gmra.mrb[0].mxu0 %v98
    %v193 = vpop.f32.mrb[0].mxu0
    %v194 = vadd.f32 %v85, %v193
    %v195 = vpop.f32.mrb[0].mxu0
    %196 = vmatprep.mubr.f32.mxu0 0.0
    %197 = vmatmul.mubr.f32.gmra.mrb[0].mxu0 %v101
    %v198 = vpop.f32.mrb[0].mxu0
    %v199 = vadd.f32 %v85, %v198
    %v200 = vpop.f32.mrb[0].mxu0
    %201 = vmatprep.mubr.f32.mxu0 0.0
    %202 = vmatmul.mubr.f32.gmra.mrb[0].mxu0 %v104
    %v203 = vpop.f32.mrb[0].mxu0
    %v204 = vadd.f32 %v85, %v203
    %v205 = vpop.f32.mrb[0].mxu0
    %206 = vmatprep.mubr.f32.mxu0 0.0
    %207 = vmatmul.mubr.f32.gmra.mrb[0].mxu0 %v107
    %v208 = vpop.f32.mrb[0].mxu0
    %v209 = vadd.f32 %v85, %v208
    %v210 = vpop.f32.mrb[0].mxu0
    %211 = vmatprep.mubr.f32.mxu0 0.0
    %212 = vmatmul.mubr.f32.gmra.mrb[0].mxu0 %v110
    %v213 = vpop.f32.mrb[0].mxu0
    %v214 = vadd.f32 %v85, %v213
    %v215 = vpop.f32.mrb[0].mxu0
    %216 = vdwg.mxu0
    %217 = vst [vmem:[#allocation2] sm:$0xff] %v179
    %218 = vst [vmem:[#allocation2 + $0x8] sm:$0xff] %v184
    %219 = vst [vmem:[#allocation2 + $0x10] sm:$0xff] %v189
    %220 = vst [vmem:[#allocation2 + $0x18] sm:$0xff] %v194
    %221 = vst [vmem:[#allocation2 + $0x20] sm:$0xff] %v199
    %222 = vst [vmem:[#allocation2 + $0x28] sm:$0xff] %v204
    %223 = vst [vmem:[#allocation2 + $0x30] sm:$0xff] %v209
    %224 = vst [vmem:[#allocation2 + $0x38] sm:$0xff] %v214
    %v225 = vld [vmem:[%s0] sm:$0xff]
    %vm226 = vcmask 130048
    %227 = vst.msk [vmem:[#allocation3] sm:$0xff] %vm226, 0.0
    %228 = vst.msk [vmem:[#allocation4] sm:$0xff] %vm226, 0.0
    %229 = vst.msk [vmem:[#allocation5] sm:$0xff] %vm226, 0.0
    %230 = vst.msk [vmem:[#allocation6] sm:$0xff] %vm226, 0.0
    %v231 = vld [vmem:[#allocation2] sm:$0xff]
    %v232 = vld [vmem:[#allocation3] sm:$0xff]
    %v233 = vld [vmem:[%s3] sm:$0xff]
    %v234 = vld [vmem:[%s3 + $0x8] sm:$0xff]
    %v236 = vsel %vm226, %v232, 0
    %238 = vmatprep.subr.mxu0 0.0
    %239 = vmatpush1.msra.mxu0 %v233
    %240 = vmatprep.subr.mxu0 0.0
    %241 = vmatpush1.msra.mxu0 %v234
    %242 = vmatprep.subr.mxu0 0.0
    %243 = vmatpush1.msra.mxu0 0.0
    %244 = vmatprep.subr.mxu0 0.0
    %245 = vmatpush1.msra.mxu0 0.0
    %246 = vmatprep.subr.mxu0 0.0
    %247 = vmatpush1.msra.mxu0 0.0
    %248 = vmatprep.subr.mxu0 0.0
    %249 = vmatpush1.msra.mxu0 0.0
    %250 = vmatprep.subr.mxu0 0.0
    %251 = vmatpush1.msra.mxu0 0.0
    %252 = vmatprep.subr.mxu0 0.0
    %253 = vmatpush1.msra.mxu0 0.0
    %254 = vmatprep.subr.mxu0 0.0
    %255 = vmatpush1.msra.mxu0 0.0
    %256 = vmatprep.subr.mxu0 0.0
    %257 = vmatpush1.msra.mxu0 0.0
    %258 = vmatprep.subr.mxu0 0.0
    %259 = vmatpush1.msra.mxu0 0.0
    %260 = vmatprep.subr.mxu0 0.0
    %261 = vmatpush1.msra.mxu0 0.0
    %262 = vmatprep.subr.mxu0 0.0
    %263 = vmatpush1.msra.mxu0 0.0
    %264 = vmatprep.subr.mxu0 0.0
    %265 = vmatpush1.msra.mxu0 0.0
    %266 = vmatprep.subr.mxu0 0.0
    %267 = vmatpush1.msra.mxu0 0.0
    %268 = vmatprep.subr.mxu0 0.0
    %269 = vmatpush1.msra.mxu0 0.0
    %270 = vmatprep.subr.mxu0 0.0
    %271 = vmatpush1.msra.mxu0 0.0
    %272 = vmatprep.subr.mxu0 0.0
    %273 = vmatpush1.msra.mxu0 0.0
    %274 = vmatprep.subr.mxu0 0.0
    %275 = vmatpush1.msra.mxu0 0.0
    %276 = vmatprep.subr.mxu0 0.0
    %277 = vmatpush1.msra.mxu0 0.0
    %278 = vmatprep.subr.mxu0 0.0
    %279 = vmatpush1.msra.mxu0 0.0
    %280 = vmatprep.subr.mxu0 0.0
    %281 = vmatpush1.msra.mxu0 0.0
    %282 = vmatprep.subr.mxu0 0.0
    %283 = vmatpush1.msra.mxu0 0.0
    %284 = vmatprep.subr.mxu0 0.0
    %285 = vmatpush1.msra.mxu0 0.0
    %286 = vmatprep.subr.mxu0 0.0
    %287 = vmatpush1.msra.mxu0 0.0
    %288 = vmatprep.subr.mxu0 0.0
    %289 = vmatpush1.msra.mxu0 0.0
    %290 = vmatprep.subr.mxu0 0.0
    %291 = vmatpush1.msra.mxu0 0.0
    %292 = vmatprep.subr.mxu0 0.0
    %293 = vmatpush1.msra.mxu0 0.0
    %294 = vmatprep.subr.mxu0 0.0
    %295 = vmatpush1.msra.mxu0 0.0
    %296 = vmatprep.subr.mxu0 0.0
    %297 = vmatpush1.msra.mxu0 0.0
    %298 = vmatprep.subr.mxu0 0.0
    %299 = vmatpush1.msra.mxu0 0.0
    %300 = vmatprep.subr.mxu0 0.0
    %301 = vmatpush1.msra.mxu0 0.0
    %302 = vmatprep.mubr.f32.mxu0 0.0
    %303 = vmatmul.mubr.f32.gmra.mrb[0].mxu0 %v236
    %v304 = vpop.f32.mrb[0].mxu0
    %v305 = vadd.f32 0.0, %v304
    %v306 = vpop.f32.mrb[0].mxu0
    %307 = vdwg.mxu0
    %v308 = vadd.f32 %v231, %v305
    %s309 = scalar_lea.vmem [#allocation2], 56
    %v310 = vld [vmem:[%s309] sm:$0xff]
    %v311 = vld [vmem:[#allocation5] sm:$0xff]
    %v312 = vld [vmem:[#allocation12] sm:$0xff]
    %v313 = vld [vmem:[#allocation12 + $0x8] sm:$0xff]
    %v315 = vsel %vm226, %v311, 0
    %317 = vmatprep.subr.mxu0 0.0
    %318 = vmatpush1.msra.mxu0 %v312
    %319 = vmatprep.subr.mxu0 0.0
    %320 = vmatpush1.msra.mxu0 %v313
    %321 = vmatprep.subr.mxu0 0.0
    %322 = vmatpush1.msra.mxu0 0.0
    %323 = vmatprep.subr.mxu0 0.0
    %324 = vmatpush1.msra.mxu0 0.0
    %325 = vmatprep.subr.mxu0 0.0
    %326 = vmatpush1.msra.mxu0 0.0
    %327 = vmatprep.subr.mxu0 0.0
    %328 = vmatpush1.msra.mxu0 0.0
    %329 = vmatprep.subr.mxu0 0.0
    %330 = vmatpush1.msra.mxu0 0.0
    %331 = vmatprep.subr.mxu0 0.0
    %332 = vmatpush1.msra.mxu0 0.0
    %333 = vmatprep.subr.mxu0 0.0
    %334 = vmatpush1.msra.mxu0 0.0
    %335 = vmatprep.subr.mxu0 0.0
    %336 = vmatpush1.msra.mxu0 0.0
    %337 = vmatprep.subr.mxu0 0.0
    %338 = vmatpush1.msra.mxu0 0.0
    %339 = vmatprep.subr.mxu0 0.0
    %340 = vmatpush1.msra.mxu0 0.0
    %341 = vmatprep.subr.mxu0 0.0
    %342 = vmatpush1.msra.mxu0 0.0
    %343 = vmatprep.subr.mxu0 0.0
    %344 = vmatpush1.msra.mxu0 0.0
    %345 = vmatprep.subr.mxu0 0.0
    %346 = vmatpush1.msra.mxu0 0.0
    %347 = vmatprep.subr.mxu0 0.0
    %348 = vmatpush1.msra.mxu0 0.0
    %349 = vmatprep.subr.mxu0 0.0
    %350 = vmatpush1.msra.mxu0 0.0
    %351 = vmatprep.subr.mxu0 0.0
    %352 = vmatpush1.msra.mxu0 0.0
    %353 = vmatprep.subr.mxu0 0.0
    %354 = vmatpush1.msra.mxu0 0.0
    %355 = vmatprep.subr.mxu0 0.0
    %356 = vmatpush1.msra.mxu0 0.0
    %357 = vmatprep.subr.mxu0 0.0
    %358 = vmatpush1.msra.mxu0 0.0
    %359 = vmatprep.subr.mxu0 0.0
    %360 = vmatpush1.msra.mxu0 0.0
    %361 = vmatprep.subr.mxu0 0.0
    %362 = vmatpush1.msra.mxu0 0.0
    %363 = vmatprep.subr.mxu0 0.0
    %364 = vmatpush1.msra.mxu0 0.0
    %365 = vmatprep.subr.mxu0 0.0
    %366 = vmatpush1.msra.mxu0 0.0
    %367 = vmatprep.subr.mxu0 0.0
    %368 = vmatpush1.msra.mxu0 0.0
    %369 = vmatprep.subr.mxu0 0.0
    %370 = vmatpush1.msra.mxu0 0.0
    %371 = vmatprep.subr.mxu0 0.0
    %372 = vmatpush1.msra.mxu0 0.0
    %373 = vmatprep.subr.mxu0 0.0
    %374 = vmatpush1.msra.mxu0 0.0
    %375 = vmatprep.subr.mxu0 0.0
    %376 = vmatpush1.msra.mxu0 0.0
    %377 = vmatprep.subr.mxu0 0.0
    %378 = vmatpush1.msra.mxu0 0.0
    %379 = vmatprep.subr.mxu0 0.0
    %380 = vmatpush1.msra.mxu0 0.0
    %381 = vmatprep.mubr.f32.mxu0 0.0
    %382 = vmatmul.mubr.f32.gmra.mrb[0].mxu0 %v315
    %v383 = vpop.f32.mrb[0].mxu0
    %v384 = vadd.f32 0.0, %v383
    %v385 = vpop.f32.mrb[0].mxu0
    %386 = vdwg.mxu0
    %388 = vrot.lane.b32.xlu0 %v384, 64
    %v389 = vpop.permute.xlu0 %388
    %v391 = vadd.f32 %v310, %v389
    %v392 = vld [vmem:[#allocation4] sm:$0xff]
    %vm393 = vcmp.gt.s32.totalorder %v225, 0
    %v394 = vsub.f32 0.0, %v308
    %v395 = vmul.f32 %v394, 1.442695
    %v396 = vpow.pop %v395
    %v397 = vadd.f32 %v396, 1.0
    %v398 = vrcp.pop %v397
    %v399 = vmul.f32 1.0, %v398
    %v400 = vtanh.pop %v308
    %402 = vrot.lane.b32.xlu0 %v392, 16
    %v403 = vpop.permute.xlu0 %402
    %v405 = vmul.f32 %v399, %v403
    %407 = vrot.lane.b32.xlu0 %v400, 96
    %v408 = vpop.permute.xlu0 %407
    %v410 = vmul.f32 %v399, %v408
    %412 = vrot.lane.b32.xlu0 %v410, 16
    %v413 = vpop.permute.xlu0 %412
    %v415 = vadd.f32 %v405, %v413
    %v416 = vtanh.pop %v415
    %418 = vrot.lane.b32.xlu0 %v416, 32
    %v419 = vpop.permute.xlu0 %418
    %v421 = vmul.f32 %v399, %v419
    %v422 = vsel %vm393, 1, 0
    %423 = vset.pattern.permute.xlu0 0
    %424 = vperm.xlu0 %423, %v422
    %v425 = vpop.permute.xlu0 %424
    %vm426 = vcmp.eq.s32.totalorder %v425, 1
    %427 = vrot.lane.b32.xlu0 %v232, 48
    %v428 = vpop.permute.xlu0 %427
    %v430 = vsel %vm426, %v421, %v428
    %v431 = vsel %vm426, %v415, %v403
    %v432 = vsel %vm426, %v421, 0.0
    %v433 = vld [vmem:[#allocation6] sm:$0xff]
    %vm434 = vcmp.gt.s32.totalorder %v225, 7
    %v435 = vsub.f32 0.0, %v391
    %v436 = vmul.f32 %v435, 1.442695
    %v437 = vpow.pop %v436
    %v438 = vadd.f32 %v437, 1.0
    %v439 = vrcp.pop %v438
    %v440 = vmul.f32 1.0, %v439
    %v441 = vtanh.pop %v391
    %443 = vrot.lane.b32.xlu0 %v433, 80
    %v444 = vpop.permute.xlu0 %443
    %v446 = vmul.f32 %v440, %v444
    %448 = vrot.lane.b32.xlu0 %v441, 96
    %v449 = vpop.permute.xlu0 %448
    %v451 = vmul.f32 %v440, %v449
    %453 = vrot.lane.b32.xlu0 %v451, 16
    %v454 = vpop.permute.xlu0 %453
    %v456 = vadd.f32 %v446, %v454
    %v457 = vtanh.pop %v456
    %459 = vrot.lane.b32.xlu0 %v457, 32
    %v460 = vpop.permute.xlu0 %459
    %v462 = vmul.f32 %v440, %v460
    %v463 = vsel %vm434, 1, 0
    %464 = vset.pattern.permute.xlu0 0
    %465 = vperm.xlu0 %464, %v463
    %v466 = vpop.permute.xlu0 %465
    %vm467 = vcmp.eq.s32.totalorder %v466, 1
    %468 = vrot.lane.b32.xlu0 %v311, 112
    %v469 = vpop.permute.xlu0 %468
    %v471 = vsel %vm467, %v462, %v469
    %v472 = vsel %vm467, %v456, %v444
    %v473 = vsel %vm467, %v462, 0.0
    %475 = vrot.lane.b32.xlu0 %v430, 80
    %v476 = vpop.permute.xlu0 %475
    %478 = vst.msk [vmem:[#allocation3] sm:$0xff] %vm226, %v476
    %480 = vrot.lane.b32.xlu0 %v431, 112
    %v481 = vpop.permute.xlu0 %480
    %483 = vst.msk [vmem:[#allocation4] sm:$0xff] %vm226, %v481
    %485 = vrot.lane.b32.xlu0 %v471, 16
    %v486 = vpop.permute.xlu0 %485
    %488 = vst.msk [vmem:[#allocation5] sm:$0xff] %vm226, %v486
    %490 = vrot.lane.b32.xlu0 %v472, 48
    %v491 = vpop.permute.xlu0 %490
    %493 = vst.msk [vmem:[#allocation6] sm:$0xff] %vm226, %v491
    %495 = vrot.lane.b32.xlu0 %v432, 80
    %v496 = vpop.permute.xlu0 %495
    %498 = vst.msk [vmem:[#allocation13] sm:$0xff] %vm226, %v496
    %500 = vrot.lane.b32.xlu0 %v473, 32
    %v501 = vpop.permute.xlu0 %500
    %s503 = scalar_lea.vmem [#allocation13], 56
    %vm504 = vcmask 261248
    %505 = vst.msk [vmem:[%s503] sm:$0xff] %vm504, %v501
    %s506 = scalar_lea.vmem [#allocation2], 8
    %v507 = vld [vmem:[%s506] sm:$0xff]
    %v508 = vld [vmem:[#allocation3] sm:$0xff]
    %v509 = vld [vmem:[%s3] sm:$0xff]
    %v510 = vld [vmem:[%s3 + $0x8] sm:$0xff]
    %v512 = vsel %vm226, %v508, 0
    %514 = vmatprep.subr.mxu0 0.0
    %515 = vmatpush1.msra.mxu0 %v509
    %516 = vmatprep.subr.mxu0 0.0
    %517 = vmatpush1.msra.mxu0 %v510
    %518 = vmatprep.subr.mxu0 0.0
    %519 = vmatpush1.msra.mxu0 0.0
    %520 = vmatprep.subr.mxu0 0.0
    %521 = vmatpush1.msra.mxu0 0.0
    %522 = vmatprep.subr.mxu0 0.0
    %523 = vmatpush1.msra.mxu0 0.0
    %524 = vmatprep.subr.mxu0 0.0
    %525 = vmatpush1.msra.mxu0 0.0
    %526 = vmatprep.subr.mxu0 0.0
    %527 = vmatpush1.msra.mxu0 0.0
    %528 = vmatprep.subr.mxu0 0.0
    %529 = vmatpush1.msra.mxu0 0.0
    %530 = vmatprep.subr.mxu0 0.0
    %531 = vmatpush1.msra.mxu0 0.0
    %532 = vmatprep.subr.mxu0 0.0
    %533 = vmatpush1.msra.mxu0 0.0
    %534 = vmatprep.subr.mxu0 0.0
    %535 = vmatpush1.msra.mxu0 0.0
    %536 = vmatprep.subr.mxu0 0.0
    %537 = vmatpush1.msra.mxu0 0.0
    %538 = vmatprep.subr.mxu0 0.0
    %539 = vmatpush1.msra.mxu0 0.0
    %540 = vmatprep.subr.mxu0 0.0
    %541 = vmatpush1.msra.mxu0 0.0
    %542 = vmatprep.subr.mxu0 0.0
    %543 = vmatpush1.msra.mxu0 0.0
    %544 = vmatprep.subr.mxu0 0.0
    %545 = vmatpush1.msra.mxu0 0.0
    %546 = vmatprep.subr.mxu0 0.0
    %547 = vmatpush1.msra.mxu0 0.0
    %548 = vmatprep.subr.mxu0 0.0
    %549 = vmatpush1.msra.mxu0 0.0
    %550 = vmatprep.subr.mxu0 0.0
    %551 = vmatpush1.msra.mxu0 0.0
    %552 = vmatprep.subr.mxu0 0.0
    %553 = vmatpush1.msra.mxu0 0.0
    %554 = vmatprep.subr.mxu0 0.0
    %555 = vmatpush1.msra.mxu0 0.0
    %556 = vmatprep.subr.mxu0 0.0
    %557 = vmatpush1.msra.mxu0 0.0
    %558 = vmatprep.subr.mxu0 0.0
    %559 = vmatpush1.msra.mxu0 0.0
    %560 = vmatprep.subr.mxu0 0.0
    %561 = vmatpush1.msra.mxu0 0.0
    %562 = vmatprep.subr.mxu0 0.0
    %563 = vmatpush1.msra.mxu0 0.0
    %564 = vmatprep.subr.mxu0 0.0
    %565 = vmatpush1.msra.mxu0 0.0
    %566 = vmatprep.subr.mxu0 0.0
    %567 = vmatpush1.msra.mxu0 0.0
    %568 = vmatprep.subr.mxu0 0.0
    %569 = vmatpush1.msra.mxu0 0.0
    %570 = vmatprep.subr.mxu0 0.0
    %571 = vmatpush1.msra.mxu0 0.0
    %572 = vmatprep.subr.mxu0 0.0
    %573 = vmatpush1.msra.mxu0 0.0
    %574 = vmatprep.subr.mxu0 0.0
    %575 = vmatpush1.msra.mxu0 0.0
    %576 = vmatprep.subr.mxu0 0.0
    %577 = vmatpush1.msra.mxu0 0.0
    %578 = vmatprep.mubr.f32.mxu0 0.0
    %579 = vmatmul.mubr.f32.gmra.mrb[0].mxu0 %v512
    %v580 = vpop.f32.mrb[0].mxu0
    %v581 = vadd.f32 0.0, %v580
    %v582 = vpop.f32.mrb[0].mxu0
    %583 = vdwg.mxu0
    %v584 = vadd.f32 %v507, %v581
    %s585 = scalar_lea.vmem [#allocation2], 48
    %v586 = vld [vmem:[%s585] sm:$0xff]
    %v587 = vld [vmem:[#allocation5] sm:$0xff]
    %v588 = vld [vmem:[#allocation12] sm:$0xff]
    %v589 = vld [vmem:[#allocation12 + $0x8] sm:$0xff]
    %v591 = vsel %vm226, %v587, 0
    %593 = vmatprep.subr.mxu0 0.0
    %594 = vmatpush1.msra.mxu0 %v588
    %595 = vmatprep.subr.mxu0 0.0
    %596 = vmatpush1.msra.mxu0 %v589
    %597 = vmatprep.subr.mxu0 0.0
    %598 = vmatpush1.msra.mxu0 0.0
    %599 = vmatprep.subr.mxu0 0.0
    %600 = vmatpush1.msra.mxu0 0.0
    %601 = vmatprep.subr.mxu0 0.0
    %602 = vmatpush1.msra.mxu0 0.0
    %603 = vmatprep.subr.mxu0 0.0
    %604 = vmatpush1.msra.mxu0 0.0
    %605 = vmatprep.subr.mxu0 0.0
    %606 = vmatpush1.msra.mxu0 0.0
    %607 = vmatprep.subr.mxu0 0.0
    %608 = vmatpush1.msra.mxu0 0.0
    %609 = vmatprep.subr.mxu0 0.0
    %610 = vmatpush1.msra.mxu0 0.0
    %611 = vmatprep.subr.mxu0 0.0
    %612 = vmatpush1.msra.mxu0 0.0
    %613 = vmatprep.subr.mxu0 0.0
    %614 = vmatpush1.msra.mxu0 0.0
    %615 = vmatprep.subr.mxu0 0.0
    %616 = vmatpush1.msra.mxu0 0.0
    %617 = vmatprep.subr.mxu0 0.0
    %618 = vmatpush1.msra.mxu0 0.0
    %619 = vmatprep.subr.mxu0 0.0
    %620 = vmatpush1.msra.mxu0 0.0
    %621 = vmatprep.subr.mxu0 0.0
    %622 = vmatpush1.msra.mxu0 0.0
    %623 = vmatprep.subr.mxu0 0.0
    %624 = vmatpush1.msra.mxu0 0.0
    %625 = vmatprep.subr.mxu0 0.0
    %626 = vmatpush1.msra.mxu0 0.0
    %627 = vmatprep.subr.mxu0 0.0
    %628 = vmatpush1.msra.mxu0 0.0
    %629 = vmatprep.subr.mxu0 0.0
    %630 = vmatpush1.msra.mxu0 0.0
    %631 = vmatprep.subr.mxu0 0.0
    %632 = vmatpush1.msra.mxu0 0.0
    %633 = vmatprep.subr.mxu0 0.0
    %634 = vmatpush1.msra.mxu0 0.0
    %635 = vmatprep.subr.mxu0 0.0
    %636 = vmatpush1.msra.mxu0 0.0
    %637 = vmatprep.subr.mxu0 0.0
    %638 = vmatpush1.msra.mxu0 0.0
    %639 = vmatprep.subr.mxu0 0.0
    %640 = vmatpush1.msra.mxu0 0.0
    %641 = vmatprep.subr.mxu0 0.0
    %642 = vmatpush1.msra.mxu0 0.0
    %643 = vmatprep.subr.mxu0 0.0
    %644 = vmatpush1.msra.mxu0 0.0
    %645 = vmatprep.subr.mxu0 0.0
    %646 = vmatpush1.msra.mxu0 0.0
    %647 = vmatprep.subr.mxu0 0.0
    %648 = vmatpush1.msra.mxu0 0.0
    %649 = vmatprep.subr.mxu0 0.0
    %650 = vmatpush1.msra.mxu0 0.0
    %651 = vmatprep.subr.mxu0 0.0
    %652 = vmatpush1.msra.mxu0 0.0
    %653 = vmatprep.subr.mxu0 0.0
    %654 = vmatpush1.msra.mxu0 0.0
    %655 = vmatprep.subr.mxu0 0.0
    %656 = vmatpush1.msra.mxu0 0.0
    %657 = vmatprep.mubr.f32.mxu0 0.0
    %658 = vmatmul.mubr.f32.gmra.mrb[0].mxu0 %v591
    %v659 = vpop.f32.mrb[0].mxu0
    %v660 = vadd.f32 0.0, %v659
    %v661 = vpop.f32.mrb[0].mxu0
    %662 = vdwg.mxu0
    %664 = vrot.lane.b32.xlu0 %v660, 64
    %v665 = vpop.permute.xlu0 %664
    %v667 = vadd.f32 %v586, %v665
    %v668 = vld [vmem:[#allocation4] sm:$0xff]
    %vm669 = vcmp.gt.s32.totalorder %v225, 1
    %v670 = vsub.f32 0.0, %v584
    %v671 = vmul.f32 %v670, 1.442695
    %v672 = vpow.pop %v671
    %v673 = vadd.f32 %v672, 1.0
    %v674 = vrcp.pop %v673
    %v675 = vmul.f32 1.0, %v674
    %v676 = vtanh.pop %v584
    %678 = vrot.lane.b32.xlu0 %v668, 16
    %v679 = vpop.permute.xlu0 %678
    %v681 = vmul.f32 %v675, %v679
    %683 = vrot.lane.b32.xlu0 %v676, 96
    %v684 = vpop.permute.xlu0 %683
    %v686 = vmul.f32 %v675, %v684
    %688 = vrot.lane.b32.xlu0 %v686, 16
    %v689 = vpop.permute.xlu0 %688
    %v691 = vadd.f32 %v681, %v689
    %v692 = vtanh.pop %v691
    %694 = vrot.lane.b32.xlu0 %v692, 32
    %v695 = vpop.permute.xlu0 %694
    %v697 = vmul.f32 %v675, %v695
    %v698 = vsel %vm669, 1, 0
    %699 = vset.pattern.permute.xlu0 0
    %700 = vperm.xlu0 %699, %v698
    %v701 = vpop.permute.xlu0 %700
    %vm702 = vcmp.eq.s32.totalorder %v701, 1
    %703 = vrot.lane.b32.xlu0 %v508, 48
    %v704 = vpop.permute.xlu0 %703
    %v706 = vsel %vm702, %v697, %v704
    %v707 = vsel %vm702, %v691, %v679
    %v708 = vsel %vm702, %v697, 0.0
    %v709 = vld [vmem:[#allocation6] sm:$0xff]
    %vm710 = vcmp.gt.s32.totalorder %v225, 6
    %v711 = vsub.f32 0.0, %v667
    %v712 = vmul.f32 %v711, 1.442695
    %v713 = vpow.pop %v712
    %v714 = vadd.f32 %v713, 1.0
    %v715 = vrcp.pop %v714
    %v716 = vmul.f32 1.0, %v715
    %v717 = vtanh.pop %v667
    %719 = vrot.lane.b32.xlu0 %v709, 80
    %v720 = vpop.permute.xlu0 %719
    %v722 = vmul.f32 %v716, %v720
    %724 = vrot.lane.b32.xlu0 %v717, 96
    %v725 = vpop.permute.xlu0 %724
    %v727 = vmul.f32 %v716, %v725
    %729 = vrot.lane.b32.xlu0 %v727, 16
    %v730 = vpop.permute.xlu0 %729
    %v732 = vadd.f32 %v722, %v730
    %v733 = vtanh.pop %v732
    %735 = vrot.lane.b32.xlu0 %v733, 32
    %v736 = vpop.permute.xlu0 %735
    %v738 = vmul.f32 %v716, %v736
    %v739 = vsel %vm710, 1, 0
    %740 = vset.pattern.permute.xlu0 0
    %741 = vperm.xlu0 %740, %v739
    %v742 = vpop.permute.xlu0 %741
    %vm743 = vcmp.eq.s32.totalorder %v742, 1
    %744 = vrot.lane.b32.xlu0 %v587, 112
    %v745 = vpop.permute.xlu0 %744
    %v747 = vsel %vm743, %v738, %v745
    %v748 = vsel %vm743, %v732, %v720
    %v749 = vsel %vm743, %v738, 0.0
    %751 = vrot.lane.b32.xlu0 %v706, 80
    %v752 = vpop.permute.xlu0 %751
    %754 = vst.msk [vmem:[#allocation3] sm:$0xff] %vm226, %v752
    %756 = vrot.lane.b32.xlu0 %v707, 112
    %v757 = vpop.permute.xlu0 %756
    %759 = vst.msk [vmem:[#allocation4] sm:$0xff] %vm226, %v757
    %761 = vrot.lane.b32.xlu0 %v747, 16
    %v762 = vpop.permute.xlu0 %761
    %764 = vst.msk [vmem:[#allocation5] sm:$0xff] %vm226, %v762
    %766 = vrot.lane.b32.xlu0 %v748, 48
    %v767 = vpop.permute.xlu0 %766
    %769 = vst.msk [vmem:[#allocation6] sm:$0xff] %vm226, %v767
    %771 = vrot.lane.b32.xlu0 %v708, 80
    %v772 = vpop.permute.xlu0 %771
    %s774 = scalar_lea.vmem [#allocation13], 8
    %775 = vst.msk [vmem:[%s774] sm:$0xff] %vm226, %v772
    %777 = vrot.lane.b32.xlu0 %v749, 32
    %v778 = vpop.permute.xlu0 %777
    %s780 = scalar_lea.vmem [#allocation13], 48
    %781 = vst.msk [vmem:[%s780] sm:$0xff] %vm504, %v778
    %s782 = scalar_lea.vmem [#allocation2], 16
    %v783 = vld [vmem:[%s782] sm:$0xff]
    %v784 = vld [vmem:[#allocation3] sm:$0xff]
    %v785 = vld [vmem:[%s3] sm:$0xff]
    %v786 = vld [vmem:[%s3 + $0x8] sm:$0xff]
    %v788 = vsel %vm226, %v784, 0
    %790 = vmatprep.subr.mxu0 0.0
    %791 = vmatpush1.msra.mxu0 %v785
    %792 = vmatprep.subr.mxu0 0.0
    %793 = vmatpush1.msra.mxu0 %v786
    %794 = vmatprep.subr.mxu0 0.0
    %795 = vmatpush1.msra.mxu0 0.0
    %796 = vmatprep.subr.mxu0 0.0
    %797 = vmatpush1.msra.mxu0 0.0
    %798 = vmatprep.subr.mxu0 0.0
    %799 = vmatpush1.msra.mxu0 0.0
    %800 = vmatprep.subr.mxu0 0.0
    %801 = vmatpush1.msra.mxu0 0.0
    %802 = vmatprep.subr.mxu0 0.0
    %803 = vmatpush1.msra.mxu0 0.0
    %804 = vmatprep.subr.mxu0 0.0
    %805 = vmatpush1.msra.mxu0 0.0
    %806 = vmatprep.subr.mxu0 0.0
    %807 = vmatpush1.msra.mxu0 0.0
    %808 = vmatprep.subr.mxu0 0.0
    %809 = vmatpush1.msra.mxu0 0.0
    %810 = vmatprep.subr.mxu0 0.0
    %811 = vmatpush1.msra.mxu0 0.0
    %812 = vmatprep.subr.mxu0 0.0
    %813 = vmatpush1.msra.mxu0 0.0
    %814 = vmatprep.subr.mxu0 0.0
    %815 = vmatpush1.msra.mxu0 0.0
    %816 = vmatprep.subr.mxu0 0.0
    %817 = vmatpush1.msra.mxu0 0.0
    %818 = vmatprep.subr.mxu0 0.0
    %819 = vmatpush1.msra.mxu0 0.0
    %820 = vmatprep.subr.mxu0 0.0
    %821 = vmatpush1.msra.mxu0 0.0
    %822 = vmatprep.subr.mxu0 0.0
    %823 = vmatpush1.msra.mxu0 0.0
    %824 = vmatprep.subr.mxu0 0.0
    %825 = vmatpush1.msra.mxu0 0.0
    %826 = vmatprep.subr.mxu0 0.0
    %827 = vmatpush1.msra.mxu0 0.0
    %828 = vmatprep.subr.mxu0 0.0
    %829 = vmatpush1.msra.mxu0 0.0
    %830 = vmatprep.subr.mxu0 0.0
    %831 = vmatpush1.msra.mxu0 0.0
    %832 = vmatprep.subr.mxu0 0.0
    %833 = vmatpush1.msra.mxu0 0.0
    %834 = vmatprep.subr.mxu0 0.0
    %835 = vmatpush1.msra.mxu0 0.0
    %836 = vmatprep.subr.mxu0 0.0
    %837 = vmatpush1.msra.mxu0 0.0
    %838 = vmatprep.subr.mxu0 0.0
    %839 = vmatpush1.msra.mxu0 0.0
    %840 = vmatprep.subr.mxu0 0.0
    %841 = vmatpush1.msra.mxu0 0.0
    %842 = vmatprep.subr.mxu0 0.0
    %843 = vmatpush1.msra.mxu0 0.0
    %844 = vmatprep.subr.mxu0 0.0
    %845 = vmatpush1.msra.mxu0 0.0
    %846 = vmatprep.subr.mxu0 0.0
    %847 = vmatpush1.msra.mxu0 0.0
    %848 = vmatprep.subr.mxu0 0.0
    %849 = vmatpush1.msra.mxu0 0.0
    %850 = vmatprep.subr.mxu0 0.0
    %851 = vmatpush1.msra.mxu0 0.0
    %852 = vmatprep.subr.mxu0 0.0
    %853 = vmatpush1.msra.mxu0 0.0
    %854 = vmatprep.mubr.f32.mxu0 0.0
    %855 = vmatmul.mubr.f32.gmra.mrb[0].mxu0 %v788
    %v856 = vpop.f32.mrb[0].mxu0
    %v857 = vadd.f32 0.0, %v856
    %v858 = vpop.f32.mrb[0].mxu0
    %859 = vdwg.mxu0
    %v860 = vadd.f32 %v783, %v857
    %s861 = scalar_lea.vmem [#allocation2], 40
    %v862 = vld [vmem:[%s861] sm:$0xff]
    %v863 = vld [vmem:[#allocation5] sm:$0xff]
    %v864 = vld [vmem:[#allocation12] sm:$0xff]
    %v865 = vld [vmem:[#allocation12 + $0x8] sm:$0xff]
    %v867 = vsel %vm226, %v863, 0
    %869 = vmatprep.subr.mxu0 0.0
    %870 = vmatpush1.msra.mxu0 %v864
    %871 = vmatprep.subr.mxu0 0.0
    %872 = vmatpush1.msra.mxu0 %v865
    %873 = vmatprep.subr.mxu0 0.0
    %874 = vmatpush1.msra.mxu0 0.0
    %875 = vmatprep.subr.mxu0 0.0
    %876 = vmatpush1.msra.mxu0 0.0
    %877 = vmatprep.subr.mxu0 0.0
    %878 = vmatpush1.msra.mxu0 0.0
    %879 = vmatprep.subr.mxu0 0.0
    %880 = vmatpush1.msra.mxu0 0.0
    %881 = vmatprep.subr.mxu0 0.0
    %882 = vmatpush1.msra.mxu0 0.0
    %883 = vmatprep.subr.mxu0 0.0
    %884 = vmatpush1.msra.mxu0 0.0
    %885 = vmatprep.subr.mxu0 0.0
    %886 = vmatpush1.msra.mxu0 0.0
    %887 = vmatprep.subr.mxu0 0.0
    %888 = vmatpush1.msra.mxu0 0.0
    %889 = vmatprep.subr.mxu0 0.0
    %890 = vmatpush1.msra.mxu0 0.0
    %891 = vmatprep.subr.mxu0 0.0
    %892 = vmatpush1.msra.mxu0 0.0
    %893 = vmatprep.subr.mxu0 0.0
    %894 = vmatpush1.msra.mxu0 0.0
    %895 = vmatprep.subr.mxu0 0.0
    %896 = vmatpush1.msra.mxu0 0.0
    %897 = vmatprep.subr.mxu0 0.0
    %898 = vmatpush1.msra.mxu0 0.0
    %899 = vmatprep.subr.mxu0 0.0
    %900 = vmatpush1.msra.mxu0 0.0
    %901 = vmatprep.subr.mxu0 0.0
    %902 = vmatpush1.msra.mxu0 0.0
    %903 = vmatprep.subr.mxu0 0.0
    %904 = vmatpush1.msra.mxu0 0.0
    %905 = vmatprep.subr.mxu0 0.0
    %906 = vmatpush1.msra.mxu0 0.0
    %907 = vmatprep.subr.mxu0 0.0
    %908 = vmatpush1.msra.mxu0 0.0
    %909 = vmatprep.subr.mxu0 0.0
    %910 = vmatpush1.msra.mxu0 0.0
    %911 = vmatprep.subr.mxu0 0.0
    %912 = vmatpush1.msra.mxu0 0.0
    %913 = vmatprep.subr.mxu0 0.0
    %914 = vmatpush1.msra.mxu0 0.0
    %915 = vmatprep.subr.mxu0 0.0
    %916 = vmatpush1.msra.mxu0 0.0
    %917 = vmatprep.subr.mxu0 0.0
    %918 = vmatpush1.msra.mxu0 0.0
    %919 = vmatprep.subr.mxu0 0.0
    %920 = vmatpush1.msra.mxu0 0.0
    %921 = vmatprep.subr.mxu0 0.0
    %922 = vmatpush1.msra.mxu0 0.0
    %923 = vmatprep.subr.mxu0 0.0
    %924 = vmatpush1.msra.mxu0 0.0
    %925 = vmatprep.subr.mxu0 0.0
    %926 = vmatpush1.msra.mxu0 0.0
    %927 = vmatprep.subr.mxu0 0.0
    %928 = vmatpush1.msra.mxu0 0.0
    %929 = vmatprep.subr.mxu0 0.0
    %930 = vmatpush1.msra.mxu0 0.0
    %931 = vmatprep.subr.mxu0 0.0
    %932 = vmatpush1.msra.mxu0 0.0
    %933 = vmatprep.mubr.f32.mxu0 0.0
    %934 = vmatmul.mubr.f32.gmra.mrb[0].mxu0 %v867
    %v935 = vpop.f32.mrb[0].mxu0
    %v936 = vadd.f32 0.0, %v935
    %v937 = vpop.f32.mrb[0].mxu0
    %938 = vdwg.mxu0
    %940 = vrot.lane.b32.xlu0 %v936, 64
    %v941 = vpop.permute.xlu0 %940
    %v943 = vadd.f32 %v862, %v941
    %v944 = vld [vmem:[#allocation4] sm:$0xff]
    %vm945 = vcmp.gt.s32.totalorder %v225, 2
    %v946 = vsub.f32 0.0, %v860
    %v947 = vmul.f32 %v946, 1.442695
    %v948 = vpow.pop %v947
    %v949 = vadd.f32 %v948, 1.0
    %v950 = vrcp.pop %v949
    %v951 = vmul.f32 1.0, %v950
    %v952 = vtanh.pop %v860
    %954 = vrot.lane.b32.xlu0 %v944, 16
    %v955 = vpop.permute.xlu0 %954
    %v957 = vmul.f32 %v951, %v955
    %959 = vrot.lane.b32.xlu0 %v952, 96
    %v960 = vpop.permute.xlu0 %959
    %v962 = vmul.f32 %v951, %v960
    %964 = vrot.lane.b32.xlu0 %v962, 16
    %v965 = vpop.permute.xlu0 %964
    %v967 = vadd.f32 %v957, %v965
    %v968 = vtanh.pop %v967
    %970 = vrot.lane.b32.xlu0 %v968, 32
    %v971 = vpop.permute.xlu0 %970
    %v973 = vmul.f32 %v951, %v971
    %v974 = vsel %vm945, 1, 0
    %975 = vset.pattern.permute.xlu0 0
    %976 = vperm.xlu0 %975, %v974
    %v977 = vpop.permute.xlu0 %976
    %vm978 = vcmp.eq.s32.totalorder %v977, 1
    %979 = vrot.lane.b32.xlu0 %v784, 48
    %v980 = vpop.permute.xlu0 %979
    %v982 = vsel %vm978, %v973, %v980
    %v983 = vsel %vm978, %v967, %v955
    %v984 = vsel %vm978, %v973, 0.0
    %v985 = vld [vmem:[#allocation6] sm:$0xff]
    %vm986 = vcmp.gt.s32.totalorder %v225, 5
    %v987 = vsub.f32 0.0, %v943
    %v988 = vmul.f32 %v987, 1.442695
    %v989 = vpow.pop %v988
    %v990 = vadd.f32 %v989, 1.0
    %v991 = vrcp.pop %v990
    %v992 = vmul.f32 1.0, %v991
    %v993 = vtanh.pop %v943
    %995 = vrot.lane.b32.xlu0 %v985, 80
    %v996 = vpop.permute.xlu0 %995
    %v998 = vmul.f32 %v992, %v996
    %1000 = vrot.lane.b32.xlu0 %v993, 96
    %v1001 = vpop.permute.xlu0 %1000
    %v1003 = vmul.f32 %v992, %v1001
    %1005 = vrot.lane.b32.xlu0 %v1003, 16
    %v1006 = vpop.permute.xlu0 %1005
    %v1008 = vadd.f32 %v998, %v1006
    %v1009 = vtanh.pop %v1008
    %1011 = vrot.lane.b32.xlu0 %v1009, 32
    %v1012 = vpop.permute.xlu0 %1011
    %v1014 = vmul.f32 %v992, %v1012
    %v1015 = vsel %vm986, 1, 0
    %1016 = vset.pattern.permute.xlu0 0
    %1017 = vperm.xlu0 %1016, %v1015
    %v1018 = vpop.permute.xlu0 %1017
    %vm1019 = vcmp.eq.s32.totalorder %v1018, 1
    %1020 = vrot.lane.b32.xlu0 %v863, 112
    %v1021 = vpop.permute.xlu0 %1020
    %v1023 = vsel %vm1019, %v1014, %v1021
    %v1024 = vsel %vm1019, %v1008, %v996
    %v1025 = vsel %vm1019, %v1014, 0.0
    %1027 = vrot.lane.b32.xlu0 %v982, 80
    %v1028 = vpop.permute.xlu0 %1027
    %1030 = vst.msk [vmem:[#allocation3] sm:$0xff] %vm226, %v1028
    %1032 = vrot.lane.b32.xlu0 %v983, 112
    %v1033 = vpop.permute.xlu0 %1032
    %1035 = vst.msk [vmem:[#allocation4] sm:$0xff] %vm226, %v1033
    %1037 = vrot.lane.b32.xlu0 %v1023, 16
    %v1038 = vpop.permute.xlu0 %1037
    %1040 = vst.msk [vmem:[#allocation5] sm:$0xff] %vm226, %v1038
    %1042 = vrot.lane.b32.xlu0 %v1024, 48
    %v1043 = vpop.permute.xlu0 %1042
    %1045 = vst.msk [vmem:[#allocation6] sm:$0xff] %vm226, %v1043
    %1047 = vrot.lane.b32.xlu0 %v984, 80
    %v1048 = vpop.permute.xlu0 %1047
    %s1050 = scalar_lea.vmem [#allocation13], 16
    %1051 = vst.msk [vmem:[%s1050] sm:$0xff] %vm226, %v1048
    %1053 = vrot.lane.b32.xlu0 %v1025, 32
    %v1054 = vpop.permute.xlu0 %1053
    %s1056 = scalar_lea.vmem [#allocation13], 40
    %1057 = vst.msk [vmem:[%s1056] sm:$0xff] %vm504, %v1054
    %s1058 = scalar_lea.vmem [#allocation2], 24
    %v1059 = vld [vmem:[%s1058] sm:$0xff]
    %v1060 = vld [vmem:[#allocation3] sm:$0xff]
    %v1061 = vld [vmem:[%s3] sm:$0xff]
    %v1062 = vld [vmem:[%s3 + $0x8] sm:$0xff]
    %v1064 = vsel %vm226, %v1060, 0
    %1066 = vmatprep.subr.mxu0 0.0
    %1067 = vmatpush1.msra.mxu0 %v1061
    %1068 = vmatprep.subr.mxu0 0.0
    %1069 = vmatpush1.msra.mxu0 %v1062
    %1070 = vmatprep.subr.mxu0 0.0
    %1071 = vmatpush1.msra.mxu0 0.0
    %1072 = vmatprep.subr.mxu0 0.0
    %1073 = vmatpush1.msra.mxu0 0.0
    %1074 = vmatprep.subr.mxu0 0.0
    %1075 = vmatpush1.msra.mxu0 0.0
    %1076 = vmatprep.subr.mxu0 0.0
    %1077 = vmatpush1.msra.mxu0 0.0
    %1078 = vmatprep.subr.mxu0 0.0
    %1079 = vmatpush1.msra.mxu0 0.0
    %1080 = vmatprep.subr.mxu0 0.0
    %1081 = vmatpush1.msra.mxu0 0.0
    %1082 = vmatprep.subr.mxu0 0.0
    %1083 = vmatpush1.msra.mxu0 0.0
    %1084 = vmatprep.subr.mxu0 0.0
    %1085 = vmatpush1.msra.mxu0 0.0
    %1086 = vmatprep.subr.mxu0 0.0
    %1087 = vmatpush1.msra.mxu0 0.0
    %1088 = vmatprep.subr.mxu0 0.0
    %1089 = vmatpush1.msra.mxu0 0.0
    %1090 = vmatprep.subr.mxu0 0.0
    %1091 = vmatpush1.msra.mxu0 0.0
    %1092 = vmatprep.subr.mxu0 0.0
    %1093 = vmatpush1.msra.mxu0 0.0
    %1094 = vmatprep.subr.mxu0 0.0
    %1095 = vmatpush1.msra.mxu0 0.0
    %1096 = vmatprep.subr.mxu0 0.0
    %1097 = vmatpush1.msra.mxu0 0.0
    %1098 = vmatprep.subr.mxu0 0.0
    %1099 = vmatpush1.msra.mxu0 0.0
    %1100 = vmatprep.subr.mxu0 0.0
    %1101 = vmatpush1.msra.mxu0 0.0
    %1102 = vmatprep.subr.mxu0 0.0
    %1103 = vmatpush1.msra.mxu0 0.0
    %1104 = vmatprep.subr.mxu0 0.0
    %1105 = vmatpush1.msra.mxu0 0.0
    %1106 = vmatprep.subr.mxu0 0.0
    %1107 = vmatpush1.msra.mxu0 0.0
    %1108 = vmatprep.subr.mxu0 0.0
    %1109 = vmatpush1.msra.mxu0 0.0
    %1110 = vmatprep.subr.mxu0 0.0
    %1111 = vmatpush1.msra.mxu0 0.0
    %1112 = vmatprep.subr.mxu0 0.0
    %1113 = vmatpush1.msra.mxu0 0.0
    %1114 = vmatprep.subr.mxu0 0.0
    %1115 = vmatpush1.msra.mxu0 0.0
    %1116 = vmatprep.subr.mxu0 0.0
    %1117 = vmatpush1.msra.mxu0 0.0
    %1118 = vmatprep.subr.mxu0 0.0
    %1119 = vmatpush1.msra.mxu0 0.0
    %1120 = vmatprep.subr.mxu0 0.0
    %1121 = vmatpush1.msra.mxu0 0.0
    %1122 = vmatprep.subr.mxu0 0.0
    %1123 = vmatpush1.msra.mxu0 0.0
    %1124 = vmatprep.subr.mxu0 0.0
    %1125 = vmatpush1.msra.mxu0 0.0
    %1126 = vmatprep.subr.mxu0 0.0
    %1127 = vmatpush1.msra.mxu0 0.0
    %1128 = vmatprep.subr.mxu0 0.0
    %1129 = vmatpush1.msra.mxu0 0.0
    %1130 = vmatprep.mubr.f32.mxu0 0.0
    %1131 = vmatmul.mubr.f32.gmra.mrb[0].mxu0 %v1064
    %v1132 = vpop.f32.mrb[0].mxu0
    %v1133 = vadd.f32 0.0, %v1132
    %v1134 = vpop.f32.mrb[0].mxu0
    %1135 = vdwg.mxu0
    %v1136 = vadd.f32 %v1059, %v1133
    %s1137 = scalar_lea.vmem [#allocation2], 32
    %v1138 = vld [vmem:[%s1137] sm:$0xff]
    %v1139 = vld [vmem:[#allocation5] sm:$0xff]
    %v1140 = vld [vmem:[#allocation12] sm:$0xff]
    %v1141 = vld [vmem:[#allocation12 + $0x8] sm:$0xff]
    %v1143 = vsel %vm226, %v1139, 0
    %1145 = vmatprep.subr.mxu0 0.0
    %1146 = vmatpush1.msra.mxu0 %v1140
    %1147 = vmatprep.subr.mxu0 0.0
    %1148 = vmatpush1.msra.mxu0 %v1141
    %1149 = vmatprep.subr.mxu0 0.0
    %1150 = vmatpush1.msra.mxu0 0.0
    %1151 = vmatprep.subr.mxu0 0.0
    %1152 = vmatpush1.msra.mxu0 0.0
    %1153 = vmatprep.subr.mxu0 0.0
    %1154 = vmatpush1.msra.mxu0 0.0
    %1155 = vmatprep.subr.mxu0 0.0
    %1156 = vmatpush1.msra.mxu0 0.0
    %1157 = vmatprep.subr.mxu0 0.0
    %1158 = vmatpush1.msra.mxu0 0.0
    %1159 = vmatprep.subr.mxu0 0.0
    %1160 = vmatpush1.msra.mxu0 0.0
    %1161 = vmatprep.subr.mxu0 0.0
    %1162 = vmatpush1.msra.mxu0 0.0
    %1163 = vmatprep.subr.mxu0 0.0
    %1164 = vmatpush1.msra.mxu0 0.0
    %1165 = vmatprep.subr.mxu0 0.0
    %1166 = vmatpush1.msra.mxu0 0.0
    %1167 = vmatprep.subr.mxu0 0.0
    %1168 = vmatpush1.msra.mxu0 0.0
    %1169 = vmatprep.subr.mxu0 0.0
    %1170 = vmatpush1.msra.mxu0 0.0
    %1171 = vmatprep.subr.mxu0 0.0
    %1172 = vmatpush1.msra.mxu0 0.0
    %1173 = vmatprep.subr.mxu0 0.0
    %1174 = vmatpush1.msra.mxu0 0.0
    %1175 = vmatprep.subr.mxu0 0.0
    %1176 = vmatpush1.msra.mxu0 0.0
    %1177 = vmatprep.subr.mxu0 0.0
    %1178 = vmatpush1.msra.mxu0 0.0
    %1179 = vmatprep.subr.mxu0 0.0
    %1180 = vmatpush1.msra.mxu0 0.0
    %1181 = vmatprep.subr.mxu0 0.0
    %1182 = vmatpush1.msra.mxu0 0.0
    %1183 = vmatprep.subr.mxu0 0.0
    %1184 = vmatpush1.msra.mxu0 0.0
    %1185 = vmatprep.subr.mxu0 0.0
    %1186 = vmatpush1.msra.mxu0 0.0
    %1187 = vmatprep.subr.mxu0 0.0
    %1188 = vmatpush1.msra.mxu0 0.0
    %1189 = vmatprep.subr.mxu0 0.0
    %1190 = vmatpush1.msra.mxu0 0.0
    %1191 = vmatprep.subr.mxu0 0.0
    %1192 = vmatpush1.msra.mxu0 0.0
    %1193 = vmatprep.subr.mxu0 0.0
    %1194 = vmatpush1.msra.mxu0 0.0
    %1195 = vmatprep.subr.mxu0 0.0
    %1196 = vmatpush1.msra.mxu0 0.0
    %1197 = vmatprep.subr.mxu0 0.0
    %1198 = vmatpush1.msra.mxu0 0.0
    %1199 = vmatprep.subr.mxu0 0.0
    %1200 = vmatpush1.msra.mxu0 0.0
    %1201 = vmatprep.subr.mxu0 0.0
    %1202 = vmatpush1.msra.mxu0 0.0
    %1203 = vmatprep.subr.mxu0 0.0
    %1204 = vmatpush1.msra.mxu0 0.0
    %1205 = vmatprep.subr.mxu0 0.0
    %1206 = vmatpush1.msra.mxu0 0.0
    %1207 = vmatprep.subr.mxu0 0.0
    %1208 = vmatpush1.msra.mxu0 0.0
    %1209 = vmatprep.mubr.f32.mxu0 0.0
    %1210 = vmatmul.mubr.f32.gmra.mrb[0].mxu0 %v1143
    %v1211 = vpop.f32.mrb[0].mxu0
    %v1212 = vadd.f32 0.0, %v1211
    %v1213 = vpop.f32.mrb[0].mxu0
    %1214 = vdwg.mxu0
    %1216 = vrot.lane.b32.xlu0 %v1212, 64
    %v1217 = vpop.permute.xlu0 %1216
    %v1219 = vadd.f32 %v1138, %v1217
    %v1220 = vld [vmem:[#allocation4] sm:$0xff]
    %vm1221 = vcmp.gt.s32.totalorder %v225, 3
    %v1222 = vsub.f32 0.0, %v1136
    %v1223 = vmul.f32 %v1222, 1.442695
    %v1224 = vpow.pop %v1223
    %v1225 = vadd.f32 %v1224, 1.0
    %v1226 = vrcp.pop %v1225
    %v1227 = vmul.f32 1.0, %v1226
    %v1228 = vtanh.pop %v1136
    %1230 = vrot.lane.b32.xlu0 %v1220, 16
    %v1231 = vpop.permute.xlu0 %1230
    %v1233 = vmul.f32 %v1227, %v1231
    %1235 = vrot.lane.b32.xlu0 %v1228, 96
    %v1236 = vpop.permute.xlu0 %1235
    %v1238 = vmul.f32 %v1227, %v1236
    %1240 = vrot.lane.b32.xlu0 %v1238, 16
    %v1241 = vpop.permute.xlu0 %1240
    %v1243 = vadd.f32 %v1233, %v1241
    %v1244 = vtanh.pop %v1243
    %1246 = vrot.lane.b32.xlu0 %v1244, 32
    %v1247 = vpop.permute.xlu0 %1246
    %v1249 = vmul.f32 %v1227, %v1247
    %v1250 = vsel %vm1221, 1, 0
    %1251 = vset.pattern.permute.xlu0 0
    %1252 = vperm.xlu0 %1251, %v1250
    %v1253 = vpop.permute.xlu0 %1252
    %vm1254 = vcmp.eq.s32.totalorder %v1253, 1
    %1255 = vrot.lane.b32.xlu0 %v1060, 48
    %v1256 = vpop.permute.xlu0 %1255
    %v1258 = vsel %vm1254, %v1249, %v1256
    %v1259 = vsel %vm1254, %v1243, %v1231
    %v1260 = vsel %vm1254, %v1249, 0.0
    %v1261 = vld [vmem:[#allocation6] sm:$0xff]
    %vm1262 = vcmp.gt.s32.totalorder %v225, 4
    %v1263 = vsub.f32 0.0, %v1219
    %v1264 = vmul.f32 %v1263, 1.442695
    %v1265 = vpow.pop %v1264
    %v1266 = vadd.f32 %v1265, 1.0
    %v1267 = vrcp.pop %v1266
    %v1268 = vmul.f32 1.0, %v1267
    %v1269 = vtanh.pop %v1219
    %1271 = vrot.lane.b32.xlu0 %v1261, 80
    %v1272 = vpop.permute.xlu0 %1271
    %v1274 = vmul.f32 %v1268, %v1272
    %1276 = vrot.lane.b32.xlu0 %v1269, 96
    %v1277 = vpop.permute.xlu0 %1276
    %v1279 = vmul.f32 %v1268, %v1277
    %1281 = vrot.lane.b32.xlu0 %v1279, 16
    %v1282 = vpop.permute.xlu0 %1281
    %v1284 = vadd.f32 %v1274, %v1282
    %v1285 = vtanh.pop %v1284
    %1287 = vrot.lane.b32.xlu0 %v1285, 32
    %v1288 = vpop.permute.xlu0 %1287
    %v1290 = vmul.f32 %v1268, %v1288
    %v1291 = vsel %vm1262, 1, 0
    %1292 = vset.pattern.permute.xlu0 0
    %1293 = vperm.xlu0 %1292, %v1291
    %v1294 = vpop.permute.xlu0 %1293
    %vm1295 = vcmp.eq.s32.totalorder %v1294, 1
    %1296 = vrot.lane.b32.xlu0 %v1139, 112
    %v1297 = vpop.permute.xlu0 %1296
    %v1299 = vsel %vm1295, %v1290, %v1297
    %v1300 = vsel %vm1295, %v1284, %v1272
    %v1301 = vsel %vm1295, %v1290, 0.0
    %1303 = vrot.lane.b32.xlu0 %v1258, 80
    %v1304 = vpop.permute.xlu0 %1303
    %1306 = vst.msk [vmem:[#allocation3] sm:$0xff] %vm226, %v1304
    %1308 = vrot.lane.b32.xlu0 %v1259, 112
    %v1309 = vpop.permute.xlu0 %1308
    %1311 = vst.msk [vmem:[#allocation4] sm:$0xff] %vm226, %v1309
    %1313 = vrot.lane.b32.xlu0 %v1299, 16
    %v1314 = vpop.permute.xlu0 %1313
    %1316 = vst.msk [vmem:[#allocation5] sm:$0xff] %vm226, %v1314
    %1318 = vrot.lane.b32.xlu0 %v1300, 48
    %v1319 = vpop.permute.xlu0 %1318
    %1321 = vst.msk [vmem:[#allocation6] sm:$0xff] %vm226, %v1319
    %1323 = vrot.lane.b32.xlu0 %v1260, 80
    %v1324 = vpop.permute.xlu0 %1323
    %s1326 = scalar_lea.vmem [#allocation13], 24
    %1327 = vst.msk [vmem:[%s1326] sm:$0xff] %vm226, %v1324
    %1329 = vrot.lane.b32.xlu0 %v1301, 32
    %v1330 = vpop.permute.xlu0 %1329
    %s1332 = scalar_lea.vmem [#allocation13], 32
    %1333 = vst.msk [vmem:[%s1332] sm:$0xff] %vm504, %v1330
    %v1334 = vld [vmem:[%s1137] sm:$0xff]
    %v1335 = vld [vmem:[#allocation3] sm:$0xff]
    %v1336 = vld [vmem:[%s3] sm:$0xff]
    %v1337 = vld [vmem:[%s3 + $0x8] sm:$0xff]
    %v1339 = vsel %vm226, %v1335, 0
    %1341 = vmatprep.subr.mxu0 0.0
    %1342 = vmatpush1.msra.mxu0 %v1336
    %1343 = vmatprep.subr.mxu0 0.0
    %1344 = vmatpush1.msra.mxu0 %v1337
    %1345 = vmatprep.subr.mxu0 0.0
    %1346 = vmatpush1.msra.mxu0 0.0
    %1347 = vmatprep.subr.mxu0 0.0
    %1348 = vmatpush1.msra.mxu0 0.0
    %1349 = vmatprep.subr.mxu0 0.0
    %1350 = vmatpush1.msra.mxu0 0.0
    %1351 = vmatprep.subr.mxu0 0.0
    %1352 = vmatpush1.msra.mxu0 0.0
    %1353 = vmatprep.subr.mxu0 0.0
    %1354 = vmatpush1.msra.mxu0 0.0
    %1355 = vmatprep.subr.mxu0 0.0
    %1356 = vmatpush1.msra.mxu0 0.0
    %1357 = vmatprep.subr.mxu0 0.0
    %1358 = vmatpush1.msra.mxu0 0.0
    %1359 = vmatprep.subr.mxu0 0.0
    %1360 = vmatpush1.msra.mxu0 0.0
    %1361 = vmatprep.subr.mxu0 0.0
    %1362 = vmatpush1.msra.mxu0 0.0
    %1363 = vmatprep.subr.mxu0 0.0
    %1364 = vmatpush1.msra.mxu0 0.0
    %1365 = vmatprep.subr.mxu0 0.0
    %1366 = vmatpush1.msra.mxu0 0.0
    %1367 = vmatprep.subr.mxu0 0.0
    %1368 = vmatpush1.msra.mxu0 0.0
    %1369 = vmatprep.subr.mxu0 0.0
    %1370 = vmatpush1.msra.mxu0 0.0
    %1371 = vmatprep.subr.mxu0 0.0
    %1372 = vmatpush1.msra.mxu0 0.0
    %1373 = vmatprep.subr.mxu0 0.0
    %1374 = vmatpush1.msra.mxu0 0.0
    %1375 = vmatprep.subr.mxu0 0.0
    %1376 = vmatpush1.msra.mxu0 0.0
    %1377 = vmatprep.subr.mxu0 0.0
    %1378 = vmatpush1.msra.mxu0 0.0
    %1379 = vmatprep.subr.mxu0 0.0
    %1380 = vmatpush1.msra.mxu0 0.0
    %1381 = vmatprep.subr.mxu0 0.0
    %1382 = vmatpush1.msra.mxu0 0.0
    %1383 = vmatprep.subr.mxu0 0.0
    %1384 = vmatpush1.msra.mxu0 0.0
    %1385 = vmatprep.subr.mxu0 0.0
    %1386 = vmatpush1.msra.mxu0 0.0
    %1387 = vmatprep.subr.mxu0 0.0
    %1388 = vmatpush1.msra.mxu0 0.0
    %1389 = vmatprep.subr.mxu0 0.0
    %1390 = vmatpush1.msra.mxu0 0.0
    %1391 = vmatprep.subr.mxu0 0.0
    %1392 = vmatpush1.msra.mxu0 0.0
    %1393 = vmatprep.subr.mxu0 0.0
    %1394 = vmatpush1.msra.mxu0 0.0
    %1395 = vmatprep.subr.mxu0 0.0
    %1396 = vmatpush1.msra.mxu0 0.0
    %1397 = vmatprep.subr.mxu0 0.0
    %1398 = vmatpush1.msra.mxu0 0.0
    %1399 = vmatprep.subr.mxu0 0.0
    %1400 = vmatpush1.msra.mxu0 0.0
    %1401 = vmatprep.subr.mxu0 0.0
    %1402 = vmatpush1.msra.mxu0 0.0
    %1403 = vmatprep.subr.mxu0 0.0
    %1404 = vmatpush1.msra.mxu0 0.0
    %1405 = vmatprep.mubr.f32.mxu0 0.0
    %1406 = vmatmul.mubr.f32.gmra.mrb[0].mxu0 %v1339
    %v1407 = vpop.f32.mrb[0].mxu0
    %v1408 = vadd.f32 0.0, %v1407
    %v1409 = vpop.f32.mrb[0].mxu0
    %1410 = vdwg.mxu0
    %v1411 = vadd.f32 %v1334, %v1408
    %v1412 = vld [vmem:[%s1058] sm:$0xff]
    %v1413 = vld [vmem:[#allocation5] sm:$0xff]
    %v1414 = vld [vmem:[#allocation12] sm:$0xff]
    %v1415 = vld [vmem:[#allocation12 + $0x8] sm:$0xff]
    %v1417 = vsel %vm226, %v1413, 0
    %1419 = vmatprep.subr.mxu0 0.0
    %1420 = vmatpush1.msra.mxu0 %v1414
    %1421 = vmatprep.subr.mxu0 0.0
    %1422 = vmatpush1.msra.mxu0 %v1415
    %1423 = vmatprep.subr.mxu0 0.0
    %1424 = vmatpush1.msra.mxu0 0.0
    %1425 = vmatprep.subr.mxu0 0.0
    %1426 = vmatpush1.msra.mxu0 0.0
    %1427 = vmatprep.subr.mxu0 0.0
    %1428 = vmatpush1.msra.mxu0 0.0
    %1429 = vmatprep.subr.mxu0 0.0
    %1430 = vmatpush1.msra.mxu0 0.0
    %1431 = vmatprep.subr.mxu0 0.0
    %1432 = vmatpush1.msra.mxu0 0.0
    %1433 = vmatprep.subr.mxu0 0.0
    %1434 = vmatpush1.msra.mxu0 0.0
    %1435 = vmatprep.subr.mxu0 0.0
    %1436 = vmatpush1.msra.mxu0 0.0
    %1437 = vmatprep.subr.mxu0 0.0
    %1438 = vmatpush1.msra.mxu0 0.0
    %1439 = vmatprep.subr.mxu0 0.0
    %1440 = vmatpush1.msra.mxu0 0.0
    %1441 = vmatprep.subr.mxu0 0.0
    %1442 = vmatpush1.msra.mxu0 0.0
    %1443 = vmatprep.subr.mxu0 0.0
    %1444 = vmatpush1.msra.mxu0 0.0
    %1445 = vmatprep.subr.mxu0 0.0
    %1446 = vmatpush1.msra.mxu0 0.0
    %1447 = vmatprep.subr.mxu0 0.0
    %1448 = vmatpush1.msra.mxu0 0.0
    %1449 = vmatprep.subr.mxu0 0.0
    %1450 = vmatpush1.msra.mxu0 0.0
    %1451 = vmatprep.subr.mxu0 0.0
    %1452 = vmatpush1.msra.mxu0 0.0
    %1453 = vmatprep.subr.mxu0 0.0
    %1454 = vmatpush1.msra.mxu0 0.0
    %1455 = vmatprep.subr.mxu0 0.0
    %1456 = vmatpush1.msra.mxu0 0.0
    %1457 = vmatprep.subr.mxu0 0.0
    %1458 = vmatpush1.msra.mxu0 0.0
    %1459 = vmatprep.subr.mxu0 0.0
    %1460 = vmatpush1.msra.mxu0 0.0
    %1461 = vmatprep.subr.mxu0 0.0
    %1462 = vmatpush1.msra.mxu0 0.0
    %1463 = vmatprep.subr.mxu0 0.0
    %1464 = vmatpush1.msra.mxu0 0.0
    %1465 = vmatprep.subr.mxu0 0.0
    %1466 = vmatpush1.msra.mxu0 0.0
    %1467 = vmatprep.subr.mxu0 0.0
    %1468 = vmatpush1.msra.mxu0 0.0
    %1469 = vmatprep.subr.mxu0 0.0
    %1470 = vmatpush1.msra.mxu0 0.0
    %1471 = vmatprep.subr.mxu0 0.0
    %1472 = vmatpush1.msra.mxu0 0.0
    %1473 = vmatprep.subr.mxu0 0.0
    %1474 = vmatpush1.msra.mxu0 0.0
    %1475 = vmatprep.subr.mxu0 0.0
    %1476 = vmatpush1.msra.mxu0 0.0
    %1477 = vmatprep.subr.mxu0 0.0
    %1478 = vmatpush1.msra.mxu0 0.0
    %1479 = vmatprep.subr.mxu0 0.0
    %1480 = vmatpush1.msra.mxu0 0.0
    %1481 = vmatprep.subr.mxu0 0.0
    %1482 = vmatpush1.msra.mxu0 0.0
    %1483 = vmatprep.mubr.f32.mxu0 0.0
    %1484 = vmatmul.mubr.f32.gmra.mrb[0].mxu0 %v1417
    %v1485 = vpop.f32.mrb[0].mxu0
    %v1486 = vadd.f32 0.0, %v1485
    %v1487 = vpop.f32.mrb[0].mxu0
    %1488 = vdwg.mxu0
    %1490 = vrot.lane.b32.xlu0 %v1486, 64
    %v1491 = vpop.permute.xlu0 %1490
    %v1493 = vadd.f32 %v1412, %v1491
    %v1494 = vld [vmem:[#allocation4] sm:$0xff]
    %v1495 = vsub.f32 0.0, %v1411
    %v1496 = vmul.f32 %v1495, 1.442695
    %v1497 = vpow.pop %v1496
    %v1498 = vadd.f32 %v1497, 1.0
    %v1499 = vrcp.pop %v1498
    %v1500 = vmul.f32 1.0, %v1499
    %v1501 = vtanh.pop %v1411
    %1503 = vrot.lane.b32.xlu0 %v1494, 16
    %v1504 = vpop.permute.xlu0 %1503
    %v1506 = vmul.f32 %v1500, %v1504
    %1508 = vrot.lane.b32.xlu0 %v1501, 96
    %v1509 = vpop.permute.xlu0 %1508
    %v1511 = vmul.f32 %v1500, %v1509
    %1513 = vrot.lane.b32.xlu0 %v1511, 16
    %v1514 = vpop.permute.xlu0 %1513
    %v1516 = vadd.f32 %v1506, %v1514
    %v1517 = vtanh.pop %v1516
    %1519 = vrot.lane.b32.xlu0 %v1517, 32
    %v1520 = vpop.permute.xlu0 %1519
    %v1522 = vmul.f32 %v1500, %v1520
    %1523 = vrot.lane.b32.xlu0 %v1335, 48
    %v1524 = vpop.permute.xlu0 %1523
    %v1526 = vsel %vm1295, %v1522, %v1524
    %v1527 = vsel %vm1295, %v1516, %v1504
    %v1528 = vsel %vm1295, %v1522, 0.0
    %v1529 = vld [vmem:[#allocation6] sm:$0xff]
    %v1530 = vsub.f32 0.0, %v1493
    %v1531 = vmul.f32 %v1530, 1.442695
    %v1532 = vpow.pop %v1531
    %v1533 = vadd.f32 %v1532, 1.0
    %v1534 = vrcp.pop %v1533
    %v1535 = vmul.f32 1.0, %v1534
    %v1536 = vtanh.pop %v1493
    %1538 = vrot.lane.b32.xlu0 %v1529, 80
    %v1539 = vpop.permute.xlu0 %1538
    %v1541 = vmul.f32 %v1535, %v1539
    %1543 = vrot.lane.b32.xlu0 %v1536, 96
    %v1544 = vpop.permute.xlu0 %1543
    %v1546 = vmul.f32 %v1535, %v1544
    %1548 = vrot.lane.b32.xlu0 %v1546, 16
    %v1549 = vpop.permute.xlu0 %1548
    %v1551 = vadd.f32 %v1541, %v1549
    %v1552 = vtanh.pop %v1551
    %1554 = vrot.lane.b32.xlu0 %v1552, 32
    %v1555 = vpop.permute.xlu0 %1554
    %v1557 = vmul.f32 %v1535, %v1555
    %1558 = vrot.lane.b32.xlu0 %v1413, 112
    %v1559 = vpop.permute.xlu0 %1558
    %v1561 = vsel %vm1254, %v1557, %v1559
    %v1562 = vsel %vm1254, %v1551, %v1539
    %v1563 = vsel %vm1254, %v1557, 0.0
    %1565 = vrot.lane.b32.xlu0 %v1526, 80
    %v1566 = vpop.permute.xlu0 %1565
    %1568 = vst.msk [vmem:[#allocation3] sm:$0xff] %vm226, %v1566
    %1570 = vrot.lane.b32.xlu0 %v1527, 112
    %v1571 = vpop.permute.xlu0 %1570
    %1573 = vst.msk [vmem:[#allocation4] sm:$0xff] %vm226, %v1571
    %1575 = vrot.lane.b32.xlu0 %v1561, 16
    %v1576 = vpop.permute.xlu0 %1575
    %1578 = vst.msk [vmem:[#allocation5] sm:$0xff] %vm226, %v1576
    %1580 = vrot.lane.b32.xlu0 %v1562, 48
    %v1581 = vpop.permute.xlu0 %1580
    %1583 = vst.msk [vmem:[#allocation6] sm:$0xff] %vm226, %v1581
    %1585 = vrot.lane.b32.xlu0 %v1528, 80
    %v1586 = vpop.permute.xlu0 %1585
    %1588 = vst.msk [vmem:[%s1332] sm:$0xff] %vm226, %v1586
    %1590 = vrot.lane.b32.xlu0 %v1563, 32
    %v1591 = vpop.permute.xlu0 %1590
    %1593 = vst.msk [vmem:[%s1326] sm:$0xff] %vm504, %v1591
    %v1594 = vld [vmem:[%s861] sm:$0xff]
    %v1595 = vld [vmem:[#allocation3] sm:$0xff]
    %v1596 = vld [vmem:[%s3] sm:$0xff]
    %v1597 = vld [vmem:[%s3 + $0x8] sm:$0xff]
    %v1599 = vsel %vm226, %v1595, 0
    %1601 = vmatprep.subr.mxu0 0.0
    %1602 = vmatpush1.msra.mxu0 %v1596
    %1603 = vmatprep.subr.mxu0 0.0
    %1604 = vmatpush1.msra.mxu0 %v1597
    %1605 = vmatprep.subr.mxu0 0.0
    %1606 = vmatpush1.msra.mxu0 0.0
    %1607 = vmatprep.subr.mxu0 0.0
    %1608 = vmatpush1.msra.mxu0 0.0
    %1609 = vmatprep.subr.mxu0 0.0
    %1610 = vmatpush1.msra.mxu0 0.0
    %1611 = vmatprep.subr.mxu0 0.0
    %1612 = vmatpush1.msra.mxu0 0.0
    %1613 = vmatprep.subr.mxu0 0.0
    %1614 = vmatpush1.msra.mxu0 0.0
    %1615 = vmatprep.subr.mxu0 0.0
    %1616 = vmatpush1.msra.mxu0 0.0
    %1617 = vmatprep.subr.mxu0 0.0
    %1618 = vmatpush1.msra.mxu0 0.0
    %1619 = vmatprep.subr.mxu0 0.0
    %1620 = vmatpush1.msra.mxu0 0.0
    %1621 = vmatprep.subr.mxu0 0.0
    %1622 = vmatpush1.msra.mxu0 0.0
    %1623 = vmatprep.subr.mxu0 0.0
    %1624 = vmatpush1.msra.mxu0 0.0
    %1625 = vmatprep.subr.mxu0 0.0
    %1626 = vmatpush1.msra.mxu0 0.0
    %1627 = vmatprep.subr.mxu0 0.0
    %1628 = vmatpush1.msra.mxu0 0.0
    %1629 = vmatprep.subr.mxu0 0.0
    %1630 = vmatpush1.msra.mxu0 0.0
    %1631 = vmatprep.subr.mxu0 0.0
    %1632 = vmatpush1.msra.mxu0 0.0
    %1633 = vmatprep.subr.mxu0 0.0
    %1634 = vmatpush1.msra.mxu0 0.0
    %1635 = vmatprep.subr.mxu0 0.0
    %1636 = vmatpush1.msra.mxu0 0.0
    %1637 = vmatprep.subr.mxu0 0.0
    %1638 = vmatpush1.msra.mxu0 0.0
    %1639 = vmatprep.subr.mxu0 0.0
    %1640 = vmatpush1.msra.mxu0 0.0
    %1641 = vmatprep.subr.mxu0 0.0
    %1642 = vmatpush1.msra.mxu0 0.0
    %1643 = vmatprep.subr.mxu0 0.0
    %1644 = vmatpush1.msra.mxu0 0.0
    %1645 = vmatprep.subr.mxu0 0.0
    %1646 = vmatpush1.msra.mxu0 0.0
    %1647 = vmatprep.subr.mxu0 0.0
    %1648 = vmatpush1.msra.mxu0 0.0
    %1649 = vmatprep.subr.mxu0 0.0
    %1650 = vmatpush1.msra.mxu0 0.0
    %1651 = vmatprep.subr.mxu0 0.0
    %1652 = vmatpush1.msra.mxu0 0.0
    %1653 = vmatprep.subr.mxu0 0.0
    %1654 = vmatpush1.msra.mxu0 0.0
    %1655 = vmatprep.subr.mxu0 0.0
    %1656 = vmatpush1.msra.mxu0 0.0
    %1657 = vmatprep.subr.mxu0 0.0
    %1658 = vmatpush1.msra.mxu0 0.0
    %1659 = vmatprep.subr.mxu0 0.0
    %1660 = vmatpush1.msra.mxu0 0.0
    %1661 = vmatprep.subr.mxu0 0.0
    %1662 = vmatpush1.msra.mxu0 0.0
    %1663 = vmatprep.subr.mxu0 0.0
    %1664 = vmatpush1.msra.mxu0 0.0
    %1665 = vmatprep.mubr.f32.mxu0 0.0
    %1666 = vmatmul.mubr.f32.gmra.mrb[0].mxu0 %v1599
    %v1667 = vpop.f32.mrb[0].mxu0
    %v1668 = vadd.f32 0.0, %v1667
    %v1669 = vpop.f32.mrb[0].mxu0
    %1670 = vdwg.mxu0
    %v1671 = vadd.f32 %v1594, %v1668
    %v1672 = vld [vmem:[%s782] sm:$0xff]
    %v1673 = vld [vmem:[#allocation5] sm:$0xff]
    %v1674 = vld [vmem:[#allocation12] sm:$0xff]
    %v1675 = vld [vmem:[#allocation12 + $0x8] sm:$0xff]
    %v1677 = vsel %vm226, %v1673, 0
    %1679 = vmatprep.subr.mxu0 0.0
    %1680 = vmatpush1.msra.mxu0 %v1674
    %1681 = vmatprep.subr.mxu0 0.0
    %1682 = vmatpush1.msra.mxu0 %v1675
    %1683 = vmatprep.subr.mxu0 0.0
    %1684 = vmatpush1.msra.mxu0 0.0
    %1685 = vmatprep.subr.mxu0 0.0
    %1686 = vmatpush1.msra.mxu0 0.0
    %1687 = vmatprep.subr.mxu0 0.0
    %1688 = vmatpush1.msra.mxu0 0.0
    %1689 = vmatprep.subr.mxu0 0.0
    %1690 = vmatpush1.msra.mxu0 0.0
    %1691 = vmatprep.subr.mxu0 0.0
    %1692 = vmatpush1.msra.mxu0 0.0
    %1693 = vmatprep.subr.mxu0 0.0
    %1694 = vmatpush1.msra.mxu0 0.0
    %1695 = vmatprep.subr.mxu0 0.0
    %1696 = vmatpush1.msra.mxu0 0.0
    %1697 = vmatprep.subr.mxu0 0.0
    %1698 = vmatpush1.msra.mxu0 0.0
    %1699 = vmatprep.subr.mxu0 0.0
    %1700 = vmatpush1.msra.mxu0 0.0
    %1701 = vmatprep.subr.mxu0 0.0
    %1702 = vmatpush1.msra.mxu0 0.0
    %1703 = vmatprep.subr.mxu0 0.0
    %1704 = vmatpush1.msra.mxu0 0.0
    %1705 = vmatprep.subr.mxu0 0.0
    %1706 = vmatpush1.msra.mxu0 0.0
    %1707 = vmatprep.subr.mxu0 0.0
    %1708 = vmatpush1.msra.mxu0 0.0
    %1709 = vmatprep.subr.mxu0 0.0
    %1710 = vmatpush1.msra.mxu0 0.0
    %1711 = vmatprep.subr.mxu0 0.0
    %1712 = vmatpush1.msra.mxu0 0.0
    %1713 = vmatprep.subr.mxu0 0.0
    %1714 = vmatpush1.msra.mxu0 0.0
    %1715 = vmatprep.subr.mxu0 0.0
    %1716 = vmatpush1.msra.mxu0 0.0
    %1717 = vmatprep.subr.mxu0 0.0
    %1718 = vmatpush1.msra.mxu0 0.0
    %1719 = vmatprep.subr.mxu0 0.0
    %1720 = vmatpush1.msra.mxu0 0.0
    %1721 = vmatprep.subr.mxu0 0.0
    %1722 = vmatpush1.msra.mxu0 0.0
    %1723 = vmatprep.subr.mxu0 0.0
    %1724 = vmatpush1.msra.mxu0 0.0
    %1725 = vmatprep.subr.mxu0 0.0
    %1726 = vmatpush1.msra.mxu0 0.0
    %1727 = vmatprep.subr.mxu0 0.0
    %1728 = vmatpush1.msra.mxu0 0.0
    %1729 = vmatprep.subr.mxu0 0.0
    %1730 = vmatpush1.msra.mxu0 0.0
    %1731 = vmatprep.subr.mxu0 0.0
    %1732 = vmatpush1.msra.mxu0 0.0
    %1733 = vmatprep.subr.mxu0 0.0
    %1734 = vmatpush1.msra.mxu0 0.0
    %1735 = vmatprep.subr.mxu0 0.0
    %1736 = vmatpush1.msra.mxu0 0.0
    %1737 = vmatprep.subr.mxu0 0.0
    %1738 = vmatpush1.msra.mxu0 0.0
    %1739 = vmatprep.subr.mxu0 0.0
    %1740 = vmatpush1.msra.mxu0 0.0
    %1741 = vmatprep.subr.mxu0 0.0
    %1742 = vmatpush1.msra.mxu0 0.0
    %1743 = vmatprep.mubr.f32.mxu0 0.0
    %1744 = vmatmul.mubr.f32.gmra.mrb[0].mxu0 %v1677
    %v1745 = vpop.f32.mrb[0].mxu0
    %v1746 = vadd.f32 0.0, %v1745
    %v1747 = vpop.f32.mrb[0].mxu0
    %1748 = vdwg.mxu0
    %1750 = vrot.lane.b32.xlu0 %v1746, 64
    %v1751 = vpop.permute.xlu0 %1750
    %v1753 = vadd.f32 %v1672, %v1751
    %v1754 = vld [vmem:[#allocation4] sm:$0xff]
    %v1755 = vsub.f32 0.0, %v1671
    %v1756 = vmul.f32 %v1755, 1.442695
    %v1757 = vpow.pop %v1756
    %v1758 = vadd.f32 %v1757, 1.0
    %v1759 = vrcp.pop %v1758
    %v1760 = vmul.f32 1.0, %v1759
    %v1761 = vtanh.pop %v1671
    %1763 = vrot.lane.b32.xlu0 %v1754, 16
    %v1764 = vpop.permute.xlu0 %1763
    %v1766 = vmul.f32 %v1760, %v1764
    %1768 = vrot.lane.b32.xlu0 %v1761, 96
    %v1769 = vpop.permute.xlu0 %1768
    %v1771 = vmul.f32 %v1760, %v1769
    %1773 = vrot.lane.b32.xlu0 %v1771, 16
    %v1774 = vpop.permute.xlu0 %1773
    %v1776 = vadd.f32 %v1766, %v1774
    %v1777 = vtanh.pop %v1776
    %1779 = vrot.lane.b32.xlu0 %v1777, 32
    %v1780 = vpop.permute.xlu0 %1779
    %v1782 = vmul.f32 %v1760, %v1780
    %1783 = vrot.lane.b32.xlu0 %v1595, 48
    %v1784 = vpop.permute.xlu0 %1783
    %v1786 = vsel %vm1019, %v1782, %v1784
    %v1787 = vsel %vm1019, %v1776, %v1764
    %v1788 = vsel %vm1019, %v1782, 0.0
    %v1789 = vld [vmem:[#allocation6] sm:$0xff]
    %v1790 = vsub.f32 0.0, %v1753
    %v1791 = vmul.f32 %v1790, 1.442695
    %v1792 = vpow.pop %v1791
    %v1793 = vadd.f32 %v1792, 1.0
    %v1794 = vrcp.pop %v1793
    %v1795 = vmul.f32 1.0, %v1794
    %v1796 = vtanh.pop %v1753
    %1798 = vrot.lane.b32.xlu0 %v1789, 80
    %v1799 = vpop.permute.xlu0 %1798
    %v1801 = vmul.f32 %v1795, %v1799
    %1803 = vrot.lane.b32.xlu0 %v1796, 96
    %v1804 = vpop.permute.xlu0 %1803
    %v1806 = vmul.f32 %v1795, %v1804
    %1808 = vrot.lane.b32.xlu0 %v1806, 16
    %v1809 = vpop.permute.xlu0 %1808
    %v1811 = vadd.f32 %v1801, %v1809
    %v1812 = vtanh.pop %v1811
    %1814 = vrot.lane.b32.xlu0 %v1812, 32
    %v1815 = vpop.permute.xlu0 %1814
    %v1817 = vmul.f32 %v1795, %v1815
    %1818 = vrot.lane.b32.xlu0 %v1673, 112
    %v1819 = vpop.permute.xlu0 %1818
    %v1821 = vsel %vm978, %v1817, %v1819
    %v1822 = vsel %vm978, %v1811, %v1799
    %v1823 = vsel %vm978, %v1817, 0.0
    %1825 = vrot.lane.b32.xlu0 %v1786, 80
    %v1826 = vpop.permute.xlu0 %1825
    %1828 = vst.msk [vmem:[#allocation3] sm:$0xff] %vm226, %v1826
    %1830 = vrot.lane.b32.xlu0 %v1787, 112
    %v1831 = vpop.permute.xlu0 %1830
    %1833 = vst.msk [vmem:[#allocation4] sm:$0xff] %vm226, %v1831
    %1835 = vrot.lane.b32.xlu0 %v1821, 16
    %v1836 = vpop.permute.xlu0 %1835
    %1838 = vst.msk [vmem:[#allocation5] sm:$0xff] %vm226, %v1836
    %1840 = vrot.lane.b32.xlu0 %v1822, 48
    %v1841 = vpop.permute.xlu0 %1840
    %1843 = vst.msk [vmem:[#allocation6] sm:$0xff] %vm226, %v1841
    %1845 = vrot.lane.b32.xlu0 %v1788, 80
    %v1846 = vpop.permute.xlu0 %1845
    %1848 = vst.msk [vmem:[%s1056] sm:$0xff] %vm226, %v1846
    %1850 = vrot.lane.b32.xlu0 %v1823, 32
    %v1851 = vpop.permute.xlu0 %1850
    %1853 = vst.msk [vmem:[%s1050] sm:$0xff] %vm504, %v1851
    %v1854 = vld [vmem:[%s585] sm:$0xff]
    %v1855 = vld [vmem:[#allocation3] sm:$0xff]
    %v1856 = vld [vmem:[%s3] sm:$0xff]
    %v1857 = vld [vmem:[%s3 + $0x8] sm:$0xff]
    %v1859 = vsel %vm226, %v1855, 0
    %1861 = vmatprep.subr.mxu0 0.0
    %1862 = vmatpush1.msra.mxu0 %v1856
    %1863 = vmatprep.subr.mxu0 0.0
    %1864 = vmatpush1.msra.mxu0 %v1857
    %1865 = vmatprep.subr.mxu0 0.0
    %1866 = vmatpush1.msra.mxu0 0.0
    %1867 = vmatprep.subr.mxu0 0.0
    %1868 = vmatpush1.msra.mxu0 0.0
    %1869 = vmatprep.subr.mxu0 0.0
    %1870 = vmatpush1.msra.mxu0 0.0
    %1871 = vmatprep.subr.mxu0 0.0
    %1872 = vmatpush1.msra.mxu0 0.0
    %1873 = vmatprep.subr.mxu0 0.0
    %1874 = vmatpush1.msra.mxu0 0.0
    %1875 = vmatprep.subr.mxu0 0.0
    %1876 = vmatpush1.msra.mxu0 0.0
    %1877 = vmatprep.subr.mxu0 0.0
    %1878 = vmatpush1.msra.mxu0 0.0
    %1879 = vmatprep.subr.mxu0 0.0
    %1880 = vmatpush1.msra.mxu0 0.0
    %1881 = vmatprep.subr.mxu0 0.0
    %1882 = vmatpush1.msra.mxu0 0.0
    %1883 = vmatprep.subr.mxu0 0.0
    %1884 = vmatpush1.msra.mxu0 0.0
    %1885 = vmatprep.subr.mxu0 0.0
    %1886 = vmatpush1.msra.mxu0 0.0
    %1887 = vmatprep.subr.mxu0 0.0
    %1888 = vmatpush1.msra.mxu0 0.0
    %1889 = vmatprep.subr.mxu0 0.0
    %1890 = vmatpush1.msra.mxu0 0.0
    %1891 = vmatprep.subr.mxu0 0.0
    %1892 = vmatpush1.msra.mxu0 0.0
    %1893 = vmatprep.subr.mxu0 0.0
    %1894 = vmatpush1.msra.mxu0 0.0
    %1895 = vmatprep.subr.mxu0 0.0
    %1896 = vmatpush1.msra.mxu0 0.0
    %1897 = vmatprep.subr.mxu0 0.0
    %1898 = vmatpush1.msra.mxu0 0.0
    %1899 = vmatprep.subr.mxu0 0.0
    %1900 = vmatpush1.msra.mxu0 0.0
    %1901 = vmatprep.subr.mxu0 0.0
    %1902 = vmatpush1.msra.mxu0 0.0
    %1903 = vmatprep.subr.mxu0 0.0
    %1904 = vmatpush1.msra.mxu0 0.0
    %1905 = vmatprep.subr.mxu0 0.0
    %1906 = vmatpush1.msra.mxu0 0.0
    %1907 = vmatprep.subr.mxu0 0.0
    %1908 = vmatpush1.msra.mxu0 0.0
    %1909 = vmatprep.subr.mxu0 0.0
    %1910 = vmatpush1.msra.mxu0 0.0
    %1911 = vmatprep.subr.mxu0 0.0
    %1912 = vmatpush1.msra.mxu0 0.0
    %1913 = vmatprep.subr.mxu0 0.0
    %1914 = vmatpush1.msra.mxu0 0.0
    %1915 = vmatprep.subr.mxu0 0.0
    %1916 = vmatpush1.msra.mxu0 0.0
    %1917 = vmatprep.subr.mxu0 0.0
    %1918 = vmatpush1.msra.mxu0 0.0
    %1919 = vmatprep.subr.mxu0 0.0
    %1920 = vmatpush1.msra.mxu0 0.0
    %1921 = vmatprep.subr.mxu0 0.0
    %1922 = vmatpush1.msra.mxu0 0.0
    %1923 = vmatprep.subr.mxu0 0.0
    %1924 = vmatpush1.msra.mxu0 0.0
    %1925 = vmatprep.mubr.f32.mxu0 0.0
    %1926 = vmatmul.mubr.f32.gmra.mrb[0].mxu0 %v1859
    %v1927 = vpop.f32.mrb[0].mxu0
    %v1928 = vadd.f32 0.0, %v1927
    %v1929 = vpop.f32.mrb[0].mxu0
    %1930 = vdwg.mxu0
    %v1931 = vadd.f32 %v1854, %v1928
    %v1932 = vld [vmem:[%s506] sm:$0xff]
    %v1933 = vld [vmem:[#allocation5] sm:$0xff]
    %v1934 = vld [vmem:[#allocation12] sm:$0xff]
    %v1935 = vld [vmem:[#allocation12 + $0x8] sm:$0xff]
    %v1937 = vsel %vm226, %v1933, 0
    %1939 = vmatprep.subr.mxu0 0.0
    %1940 = vmatpush1.msra.mxu0 %v1934
    %1941 = vmatprep.subr.mxu0 0.0
    %1942 = vmatpush1.msra.mxu0 %v1935
    %1943 = vmatprep.subr.mxu0 0.0
    %1944 = vmatpush1.msra.mxu0 0.0
    %1945 = vmatprep.subr.mxu0 0.0
    %1946 = vmatpush1.msra.mxu0 0.0
    %1947 = vmatprep.subr.mxu0 0.0
    %1948 = vmatpush1.msra.mxu0 0.0
    %1949 = vmatprep.subr.mxu0 0.0
    %1950 = vmatpush1.msra.mxu0 0.0
    %1951 = vmatprep.subr.mxu0 0.0
    %1952 = vmatpush1.msra.mxu0 0.0
    %1953 = vmatprep.subr.mxu0 0.0
    %1954 = vmatpush1.msra.mxu0 0.0
    %1955 = vmatprep.subr.mxu0 0.0
    %1956 = vmatpush1.msra.mxu0 0.0
    %1957 = vmatprep.subr.mxu0 0.0
    %1958 = vmatpush1.msra.mxu0 0.0
    %1959 = vmatprep.subr.mxu0 0.0
    %1960 = vmatpush1.msra.mxu0 0.0
    %1961 = vmatprep.subr.mxu0 0.0
    %1962 = vmatpush1.msra.mxu0 0.0
    %1963 = vmatprep.subr.mxu0 0.0
    %1964 = vmatpush1.msra.mxu0 0.0
    %1965 = vmatprep.subr.mxu0 0.0
    %1966 = vmatpush1.msra.mxu0 0.0
    %1967 = vmatprep.subr.mxu0 0.0
    %1968 = vmatpush1.msra.mxu0 0.0
    %1969 = vmatprep.subr.mxu0 0.0
    %1970 = vmatpush1.msra.mxu0 0.0
    %1971 = vmatprep.subr.mxu0 0.0
    %1972 = vmatpush1.msra.mxu0 0.0
    %1973 = vmatprep.subr.mxu0 0.0
    %1974 = vmatpush1.msra.mxu0 0.0
    %1975 = vmatprep.subr.mxu0 0.0
    %1976 = vmatpush1.msra.mxu0 0.0
    %1977 = vmatprep.subr.mxu0 0.0
    %1978 = vmatpush1.msra.mxu0 0.0
    %1979 = vmatprep.subr.mxu0 0.0
    %1980 = vmatpush1.msra.mxu0 0.0
    %1981 = vmatprep.subr.mxu0 0.0
    %1982 = vmatpush1.msra.mxu0 0.0
    %1983 = vmatprep.subr.mxu0 0.0
    %1984 = vmatpush1.msra.mxu0 0.0
    %1985 = vmatprep.subr.mxu0 0.0
    %1986 = vmatpush1.msra.mxu0 0.0
    %1987 = vmatprep.subr.mxu0 0.0
    %1988 = vmatpush1.msra.mxu0 0.0
    %1989 = vmatprep.subr.mxu0 0.0
    %1990 = vmatpush1.msra.mxu0 0.0
    %1991 = vmatprep.subr.mxu0 0.0
    %1992 = vmatpush1.msra.mxu0 0.0
    %1993 = vmatprep.subr.mxu0 0.0
    %1994 = vmatpush1.msra.mxu0 0.0
    %1995 = vmatprep.subr.mxu0 0.0
    %1996 = vmatpush1.msra.mxu0 0.0
    %1997 = vmatprep.subr.mxu0 0.0
    %1998 = vmatpush1.msra.mxu0 0.0
    %1999 = vmatprep.subr.mxu0 0.0
    %2000 = vmatpush1.msra.mxu0 0.0
    %2001 = vmatprep.subr.mxu0 0.0
    %2002 = vmatpush1.msra.mxu0 0.0
    %2003 = vmatprep.mubr.f32.mxu0 0.0
    %2004 = vmatmul.mubr.f32.gmra.mrb[0].mxu0 %v1937
    %v2005 = vpop.f32.mrb[0].mxu0
    %v2006 = vadd.f32 0.0, %v2005
    %v2007 = vpop.f32.mrb[0].mxu0
    %2008 = vdwg.mxu0
    %2010 = vrot.lane.b32.xlu0 %v2006, 64
    %v2011 = vpop.permute.xlu0 %2010
    %v2013 = vadd.f32 %v1932, %v2011
    %v2014 = vld [vmem:[#allocation4] sm:$0xff]
    %v2015 = vsub.f32 0.0, %v1931
    %v2016 = vmul.f32 %v2015, 1.442695
    %v2017 = vpow.pop %v2016
    %v2018 = vadd.f32 %v2017, 1.0
    %v2019 = vrcp.pop %v2018
    %v2020 = vmul.f32 1.0, %v2019
    %v2021 = vtanh.pop %v1931
    %2023 = vrot.lane.b32.xlu0 %v2014, 16
    %v2024 = vpop.permute.xlu0 %2023
    %v2026 = vmul.f32 %v2020, %v2024
    %2028 = vrot.lane.b32.xlu0 %v2021, 96
    %v2029 = vpop.permute.xlu0 %2028
    %v2031 = vmul.f32 %v2020, %v2029
    %2033 = vrot.lane.b32.xlu0 %v2031, 16
    %v2034 = vpop.permute.xlu0 %2033
    %v2036 = vadd.f32 %v2026, %v2034
    %v2037 = vtanh.pop %v2036
    %2039 = vrot.lane.b32.xlu0 %v2037, 32
    %v2040 = vpop.permute.xlu0 %2039
    %v2042 = vmul.f32 %v2020, %v2040
    %2043 = vrot.lane.b32.xlu0 %v1855, 48
    %v2044 = vpop.permute.xlu0 %2043
    %v2046 = vsel %vm743, %v2042, %v2044
    %v2047 = vsel %vm743, %v2036, %v2024
    %v2048 = vsel %vm743, %v2042, 0.0
    %v2049 = vld [vmem:[#allocation6] sm:$0xff]
    %v2050 = vsub.f32 0.0, %v2013
    %v2051 = vmul.f32 %v2050, 1.442695
    %v2052 = vpow.pop %v2051
    %v2053 = vadd.f32 %v2052, 1.0
    %v2054 = vrcp.pop %v2053
    %v2055 = vmul.f32 1.0, %v2054
    %v2056 = vtanh.pop %v2013
    %2058 = vrot.lane.b32.xlu0 %v2049, 80
    %v2059 = vpop.permute.xlu0 %2058
    %v2061 = vmul.f32 %v2055, %v2059
    %2063 = vrot.lane.b32.xlu0 %v2056, 96
    %v2064 = vpop.permute.xlu0 %2063
    %v2066 = vmul.f32 %v2055, %v2064
    %2068 = vrot.lane.b32.xlu0 %v2066, 16
    %v2069 = vpop.permute.xlu0 %2068
    %v2071 = vadd.f32 %v2061, %v2069
    %v2072 = vtanh.pop %v2071
    %2074 = vrot.lane.b32.xlu0 %v2072, 32
    %v2075 = vpop.permute.xlu0 %2074
    %v2077 = vmul.f32 %v2055, %v2075
    %2078 = vrot.lane.b32.xlu0 %v1933, 112
    %v2079 = vpop.permute.xlu0 %2078
    %v2081 = vsel %vm702, %v2077, %v2079
    %v2082 = vsel %vm702, %v2071, %v2059
    %v2083 = vsel %vm702, %v2077, 0.0
    %2085 = vrot.lane.b32.xlu0 %v2046, 80
    %v2086 = vpop.permute.xlu0 %2085
    %2088 = vst.msk [vmem:[#allocation3] sm:$0xff] %vm226, %v2086
    %2090 = vrot.lane.b32.xlu0 %v2047, 112
    %v2091 = vpop.permute.xlu0 %2090
    %2093 = vst.msk [vmem:[#allocation4] sm:$0xff] %vm226, %v2091
    %2095 = vrot.lane.b32.xlu0 %v2081, 16
    %v2096 = vpop.permute.xlu0 %2095
    %2098 = vst.msk [vmem:[#allocation5] sm:$0xff] %vm226, %v2096
    %2100 = vrot.lane.b32.xlu0 %v2082, 48
    %v2101 = vpop.permute.xlu0 %2100
    %2103 = vst.msk [vmem:[#allocation6] sm:$0xff] %vm226, %v2101
    %2105 = vrot.lane.b32.xlu0 %v2048, 80
    %v2106 = vpop.permute.xlu0 %2105
    %2108 = vst.msk [vmem:[%s780] sm:$0xff] %vm226, %v2106
    %2110 = vrot.lane.b32.xlu0 %v2083, 32
    %v2111 = vpop.permute.xlu0 %2110
    %2113 = vst.msk [vmem:[%s774] sm:$0xff] %vm504, %v2111
    %v2114 = vld [vmem:[%s309] sm:$0xff]
    %v2115 = vld [vmem:[#allocation3] sm:$0xff]
    %v2116 = vld [vmem:[%s3] sm:$0xff]
    %v2117 = vld [vmem:[%s3 + $0x8] sm:$0xff]
    %v2119 = vsel %vm226, %v2115, 0
    %2121 = vmatprep.subr.mxu0 0.0
    %2122 = vmatpush1.msra.mxu0 %v2116
    %2123 = vmatprep.subr.mxu0 0.0
    %2124 = vmatpush1.msra.mxu0 %v2117
    %2125 = vmatprep.subr.mxu0 0.0
    %2126 = vmatpush1.msra.mxu0 0.0
    %2127 = vmatprep.subr.mxu0 0.0
    %2128 = vmatpush1.msra.mxu0 0.0
    %2129 = vmatprep.subr.mxu0 0.0
    %2130 = vmatpush1.msra.mxu0 0.0
    %2131 = vmatprep.subr.mxu0 0.0
    %2132 = vmatpush1.msra.mxu0 0.0
    %2133 = vmatprep.subr.mxu0 0.0
    %2134 = vmatpush1.msra.mxu0 0.0
    %2135 = vmatprep.subr.mxu0 0.0
    %2136 = vmatpush1.msra.mxu0 0.0
    %2137 = vmatprep.subr.mxu0 0.0
    %2138 = vmatpush1.msra.mxu0 0.0
    %2139 = vmatprep.subr.mxu0 0.0
    %2140 = vmatpush1.msra.mxu0 0.0
    %2141 = vmatprep.subr.mxu0 0.0
    %2142 = vmatpush1.msra.mxu0 0.0
    %2143 = vmatprep.subr.mxu0 0.0
    %2144 = vmatpush1.msra.mxu0 0.0
    %2145 = vmatprep.subr.mxu0 0.0
    %2146 = vmatpush1.msra.mxu0 0.0
    %2147 = vmatprep.subr.mxu0 0.0
    %2148 = vmatpush1.msra.mxu0 0.0
    %2149 = vmatprep.subr.mxu0 0.0
    %2150 = vmatpush1.msra.mxu0 0.0
    %2151 = vmatprep.subr.mxu0 0.0
    %2152 = vmatpush1.msra.mxu0 0.0
    %2153 = vmatprep.subr.mxu0 0.0
    %2154 = vmatpush1.msra.mxu0 0.0
    %2155 = vmatprep.subr.mxu0 0.0
    %2156 = vmatpush1.msra.mxu0 0.0
    %2157 = vmatprep.subr.mxu0 0.0
    %2158 = vmatpush1.msra.mxu0 0.0
    %2159 = vmatprep.subr.mxu0 0.0
    %2160 = vmatpush1.msra.mxu0 0.0
    %2161 = vmatprep.subr.mxu0 0.0
    %2162 = vmatpush1.msra.mxu0 0.0
    %2163 = vmatprep.subr.mxu0 0.0
    %2164 = vmatpush1.msra.mxu0 0.0
    %2165 = vmatprep.subr.mxu0 0.0
    %2166 = vmatpush1.msra.mxu0 0.0
    %2167 = vmatprep.subr.mxu0 0.0
    %2168 = vmatpush1.msra.mxu0 0.0
    %2169 = vmatprep.subr.mxu0 0.0
    %2170 = vmatpush1.msra.mxu0 0.0
    %2171 = vmatprep.subr.mxu0 0.0
    %2172 = vmatpush1.msra.mxu0 0.0
    %2173 = vmatprep.subr.mxu0 0.0
    %2174 = vmatpush1.msra.mxu0 0.0
    %2175 = vmatprep.subr.mxu0 0.0
    %2176 = vmatpush1.msra.mxu0 0.0
    %2177 = vmatprep.subr.mxu0 0.0
    %2178 = vmatpush1.msra.mxu0 0.0
    %2179 = vmatprep.subr.mxu0 0.0
    %2180 = vmatpush1.msra.mxu0 0.0
    %2181 = vmatprep.subr.mxu0 0.0
    %2182 = vmatpush1.msra.mxu0 0.0
    %2183 = vmatprep.subr.mxu0 0.0
    %2184 = vmatpush1.msra.mxu0 0.0
    %2185 = vmatprep.mubr.f32.mxu0 0.0
    %2186 = vmatmul.mubr.f32.gmra.mrb[0].mxu0 %v2119
    %v2187 = vpop.f32.mrb[0].mxu0
    %v2188 = vadd.f32 0.0, %v2187
    %v2189 = vpop.f32.mrb[0].mxu0
    %2190 = vdwg.mxu0
    %v2191 = vadd.f32 %v2114, %v2188
    %v2192 = vld [vmem:[#allocation2] sm:$0xff]
    %v2193 = vld [vmem:[#allocation5] sm:$0xff]
    %v2194 = vld [vmem:[#allocation12] sm:$0xff]
    %v2195 = vld [vmem:[#allocation12 + $0x8] sm:$0xff]
    %v2197 = vsel %vm226, %v2193, 0
    %2199 = vmatprep.subr.mxu0 0.0
    %2200 = vmatpush1.msra.mxu0 %v2194
    %2201 = vmatprep.subr.mxu0 0.0
    %2202 = vmatpush1.msra.mxu0 %v2195
    %2203 = vmatprep.subr.mxu0 0.0
    %2204 = vmatpush1.msra.mxu0 0.0
    %2205 = vmatprep.subr.mxu0 0.0
    %2206 = vmatpush1.msra.mxu0 0.0
    %2207 = vmatprep.subr.mxu0 0.0
    %2208 = vmatpush1.msra.mxu0 0.0
    %2209 = vmatprep.subr.mxu0 0.0
    %2210 = vmatpush1.msra.mxu0 0.0
    %2211 = vmatprep.subr.mxu0 0.0
    %2212 = vmatpush1.msra.mxu0 0.0
    %2213 = vmatprep.subr.mxu0 0.0
    %2214 = vmatpush1.msra.mxu0 0.0
    %2215 = vmatprep.subr.mxu0 0.0
    %2216 = vmatpush1.msra.mxu0 0.0
    %2217 = vmatprep.subr.mxu0 0.0
    %2218 = vmatpush1.msra.mxu0 0.0
    %2219 = vmatprep.subr.mxu0 0.0
    %2220 = vmatpush1.msra.mxu0 0.0
    %2221 = vmatprep.subr.mxu0 0.0
    %2222 = vmatpush1.msra.mxu0 0.0
    %2223 = vmatprep.subr.mxu0 0.0
    %2224 = vmatpush1.msra.mxu0 0.0
    %2225 = vmatprep.subr.mxu0 0.0
    %2226 = vmatpush1.msra.mxu0 0.0
    %2227 = vmatprep.subr.mxu0 0.0
    %2228 = vmatpush1.msra.mxu0 0.0
    %2229 = vmatprep.subr.mxu0 0.0
    %2230 = vmatpush1.msra.mxu0 0.0
    %2231 = vmatprep.subr.mxu0 0.0
    %2232 = vmatpush1.msra.mxu0 0.0
    %2233 = vmatprep.subr.mxu0 0.0
    %2234 = vmatpush1.msra.mxu0 0.0
    %2235 = vmatprep.subr.mxu0 0.0
    %2236 = vmatpush1.msra.mxu0 0.0
    %2237 = vmatprep.subr.mxu0 0.0
    %2238 = vmatpush1.msra.mxu0 0.0
    %2239 = vmatprep.subr.mxu0 0.0
    %2240 = vmatpush1.msra.mxu0 0.0
    %2241 = vmatprep.subr.mxu0 0.0
    %2242 = vmatpush1.msra.mxu0 0.0
    %2243 = vmatprep.subr.mxu0 0.0
    %2244 = vmatpush1.msra.mxu0 0.0
    %2245 = vmatprep.subr.mxu0 0.0
    %2246 = vmatpush1.msra.mxu0 0.0
    %2247 = vmatprep.subr.mxu0 0.0
    %2248 = vmatpush1.msra.mxu0 0.0
    %2249 = vmatprep.subr.mxu0 0.0
    %2250 = vmatpush1.msra.mxu0 0.0
    %2251 = vmatprep.subr.mxu0 0.0
    %2252 = vmatpush1.msra.mxu0 0.0
    %2253 = vmatprep.subr.mxu0 0.0
    %2254 = vmatpush1.msra.mxu0 0.0
    %2255 = vmatprep.subr.mxu0 0.0
    %2256 = vmatpush1.msra.mxu0 0.0
    %2257 = vmatprep.subr.mxu0 0.0
    %2258 = vmatpush1.msra.mxu0 0.0
    %2259 = vmatprep.subr.mxu0 0.0
    %2260 = vmatpush1.msra.mxu0 0.0
    %2261 = vmatprep.subr.mxu0 0.0
    %2262 = vmatpush1.msra.mxu0 0.0
    %2263 = vmatprep.mubr.f32.mxu0 0.0
    %2264 = vmatmul.mubr.f32.gmra.mrb[0].mxu0 %v2197
    %v2265 = vpop.f32.mrb[0].mxu0
    %v2266 = vadd.f32 0.0, %v2265
    %v2267 = vpop.f32.mrb[0].mxu0
    %2268 = vdwg.mxu0
    %2270 = vrot.lane.b32.xlu0 %v2266, 64
    %v2271 = vpop.permute.xlu0 %2270
    %v2273 = vadd.f32 %v2192, %v2271
    %v2274 = vld [vmem:[#allocation4] sm:$0xff]
    %v2275 = vsub.f32 0.0, %v2191
    %v2276 = vmul.f32 %v2275, 1.442695
    %v2277 = vpow.pop %v2276
    %v2278 = vadd.f32 %v2277, 1.0
    %v2279 = vrcp.pop %v2278
    %v2280 = vmul.f32 1.0, %v2279
    %v2281 = vtanh.pop %v2191
    %2283 = vrot.lane.b32.xlu0 %v2274, 16
    %v2284 = vpop.permute.xlu0 %2283
    %v2286 = vmul.f32 %v2280, %v2284
    %2288 = vrot.lane.b32.xlu0 %v2281, 96
    %v2289 = vpop.permute.xlu0 %2288
    %v2291 = vmul.f32 %v2280, %v2289
    %2293 = vrot.lane.b32.xlu0 %v2291, 16
    %v2294 = vpop.permute.xlu0 %2293
    %v2296 = vadd.f32 %v2286, %v2294
    %v2297 = vtanh.pop %v2296
    %2299 = vrot.lane.b32.xlu0 %v2297, 32
    %v2300 = vpop.permute.xlu0 %2299
    %v2302 = vmul.f32 %v2280, %v2300
    %2303 = vrot.lane.b32.xlu0 %v2115, 48
    %v2304 = vpop.permute.xlu0 %2303
    %v2306 = vsel %vm467, %v2302, %v2304
    %v2307 = vsel %vm467, %v2296, %v2284
    %v2308 = vsel %vm467, %v2302, 0.0
    %v2309 = vld [vmem:[#allocation6] sm:$0xff]
    %v2310 = vsub.f32 0.0, %v2273
    %v2311 = vmul.f32 %v2310, 1.442695
    %v2312 = vpow.pop %v2311
    %v2313 = vadd.f32 %v2312, 1.0
    %v2314 = vrcp.pop %v2313
    %v2315 = vmul.f32 1.0, %v2314
    %v2316 = vtanh.pop %v2273
    %2318 = vrot.lane.b32.xlu0 %v2309, 80
    %v2319 = vpop.permute.xlu0 %2318
    %v2321 = vmul.f32 %v2315, %v2319
    %2323 = vrot.lane.b32.xlu0 %v2316, 96
    %v2324 = vpop.permute.xlu0 %2323
    %v2326 = vmul.f32 %v2315, %v2324
    %2328 = vrot.lane.b32.xlu0 %v2326, 16
    %v2329 = vpop.permute.xlu0 %2328
    %v2331 = vadd.f32 %v2321, %v2329
    %v2332 = vtanh.pop %v2331
    %2334 = vrot.lane.b32.xlu0 %v2332, 32
    %v2335 = vpop.permute.xlu0 %2334
    %v2337 = vmul.f32 %v2315, %v2335
    %2338 = vrot.lane.b32.xlu0 %v2193, 112
    %v2339 = vpop.permute.xlu0 %2338
    %v2341 = vsel %vm426, %v2337, %v2339
    %v2342 = vsel %vm426, %v2331, %v2319
    %v2343 = vsel %vm426, %v2337, 0.0
    %2345 = vrot.lane.b32.xlu0 %v2306, 80
    %v2346 = vpop.permute.xlu0 %2345
    %2348 = vst.msk [vmem:[#allocation3] sm:$0xff] %vm226, %v2346
    %2350 = vrot.lane.b32.xlu0 %v2307, 112
    %v2351 = vpop.permute.xlu0 %2350
    %2353 = vst.msk [vmem:[#allocation4] sm:$0xff] %vm226, %v2351
    %2355 = vrot.lane.b32.xlu0 %v2341, 16
    %v2356 = vpop.permute.xlu0 %2355
    %2358 = vst.msk [vmem:[#allocation5] sm:$0xff] %vm226, %v2356
    %2360 = vrot.lane.b32.xlu0 %v2342, 48
    %v2361 = vpop.permute.xlu0 %2360
    %2363 = vst.msk [vmem:[#allocation6] sm:$0xff] %vm226, %v2361
    %2365 = vrot.lane.b32.xlu0 %v2308, 80
    %v2366 = vpop.permute.xlu0 %2365
    %2368 = vst.msk [vmem:[%s503] sm:$0xff] %vm226, %v2366
    %2370 = vrot.lane.b32.xlu0 %v2343, 32
    %v2371 = vpop.permute.xlu0 %2370
    %2373 = vst.msk [vmem:[#allocation13] sm:$0xff] %vm504, %v2371
    %v2374 = vld [vmem:[#allocation3] sm:$0xff]
    %2375 = vst.msk [vmem:[#allocation14] sm:$0xff] %vm226, %v2374
    %v2376 = vld [vmem:[#allocation5] sm:$0xff]
    %2378 = vrot.lane.b32.xlu0 %v2376, 16
    %v2379 = vpop.permute.xlu0 %2378
    %2381 = vst.msk [vmem:[#allocation14] sm:$0xff] %vm504, %v2379
    // Predicated region
    $region38: #{tpu_custom_call.1} parent=1 // pred_check
      _
    $region39: #{tpu_custom_call.1} parent=1 // pred_check_branch
      %2383 = sbr.rel (0) target = $region41
    $region40: #{tpu_custom_call.1} parent=1 // pred_region
      %s2385 = ssub.s32 1024, 1024
      %2386 = vsyncadd [#allocation9], %s2385
      %s2387 = sshll.u32 [#allocation13], 4
      %s2388 = int_to_ptr.vmem [resolvable:$true] %s2387
      %2393 = dma.vmem_to_hbm [thread:$0]  %s2388, 1024, %s6, [#allocation9], 128, 128, 8
    $region41: #{tpu_custom_call.1} parent=1 // pred_fallthru
      _
    // Predicated region
    $region42: #{tpu_custom_call.1} parent=1 // pred_check
      _
    $region43: #{tpu_custom_call.1} parent=1 // pred_check_branch
      %2395 = sbr.rel (0) target = $region45
    $region44: #{tpu_custom_call.1} parent=1 // pred_region
      %s2397 = ssub.s32 128, 128
      %2398 = vsyncadd [#allocation15], %s2397
      %s2400 = sshll.u32 [#allocation14], 4
      %s2401 = int_to_ptr.vmem [resolvable:$true] %s2400
      %2403 = dma.vmem_to_hbm [thread:$0]  %s2401, 128, %s7, [#allocation15]
    $region45: #{tpu_custom_call.1} parent=1 // pred_fallthru
      _
    // Predicated region
    $region46: #{tpu_custom_call.1} parent=1 // pred_check
      _
    $region47: #{tpu_custom_call.1} parent=1 // pred_check_branch
      %2405 = sbr.rel (0) target = $region49
    $region48: #{tpu_custom_call.1} parent=1 // pred_region
      %2406 = dma.done [#allocation9], 1024
    $region49: #{tpu_custom_call.1} parent=1 // pred_fallthru
      _
    // Predicated region
    $region50: #{tpu_custom_call.1} parent=1 // pred_check
      _
    $region51: #{tpu_custom_call.1} parent=1 // pred_check_branch
      %2408 = sbr.rel (0) target = $region53
    $region52: #{tpu_custom_call.1} parent=1 // pred_region
      %2409 = dma.done [#allocation15], 128
    $region53: #{tpu_custom_call.1} parent=1 // pred_fallthru
      _
    %2410 = vsyncpa [#allocation8], 1
    %2411 = vsyncpa [#allocation11], 1
    %2412 = vsyncpa [#allocation9], 1
    %2413 = vsyncpa [#allocation15], 1

</llo_original>
